<compile_context>
chip_gen: v7x
topology: tpu7x:2x2x1
jax: 0.10.0
libtpu: 0.0.40
codegen_flags: <defaults>
</compile_context>

<pallas_src>
import functools
import math

import jax
import jax.numpy as jnp
from jax.experimental import pallas as pl
from jax.experimental.pallas import tpu as pltpu


CFG = dict(
    vocab_size=100,
    hidden=64,
    num_layers=2,
    num_heads=4,
    intermediate=128,
    max_pos=64,
    num_classes=3,
    pad_token_id=1,
    ln_eps=1e-5,
)


# --------------------------------------------------------------------------
# Fused Pallas kernel: emb-LN -> [encoder layer]*L -> pooler -> classifier
# --------------------------------------------------------------------------
def _roberta_kernel(emb_ref, bias_ref,
                    embg_ref, embb_ref,
                    qkvw_ref, qkvb_ref, ow_ref, ob_ref,
                    ln1g_ref, ln1b_ref, iw_ref, ib_ref, fw_ref, fb_ref,
                    ln2g_ref, ln2b_ref,
                    pw_ref, pb_ref, cw_ref, cb_ref,
                    logits_ref, pooled_ref,
                    *, nh, eps):
    bblk = bias_ref.shape[0]          # examples in this grid step
    S = bias_ref.shape[2]             # sequence length
    H = embg_ref.shape[1]             # hidden
    dh = H // nh
    nl = qkvw_ref.shape[0]            # number of layers (weights stacked on axis 0)

    def ln(x, g, b):
        mu = jnp.mean(x, axis=-1, keepdims=True)
        xc = x - mu
        var = jnp.mean(xc * xc, axis=-1, keepdims=True)
        return xc * jax.lax.rsqrt(var + eps) * g + b

    # ---- embedding LayerNorm (fused; no separate pallas_call) ----------------
    h = ln(emb_ref[...].astype(jnp.float32), embg_ref[...], embb_ref[...])   # [M, H]

    # Additive key masks, broadcast ONCE (hoisted out of the unrolled loops).
    bias_full = [jnp.broadcast_to(bias_ref[b], (S, S)) for b in range(bblk)]

    for l in range(nl):
        h_bf = h.astype(jnp.bfloat16)

        # ---- fused QKV projection: one [M,H]@[H,3H] matmul ------------------
        # (1/sqrt(dh) is pre-folded into the query columns / bias.)
        qkv = (jnp.dot(h_bf, qkvw_ref[l], preferred_element_type=jnp.float32)
               + qkvb_ref[l])
        qkv_bf = qkv.astype(jnp.bfloat16)     # single cast; sliced per head below

        # ---- per-example, per-head attention on VMEM-resident tiles ---------
        ctx_rows = []
        for b in range(bblk):
            r0 = b * S
            bias_b = bias_full[b]
            head_ctx = []
            for i in range(nh):
                q_h = qkv_bf[r0:r0 + S, i * dh:(i + 1) * dh]
                k_h = qkv_bf[r0:r0 + S, H + i * dh:H + (i + 1) * dh]
                v_h = qkv_bf[r0:r0 + S, 2 * H + i * dh:2 * H + (i + 1) * dh]
                s = jax.lax.dot_general(q_h, k_h, (((1,), (1,)), ((), ())),
                                        preferred_element_type=jnp.float32)  # [S,S]
                s = s + bias_b
                s = s - jnp.max(s, axis=-1, keepdims=True)
                p = jnp.exp(s)
                p = p * pl.reciprocal(jnp.sum(p, axis=-1, keepdims=True), approx=True)
                head_ctx.append(jnp.dot(p.astype(jnp.bfloat16), v_h,
                                        preferred_element_type=jnp.float32))  # [S,dh]
            ctx_rows.append(jnp.concatenate(head_ctx, axis=-1))               # [S,H]
        ctx = jnp.concatenate(ctx_rows, axis=0).astype(jnp.bfloat16)          # [M,H]

        # ---- fused output projection: one [M,H]@[H,H] matmul ----------------
        attn = jnp.dot(ctx, ow_ref[l], preferred_element_type=jnp.float32) + ob_ref[l]
        h1 = ln(attn + h, ln1g_ref[l], ln1b_ref[l])

        # ---- feed-forward + residual + LN2 -----------------------------------
        u = (jnp.dot(h1.astype(jnp.bfloat16), iw_ref[l],
                     preferred_element_type=jnp.float32) + ib_ref[l])         # [M,I]
        # TODO(synk): HF RoBERTa uses exact erf-GELU; tanh approximation kept
        # since erf has no guaranteed Mosaic lowering.
        u = 0.5 * u * (1.0 + jnp.tanh(0.7978845608028654 * (u + 0.044715 * u * u * u)))
        d = (jnp.dot(u.astype(jnp.bfloat16), fw_ref[l],
                     preferred_element_type=jnp.float32) + fb_ref[l])         # [M,H]
        h = ln(d + h1, ln2g_ref[l], ln2b_ref[l])

    # ---- pooler (token 0 of each example) + contrastive classifier ----------
    cls_rows = jnp.concatenate([h[b * S:b * S + 1, :] for b in range(bblk)], axis=0)
    pooled = jnp.tanh(jnp.dot(cls_rows.astype(jnp.bfloat16), pw_ref[...],
                              preferred_element_type=jnp.float32) + pb_ref[...])
    pooled_ref[...] = pooled
    logits_ref[...] = (jnp.dot(pooled.astype(jnp.bfloat16), cw_ref[...],
                               preferred_element_type=jnp.float32) + cb_ref[...])


# --------------------------------------------------------------------------
# Parameters (deterministic synthetic init, kernel-friendly stacked layout)
# --------------------------------------------------------------------------
def init_params(key, cfg):
    H, I, C = cfg["hidden"], cfg["intermediate"], cfg["num_classes"]
    nh, L = cfg["num_heads"], cfg["num_layers"]
    dh = H // nh
    scale = 1.0 / math.sqrt(dh)
    keys = iter(jax.random.split(key, 16 + 8 * L))

    def w(shape):
        return jax.random.normal(next(keys), shape, jnp.float32) * 0.02

    qkv_w, o_w, i_w, f_w = [], [], [], []
    for _ in range(L):
        q, k, v = w((H, H)), w((H, H)), w((H, H))
        # Fold the 1/sqrt(dh) attention scale into the query projection columns.
        qkv_w.append(jnp.concatenate([q * scale, k, v], axis=1))   # [H, 3H]
        o_w.append(w((H, H)))
        i_w.append(w((H, I)))
        f_w.append(w((I, H)))

    enc = dict(
        qkv_w=jnp.stack(qkv_w).astype(jnp.bfloat16),        # [L, H, 3H]
        qkv_b=jnp.zeros((L, 1, 3 * H), jnp.float32),        # q part pre-scaled (zero here)
        o_w=jnp.stack(o_w).astype(jnp.bfloat16),            # [L, H, H]
        o_b=jnp.zeros((L, 1, H), jnp.float32),
        ln1_g=jnp.ones((L, 1, H), jnp.float32),
        ln1_b=jnp.zeros((L, 1, H), jnp.float32),
        i_w=jnp.stack(i_w).astype(jnp.bfloat16),            # [L, H, I]
        i_b=jnp.zeros((L, 1, I), jnp.float32),
        f_w=jnp.stack(f_w).astype(jnp.bfloat16),            # [L, I, H]
        f_b=jnp.zeros((L, 1, H), jnp.float32),
        ln2_g=jnp.ones((L, 1, H), jnp.float32),
        ln2_b=jnp.zeros((L, 1, H), jnp.float32),
    )
    return {
        "word_emb": w((cfg["vocab_size"], H)),
        "pos_emb": w((cfg["max_pos"], H)),
        "type_emb": w((1, H)),
        "emb_ln_g": jnp.ones((1, H), jnp.float32),
        "emb_ln_b": jnp.zeros((1, H), jnp.float32),
        "enc": enc,
        "pool_w": w((H, H)).astype(jnp.bfloat16),
        "pool_b": jnp.zeros((1, H), jnp.float32),
        "cls_w": w((H, C)).astype(jnp.bfloat16),
        "cls_b": jnp.zeros((1, C), jnp.float32),
    }


# --------------------------------------------------------------------------
# Forward pass: (input_ids, attention_mask) -> (logits, pooled_output)
# --------------------------------------------------------------------------
def roberta_forward(params, input_ids, attention_mask, cfg=CFG, batch_block=None):
    B, S = input_ids.shape
    H, nh, C = cfg["hidden"], cfg["num_heads"], cfg["num_classes"]
    eps, pad_id = cfg["ln_eps"], cfg["pad_token_id"]

    # RoBERTa position ids: cumsum over non-pad tokens, offset by pad id.
    not_pad = (input_ids != pad_id).astype(jnp.int32)
    position_ids = jnp.cumsum(not_pad, axis=1) * not_pad + pad_id

    emb = (params["word_emb"][input_ids]
           + params["pos_emb"][position_ids]
           + params["type_emb"][0][None, None, :])                    # [B, S, H]
    emb2d = emb.reshape(B * S, H).astype(jnp.float32)
    mask_bias = ((1.0 - attention_mask.astype(jnp.float32)) * -1e9).reshape(B, 1, S)

    # One grid step processes `batch_block` examples.  Default: all of them
    # (single grid step on single-TC v5e/v6e -> M = B*S sublane-dense matmuls,
    # grid/launch overhead paid once).  If batch_block < B it must be a
    # multiple of 8 (2-D output block constraint).
    if batch_block is None:
        batch_block = B
    assert B % batch_block == 0
    num_blocks = B // batch_block
    M = batch_block * S
    enc = params["enc"]

    def full(shape):
        n = len(shape)
        return pl.BlockSpec(tuple(shape), lambda b, _n=n: (0,) * _n)

    kernel = functools.partial(_roberta_kernel, nh=nh, eps=eps)
    logits, pooled = pl.pallas_call(
        kernel,
        grid=(num_blocks,),
        in_specs=[
            pl.BlockSpec((M, H), lambda b: (b, 0)),                   # embeddings
            pl.BlockSpec((batch_block, 1, S), lambda b: (b, 0, 0)),   # mask bias
            full((1, H)), full((1, H)),                               # emb LN
            full(enc["qkv_w"].shape), full(enc["qkv_b"].shape),
            full(enc["o_w"].shape), full(enc["o_b"].shape),
            full(enc["ln1_g"].shape), full(enc["ln1_b"].shape),
            full(enc["i_w"].shape), full(enc["i_b"].shape),
            full(enc["f_w"].shape), full(enc["f_b"].shape),
            full(enc["ln2_g"].shape), full(enc["ln2_b"].shape),
            full((H, H)), full((1, H)),                               # pooler
            full((H, C)), full((1, C)),                               # classifier
        ],
        out_specs=[
            pl.BlockSpec((batch_block, C), lambda b: (b, 0)),
            pl.BlockSpec((batch_block, H), lambda b: (b, 0)),
        ],
        out_shape=(jax.ShapeDtypeStruct((B, C), jnp.float32),
                   jax.ShapeDtypeStruct((B, H), jnp.float32)),
        compiler_params=pltpu.CompilerParams(dimension_semantics=("parallel",)),
    )(emb2d, mask_bias,
      params["emb_ln_g"], params["emb_ln_b"],
      enc["qkv_w"], enc["qkv_b"], enc["o_w"], enc["o_b"],
      enc["ln1_g"], enc["ln1_b"], enc["i_w"], enc["i_b"],
      enc["f_w"], enc["f_b"], enc["ln2_g"], enc["ln2_b"],
      params["pool_w"], params["pool_b"], params["cls_w"], params["cls_b"])
    return logits, pooled


if __name__ == "__main__":
    key = jax.random.PRNGKey(0)
    pkey, ikey = jax.random.split(key)
    params = init_params(pkey, CFG)

    B, S = 2, 8
    ids = jax.random.randint(ikey, (B, S), 2, CFG["vocab_size"], dtype=jnp.int32)
    attention_mask = jnp.array([[1, 1, 1, 1, 1, 1, 1, 1],
                                [1, 1, 1, 1, 1, 0, 0, 0]], dtype=jnp.int32)
    input_ids = jnp.where(attention_mask == 1, ids, CFG["pad_token_id"])

    fwd = jax.jit(roberta_forward)
    logits, pooled = fwd(params, input_ids, attention_mask)
    jax.block_until_ready((logits, pooled))
    assert logits.shape == (B, CFG["num_classes"])
    assert pooled.shape == (B, CFG["hidden"])
    print("KERNEL_OK")
</pallas_src>

<mosaic_0001>
module attributes {stable_mosaic.version = 11 : i64} {
  func.func @_roberta_kernel(%arg0: i32, %arg1: memref<16x64xf32, #tpu.memory_space<vmem>>, %arg2: memref<2x1x8xf32, #tpu.memory_space<vmem>>, %arg3: memref<1x64xf32, #tpu.memory_space<vmem>>, %arg4: memref<1x64xf32, #tpu.memory_space<vmem>>, %arg5: memref<2x64x192xbf16, #tpu.memory_space<vmem>>, %arg6: memref<2x1x192xf32, #tpu.memory_space<vmem>>, %arg7: memref<2x64x64xbf16, #tpu.memory_space<vmem>>, %arg8: memref<2x1x64xf32, #tpu.memory_space<vmem>>, %arg9: memref<2x1x64xf32, #tpu.memory_space<vmem>>, %arg10: memref<2x1x64xf32, #tpu.memory_space<vmem>>, %arg11: memref<2x64x128xbf16, #tpu.memory_space<vmem>>, %arg12: memref<2x1x128xf32, #tpu.memory_space<vmem>>, %arg13: memref<2x128x64xbf16, #tpu.memory_space<vmem>>, %arg14: memref<2x1x64xf32, #tpu.memory_space<vmem>>, %arg15: memref<2x1x64xf32, #tpu.memory_space<vmem>>, %arg16: memref<2x1x64xf32, #tpu.memory_space<vmem>>, %arg17: memref<64x64xbf16, #tpu.memory_space<vmem>>, %arg18: memref<1x64xf32, #tpu.memory_space<vmem>>, %arg19: memref<64x3xbf16, #tpu.memory_space<vmem>>, %arg20: memref<1x3xf32, #tpu.memory_space<vmem>>, %arg21: memref<2x3xf32, #tpu.memory_space<vmem>>, %arg22: memref<2x64xf32, #tpu.memory_space<vmem>>) attributes {dimension_semantics = [#tpu.dimension_semantics<parallel>], iteration_bounds = array<i64: 1>, scalar_prefetch = 0 : i64, scratch_operands = 0 : i64, tpu.core_type = #tpu.core_type<tc>, window_params = [{transform_indices = @transform_0, window_bounds = array<i64: 16, 64>}, {transform_indices = @transform_1, window_bounds = array<i64: 2, 1, 8>}, {pipeline_mode = #tpu.pipeline_mode<synchronous>, transform_indices = @transform_2, window_bounds = array<i64: 1, 64>}, {pipeline_mode = #tpu.pipeline_mode<synchronous>, transform_indices = @transform_3, window_bounds = array<i64: 1, 64>}, {pipeline_mode = #tpu.pipeline_mode<synchronous>, transform_indices = @transform_4, window_bounds = array<i64: 2, 64, 192>}, {pipeline_mode = #tpu.pipeline_mode<synchronous>, transform_indices = @transform_5, window_bounds = array<i64: 2, 1, 192>}, {pipeline_mode = #tpu.pipeline_mode<synchronous>, transform_indices = @transform_6, window_bounds = array<i64: 2, 64, 64>}, {pipeline_mode = #tpu.pipeline_mode<synchronous>, transform_indices = @transform_7, window_bounds = array<i64: 2, 1, 64>}, {pipeline_mode = #tpu.pipeline_mode<synchronous>, transform_indices = @transform_8, window_bounds = array<i64: 2, 1, 64>}, {pipeline_mode = #tpu.pipeline_mode<synchronous>, transform_indices = @transform_9, window_bounds = array<i64: 2, 1, 64>}, {pipeline_mode = #tpu.pipeline_mode<synchronous>, transform_indices = @transform_10, window_bounds = array<i64: 2, 64, 128>}, {pipeline_mode = #tpu.pipeline_mode<synchronous>, transform_indices = @transform_11, window_bounds = array<i64: 2, 1, 128>}, {pipeline_mode = #tpu.pipeline_mode<synchronous>, transform_indices = @transform_12, window_bounds = array<i64: 2, 128, 64>}, {pipeline_mode = #tpu.pipeline_mode<synchronous>, transform_indices = @transform_13, window_bounds = array<i64: 2, 1, 64>}, {pipeline_mode = #tpu.pipeline_mode<synchronous>, transform_indices = @transform_14, window_bounds = array<i64: 2, 1, 64>}, {pipeline_mode = #tpu.pipeline_mode<synchronous>, transform_indices = @transform_15, window_bounds = array<i64: 2, 1, 64>}, {pipeline_mode = #tpu.pipeline_mode<synchronous>, transform_indices = @transform_16, window_bounds = array<i64: 64, 64>}, {pipeline_mode = #tpu.pipeline_mode<synchronous>, transform_indices = @transform_17, window_bounds = array<i64: 1, 64>}, {pipeline_mode = #tpu.pipeline_mode<synchronous>, transform_indices = @transform_18, window_bounds = array<i64: 64, 3>}, {pipeline_mode = #tpu.pipeline_mode<synchronous>, transform_indices = @transform_19, window_bounds = array<i64: 1, 3>}, {transform_indices = @transform_20, window_bounds = array<i64: 2, 3>}, {transform_indices = @transform_21, window_bounds = array<i64: 2, 64>}]} {
    %c0 = arith.constant 0 : index
    %c0_0 = arith.constant 0 : index
    %0 = vector.load %arg1[%c0, %c0_0] : memref<16x64xf32, #tpu.memory_space<vmem>>, vector<16x64xf32>
    %c0_1 = arith.constant 0 : index
    %c0_2 = arith.constant 0 : index
    %1 = vector.load %arg3[%c0_1, %c0_2] : memref<1x64xf32, #tpu.memory_space<vmem>>, vector<1x64xf32>
    %c0_3 = arith.constant 0 : index
    %c0_4 = arith.constant 0 : index
    %2 = vector.load %arg4[%c0_3, %c0_4] : memref<1x64xf32, #tpu.memory_space<vmem>>, vector<1x64xf32>
    %cst = arith.constant dense<0.000000e+00> : vector<16xf32>
    %3 = vector.multi_reduction <add>, %0, %cst [1] : vector<16x64xf32> to vector<16xf32>
    %4 = vector.shape_cast %3 : vector<16xf32> to vector<16x1xf32>
    %cst_5 = arith.constant 6.400000e+01 : f32
    %5 = vector.broadcast %cst_5 : f32 to vector<16x1xf32>
    %6 = arith.divf %4, %5 : vector<16x1xf32>
    %7 = vector.broadcast %6 : vector<16x1xf32> to vector<16x64xf32>
    %8 = arith.subf %0, %7 : vector<16x64xf32>
    %9 = arith.mulf %8, %8 : vector<16x64xf32>
    %cst_6 = arith.constant dense<0.000000e+00> : vector<16xf32>
    %10 = vector.multi_reduction <add>, %9, %cst_6 [1] : vector<16x64xf32> to vector<16xf32>
    %11 = vector.shape_cast %10 : vector<16xf32> to vector<16x1xf32>
    %cst_7 = arith.constant 6.400000e+01 : f32
    %12 = vector.broadcast %cst_7 : f32 to vector<16x1xf32>
    %13 = arith.divf %11, %12 : vector<16x1xf32>
    %cst_8 = arith.constant 9.99999974E-6 : f32
    %14 = vector.broadcast %cst_8 : f32 to vector<16x1xf32>
    %15 = arith.addf %13, %14 : vector<16x1xf32>
    %16 = math.rsqrt %15 : vector<16x1xf32>
    %17 = vector.broadcast %16 : vector<16x1xf32> to vector<16x64xf32>
    %18 = arith.mulf %8, %17 : vector<16x64xf32>
    %19 = vector.broadcast %1 : vector<1x64xf32> to vector<16x64xf32>
    %20 = arith.mulf %18, %19 : vector<16x64xf32>
    %21 = vector.broadcast %2 : vector<1x64xf32> to vector<16x64xf32>
    %22 = arith.addf %20, %21 : vector<16x64xf32>
    %c0_9 = arith.constant 0 : index
    %c0_10 = arith.constant 0 : index
    %c0_11 = arith.constant 0 : index
    %23 = vector.load %arg2[%c0_9, %c0_10, %c0_11] : memref<2x1x8xf32, #tpu.memory_space<vmem>>, vector<1x1x8xf32>
    %24 = vector.shape_cast %23 : vector<1x1x8xf32> to vector<1x8xf32>
    %25 = vector.shape_cast %24 : vector<1x8xf32> to vector<1x8xf32>
    %26 = vector.broadcast %25 : vector<1x8xf32> to vector<8x8xf32>
    %c1 = arith.constant 1 : index
    %c0_12 = arith.constant 0 : index
    %c0_13 = arith.constant 0 : index
    %27 = vector.load %arg2[%c1, %c0_12, %c0_13] : memref<2x1x8xf32, #tpu.memory_space<vmem>>, vector<1x1x8xf32>
    %28 = vector.shape_cast %27 : vector<1x1x8xf32> to vector<1x8xf32>
    %29 = vector.shape_cast %28 : vector<1x8xf32> to vector<1x8xf32>
    %30 = vector.broadcast %29 : vector<1x8xf32> to vector<8x8xf32>
    %31 = arith.truncf %22 : vector<16x64xf32> to vector<16x64xbf16>
    %c0_14 = arith.constant 0 : index
    %c0_15 = arith.constant 0 : index
    %c0_16 = arith.constant 0 : index
    %32 = vector.load %arg5[%c0_14, %c0_15, %c0_16] : memref<2x64x192xbf16, #tpu.memory_space<vmem>>, vector<1x64x192xbf16>
    %33 = vector.shape_cast %32 : vector<1x64x192xbf16> to vector<64x192xbf16>
    %cst_17 = arith.constant dense<0.000000e+00> : vector<16x192xf32>
    %34 = tpu.matmul %31, %33, %cst_17 {dimension_numbers = #tpu.dot_dimension_numbers<[1], [0], [0], [1], [0, 0, 1, 1], [], []>} : vector<16x64xbf16>, vector<64x192xbf16>, vector<16x192xf32> -> vector<16x192xf32>
    %c0_18 = arith.constant 0 : index
    %c0_19 = arith.constant 0 : index
    %c0_20 = arith.constant 0 : index
    %35 = vector.load %arg6[%c0_18, %c0_19, %c0_20] : memref<2x1x192xf32, #tpu.memory_space<vmem>>, vector<1x1x192xf32>
    %36 = vector.shape_cast %35 : vector<1x1x192xf32> to vector<1x192xf32>
    %37 = vector.broadcast %36 : vector<1x192xf32> to vector<16x192xf32>
    %38 = arith.addf %34, %37 : vector<16x192xf32>
    %39 = arith.truncf %38 : vector<16x192xf32> to vector<16x192xbf16>
    %40 = vector.extract_strided_slice %39 {offsets = [0, 0], sizes = [8, 16], strides = [1, 1]} : vector<16x192xbf16> to vector<8x16xbf16>
    %41 = vector.extract_strided_slice %39 {offsets = [0, 64], sizes = [8, 16], strides = [1, 1]} : vector<16x192xbf16> to vector<8x16xbf16>
    %42 = vector.extract_strided_slice %39 {offsets = [0, 128], sizes = [8, 16], strides = [1, 1]} : vector<16x192xbf16> to vector<8x16xbf16>
    %cst_21 = arith.constant dense<0.000000e+00> : vector<8x8xf32>
    %43 = tpu.matmul %40, %41, %cst_21 {dimension_numbers = #tpu.dot_dimension_numbers<[1], [1], [0], [0], [0, 0, 1, 0], [], []>} : vector<8x16xbf16>, vector<8x16xbf16>, vector<8x8xf32> -> vector<8x8xf32>
    %44 = arith.addf %43, %26 : vector<8x8xf32>
    %cst_22 = arith.constant dense<0xFF800000> : vector<8xf32>
    %45 = vector.multi_reduction <maximumf>, %44, %cst_22 [1] : vector<8x8xf32> to vector<8xf32>
    %46 = vector.shape_cast %45 : vector<8xf32> to vector<8x1xf32>
    %47 = vector.broadcast %46 : vector<8x1xf32> to vector<8x8xf32>
    %48 = arith.subf %44, %47 : vector<8x8xf32>
    %49 = math.exp %48 : vector<8x8xf32>
    %cst_23 = arith.constant dense<0.000000e+00> : vector<8xf32>
    %50 = vector.multi_reduction <add>, %49, %cst_23 [1] : vector<8x8xf32> to vector<8xf32>
    %51 = vector.shape_cast %50 : vector<8xf32> to vector<8x1xf32>
    %52 = tpu.reciprocal %51 {approx = true} : vector<8x1xf32> -> vector<8x1xf32>
    %53 = vector.broadcast %52 : vector<8x1xf32> to vector<8x8xf32>
    %54 = arith.mulf %49, %53 : vector<8x8xf32>
    %55 = arith.truncf %54 : vector<8x8xf32> to vector<8x8xbf16>
    %cst_24 = arith.constant dense<0.000000e+00> : vector<8x16xf32>
    %56 = tpu.matmul %55, %42, %cst_24 {dimension_numbers = #tpu.dot_dimension_numbers<[1], [0], [0], [1], [0, 0, 1, 1], [], []>} : vector<8x8xbf16>, vector<8x16xbf16>, vector<8x16xf32> -> vector<8x16xf32>
    %57 = vector.extract_strided_slice %39 {offsets = [0, 16], sizes = [8, 16], strides = [1, 1]} : vector<16x192xbf16> to vector<8x16xbf16>
    %58 = vector.extract_strided_slice %39 {offsets = [0, 80], sizes = [8, 16], strides = [1, 1]} : vector<16x192xbf16> to vector<8x16xbf16>
    %59 = vector.extract_strided_slice %39 {offsets = [0, 144], sizes = [8, 16], strides = [1, 1]} : vector<16x192xbf16> to vector<8x16xbf16>
    %cst_25 = arith.constant dense<0.000000e+00> : vector<8x8xf32>
    %60 = tpu.matmul %57, %58, %cst_25 {dimension_numbers = #tpu.dot_dimension_numbers<[1], [1], [0], [0], [0, 0, 1, 0], [], []>} : vector<8x16xbf16>, vector<8x16xbf16>, vector<8x8xf32> -> vector<8x8xf32>
    %61 = arith.addf %60, %26 : vector<8x8xf32>
    %cst_26 = arith.constant dense<0xFF800000> : vector<8xf32>
    %62 = vector.multi_reduction <maximumf>, %61, %cst_26 [1] : vector<8x8xf32> to vector<8xf32>
    %63 = vector.shape_cast %62 : vector<8xf32> to vector<8x1xf32>
    %64 = vector.broadcast %63 : vector<8x1xf32> to vector<8x8xf32>
    %65 = arith.subf %61, %64 : vector<8x8xf32>
    %66 = math.exp %65 : vector<8x8xf32>
    %cst_27 = arith.constant dense<0.000000e+00> : vector<8xf32>
    %67 = vector.multi_reduction <add>, %66, %cst_27 [1] : vector<8x8xf32> to vector<8xf32>
    %68 = vector.shape_cast %67 : vector<8xf32> to vector<8x1xf32>
    %69 = tpu.reciprocal %68 {approx = true} : vector<8x1xf32> -> vector<8x1xf32>
    %70 = vector.broadcast %69 : vector<8x1xf32> to vector<8x8xf32>
    %71 = arith.mulf %66, %70 : vector<8x8xf32>
    %72 = arith.truncf %71 : vector<8x8xf32> to vector<8x8xbf16>
    %cst_28 = arith.constant dense<0.000000e+00> : vector<8x16xf32>
    %73 = tpu.matmul %72, %59, %cst_28 {dimension_numbers = #tpu.dot_dimension_numbers<[1], [0], [0], [1], [0, 0, 1, 1], [], []>} : vector<8x8xbf16>, vector<8x16xbf16>, vector<8x16xf32> -> vector<8x16xf32>
    %74 = vector.extract_strided_slice %39 {offsets = [0, 32], sizes = [8, 16], strides = [1, 1]} : vector<16x192xbf16> to vector<8x16xbf16>
    %75 = vector.extract_strided_slice %39 {offsets = [0, 96], sizes = [8, 16], strides = [1, 1]} : vector<16x192xbf16> to vector<8x16xbf16>
    %76 = vector.extract_strided_slice %39 {offsets = [0, 160], sizes = [8, 16], strides = [1, 1]} : vector<16x192xbf16> to vector<8x16xbf16>
    %cst_29 = arith.constant dense<0.000000e+00> : vector<8x8xf32>
    %77 = tpu.matmul %74, %75, %cst_29 {dimension_numbers = #tpu.dot_dimension_numbers<[1], [1], [0], [0], [0, 0, 1, 0], [], []>} : vector<8x16xbf16>, vector<8x16xbf16>, vector<8x8xf32> -> vector<8x8xf32>
    %78 = arith.addf %77, %26 : vector<8x8xf32>
    %cst_30 = arith.constant dense<0xFF800000> : vector<8xf32>
    %79 = vector.multi_reduction <maximumf>, %78, %cst_30 [1] : vector<8x8xf32> to vector<8xf32>
    %80 = vector.shape_cast %79 : vector<8xf32> to vector<8x1xf32>
    %81 = vector.broadcast %80 : vector<8x1xf32> to vector<8x8xf32>
    %82 = arith.subf %78, %81 : vector<8x8xf32>
    %83 = math.exp %82 : vector<8x8xf32>
    %cst_31 = arith.constant dense<0.000000e+00> : vector<8xf32>
    %84 = vector.multi_reduction <add>, %83, %cst_31 [1] : vector<8x8xf32> to vector<8xf32>
    %85 = vector.shape_cast %84 : vector<8xf32> to vector<8x1xf32>
    %86 = tpu.reciprocal %85 {approx = true} : vector<8x1xf32> -> vector<8x1xf32>
    %87 = vector.broadcast %86 : vector<8x1xf32> to vector<8x8xf32>
    %88 = arith.mulf %83, %87 : vector<8x8xf32>
    %89 = arith.truncf %88 : vector<8x8xf32> to vector<8x8xbf16>
    %cst_32 = arith.constant dense<0.000000e+00> : vector<8x16xf32>
    %90 = tpu.matmul %89, %76, %cst_32 {dimension_numbers = #tpu.dot_dimension_numbers<[1], [0], [0], [1], [0, 0, 1, 1], [], []>} : vector<8x8xbf16>, vector<8x16xbf16>, vector<8x16xf32> -> vector<8x16xf32>
    %91 = vector.extract_strided_slice %39 {offsets = [0, 48], sizes = [8, 16], strides = [1, 1]} : vector<16x192xbf16> to vector<8x16xbf16>
    %92 = vector.extract_strided_slice %39 {offsets = [0, 112], sizes = [8, 16], strides = [1, 1]} : vector<16x192xbf16> to vector<8x16xbf16>
    %93 = vector.extract_strided_slice %39 {offsets = [0, 176], sizes = [8, 16], strides = [1, 1]} : vector<16x192xbf16> to vector<8x16xbf16>
    %cst_33 = arith.constant dense<0.000000e+00> : vector<8x8xf32>
    %94 = tpu.matmul %91, %92, %cst_33 {dimension_numbers = #tpu.dot_dimension_numbers<[1], [1], [0], [0], [0, 0, 1, 0], [], []>} : vector<8x16xbf16>, vector<8x16xbf16>, vector<8x8xf32> -> vector<8x8xf32>
    %95 = arith.addf %94, %26 : vector<8x8xf32>
    %cst_34 = arith.constant dense<0xFF800000> : vector<8xf32>
    %96 = vector.multi_reduction <maximumf>, %95, %cst_34 [1] : vector<8x8xf32> to vector<8xf32>
    %97 = vector.shape_cast %96 : vector<8xf32> to vector<8x1xf32>
    %98 = vector.broadcast %97 : vector<8x1xf32> to vector<8x8xf32>
    %99 = arith.subf %95, %98 : vector<8x8xf32>
    %100 = math.exp %99 : vector<8x8xf32>
    %cst_35 = arith.constant dense<0.000000e+00> : vector<8xf32>
    %101 = vector.multi_reduction <add>, %100, %cst_35 [1] : vector<8x8xf32> to vector<8xf32>
    %102 = vector.shape_cast %101 : vector<8xf32> to vector<8x1xf32>
    %103 = tpu.reciprocal %102 {approx = true} : vector<8x1xf32> -> vector<8x1xf32>
    %104 = vector.broadcast %103 : vector<8x1xf32> to vector<8x8xf32>
    %105 = arith.mulf %100, %104 : vector<8x8xf32>
    %106 = arith.truncf %105 : vector<8x8xf32> to vector<8x8xbf16>
    %cst_36 = arith.constant dense<0.000000e+00> : vector<8x16xf32>
    %107 = tpu.matmul %106, %93, %cst_36 {dimension_numbers = #tpu.dot_dimension_numbers<[1], [0], [0], [1], [0, 0, 1, 1], [], []>} : vector<8x8xbf16>, vector<8x16xbf16>, vector<8x16xf32> -> vector<8x16xf32>
    %108 = tpu.concatenate %56, %73, %90, %107 in 1 : vector<8x16xf32>, vector<8x16xf32>, vector<8x16xf32>, vector<8x16xf32> -> vector<8x64xf32>
    %109 = vector.extract_strided_slice %39 {offsets = [8, 0], sizes = [8, 16], strides = [1, 1]} : vector<16x192xbf16> to vector<8x16xbf16>
    %110 = vector.extract_strided_slice %39 {offsets = [8, 64], sizes = [8, 16], strides = [1, 1]} : vector<16x192xbf16> to vector<8x16xbf16>
    %111 = vector.extract_strided_slice %39 {offsets = [8, 128], sizes = [8, 16], strides = [1, 1]} : vector<16x192xbf16> to vector<8x16xbf16>
    %cst_37 = arith.constant dense<0.000000e+00> : vector<8x8xf32>
    %112 = tpu.matmul %109, %110, %cst_37 {dimension_numbers = #tpu.dot_dimension_numbers<[1], [1], [0], [0], [0, 0, 1, 0], [], []>} : vector<8x16xbf16>, vector<8x16xbf16>, vector<8x8xf32> -> vector<8x8xf32>
    %113 = arith.addf %112, %30 : vector<8x8xf32>
    %cst_38 = arith.constant dense<0xFF800000> : vector<8xf32>
    %114 = vector.multi_reduction <maximumf>, %113, %cst_38 [1] : vector<8x8xf32> to vector<8xf32>
    %115 = vector.shape_cast %114 : vector<8xf32> to vector<8x1xf32>
    %116 = vector.broadcast %115 : vector<8x1xf32> to vector<8x8xf32>
    %117 = arith.subf %113, %116 : vector<8x8xf32>
    %118 = math.exp %117 : vector<8x8xf32>
    %cst_39 = arith.constant dense<0.000000e+00> : vector<8xf32>
    %119 = vector.multi_reduction <add>, %118, %cst_39 [1] : vector<8x8xf32> to vector<8xf32>
    %120 = vector.shape_cast %119 : vector<8xf32> to vector<8x1xf32>
    %121 = tpu.reciprocal %120 {approx = true} : vector<8x1xf32> -> vector<8x1xf32>
    %122 = vector.broadcast %121 : vector<8x1xf32> to vector<8x8xf32>
    %123 = arith.mulf %118, %122 : vector<8x8xf32>
    %124 = arith.truncf %123 : vector<8x8xf32> to vector<8x8xbf16>
    %cst_40 = arith.constant dense<0.000000e+00> : vector<8x16xf32>
    %125 = tpu.matmul %124, %111, %cst_40 {dimension_numbers = #tpu.dot_dimension_numbers<[1], [0], [0], [1], [0, 0, 1, 1], [], []>} : vector<8x8xbf16>, vector<8x16xbf16>, vector<8x16xf32> -> vector<8x16xf32>
    %126 = vector.extract_strided_slice %39 {offsets = [8, 16], sizes = [8, 16], strides = [1, 1]} : vector<16x192xbf16> to vector<8x16xbf16>
    %127 = vector.extract_strided_slice %39 {offsets = [8, 80], sizes = [8, 16], strides = [1, 1]} : vector<16x192xbf16> to vector<8x16xbf16>
    %128 = vector.extract_strided_slice %39 {offsets = [8, 144], sizes = [8, 16], strides = [1, 1]} : vector<16x192xbf16> to vector<8x16xbf16>
    %cst_41 = arith.constant dense<0.000000e+00> : vector<8x8xf32>
    %129 = tpu.matmul %126, %127, %cst_41 {dimension_numbers = #tpu.dot_dimension_numbers<[1], [1], [0], [0], [0, 0, 1, 0], [], []>} : vector<8x16xbf16>, vector<8x16xbf16>, vector<8x8xf32> -> vector<8x8xf32>
    %130 = arith.addf %129, %30 : vector<8x8xf32>
    %cst_42 = arith.constant dense<0xFF800000> : vector<8xf32>
    %131 = vector.multi_reduction <maximumf>, %130, %cst_42 [1] : vector<8x8xf32> to vector<8xf32>
    %132 = vector.shape_cast %131 : vector<8xf32> to vector<8x1xf32>
    %133 = vector.broadcast %132 : vector<8x1xf32> to vector<8x8xf32>
    %134 = arith.subf %130, %133 : vector<8x8xf32>
    %135 = math.exp %134 : vector<8x8xf32>
    %cst_43 = arith.constant dense<0.000000e+00> : vector<8xf32>
    %136 = vector.multi_reduction <add>, %135, %cst_43 [1] : vector<8x8xf32> to vector<8xf32>
    %137 = vector.shape_cast %136 : vector<8xf32> to vector<8x1xf32>
    %138 = tpu.reciprocal %137 {approx = true} : vector<8x1xf32> -> vector<8x1xf32>
    %139 = vector.broadcast %138 : vector<8x1xf32> to vector<8x8xf32>
    %140 = arith.mulf %135, %139 : vector<8x8xf32>
    %141 = arith.truncf %140 : vector<8x8xf32> to vector<8x8xbf16>
    %cst_44 = arith.constant dense<0.000000e+00> : vector<8x16xf32>
    %142 = tpu.matmul %141, %128, %cst_44 {dimension_numbers = #tpu.dot_dimension_numbers<[1], [0], [0], [1], [0, 0, 1, 1], [], []>} : vector<8x8xbf16>, vector<8x16xbf16>, vector<8x16xf32> -> vector<8x16xf32>
    %143 = vector.extract_strided_slice %39 {offsets = [8, 32], sizes = [8, 16], strides = [1, 1]} : vector<16x192xbf16> to vector<8x16xbf16>
    %144 = vector.extract_strided_slice %39 {offsets = [8, 96], sizes = [8, 16], strides = [1, 1]} : vector<16x192xbf16> to vector<8x16xbf16>
    %145 = vector.extract_strided_slice %39 {offsets = [8, 160], sizes = [8, 16], strides = [1, 1]} : vector<16x192xbf16> to vector<8x16xbf16>
    %cst_45 = arith.constant dense<0.000000e+00> : vector<8x8xf32>
    %146 = tpu.matmul %143, %144, %cst_45 {dimension_numbers = #tpu.dot_dimension_numbers<[1], [1], [0], [0], [0, 0, 1, 0], [], []>} : vector<8x16xbf16>, vector<8x16xbf16>, vector<8x8xf32> -> vector<8x8xf32>
    %147 = arith.addf %146, %30 : vector<8x8xf32>
    %cst_46 = arith.constant dense<0xFF800000> : vector<8xf32>
    %148 = vector.multi_reduction <maximumf>, %147, %cst_46 [1] : vector<8x8xf32> to vector<8xf32>
    %149 = vector.shape_cast %148 : vector<8xf32> to vector<8x1xf32>
    %150 = vector.broadcast %149 : vector<8x1xf32> to vector<8x8xf32>
    %151 = arith.subf %147, %150 : vector<8x8xf32>
    %152 = math.exp %151 : vector<8x8xf32>
    %cst_47 = arith.constant dense<0.000000e+00> : vector<8xf32>
    %153 = vector.multi_reduction <add>, %152, %cst_47 [1] : vector<8x8xf32> to vector<8xf32>
    %154 = vector.shape_cast %153 : vector<8xf32> to vector<8x1xf32>
    %155 = tpu.reciprocal %154 {approx = true} : vector<8x1xf32> -> vector<8x1xf32>
    %156 = vector.broadcast %155 : vector<8x1xf32> to vector<8x8xf32>
    %157 = arith.mulf %152, %156 : vector<8x8xf32>
    %158 = arith.truncf %157 : vector<8x8xf32> to vector<8x8xbf16>
    %cst_48 = arith.constant dense<0.000000e+00> : vector<8x16xf32>
    %159 = tpu.matmul %158, %145, %cst_48 {dimension_numbers = #tpu.dot_dimension_numbers<[1], [0], [0], [1], [0, 0, 1, 1], [], []>} : vector<8x8xbf16>, vector<8x16xbf16>, vector<8x16xf32> -> vector<8x16xf32>
    %160 = vector.extract_strided_slice %39 {offsets = [8, 48], sizes = [8, 16], strides = [1, 1]} : vector<16x192xbf16> to vector<8x16xbf16>
    %161 = vector.extract_strided_slice %39 {offsets = [8, 112], sizes = [8, 16], strides = [1, 1]} : vector<16x192xbf16> to vector<8x16xbf16>
    %162 = vector.extract_strided_slice %39 {offsets = [8, 176], sizes = [8, 16], strides = [1, 1]} : vector<16x192xbf16> to vector<8x16xbf16>
    %cst_49 = arith.constant dense<0.000000e+00> : vector<8x8xf32>
    %163 = tpu.matmul %160, %161, %cst_49 {dimension_numbers = #tpu.dot_dimension_numbers<[1], [1], [0], [0], [0, 0, 1, 0], [], []>} : vector<8x16xbf16>, vector<8x16xbf16>, vector<8x8xf32> -> vector<8x8xf32>
    %164 = arith.addf %163, %30 : vector<8x8xf32>
    %cst_50 = arith.constant dense<0xFF800000> : vector<8xf32>
    %165 = vector.multi_reduction <maximumf>, %164, %cst_50 [1] : vector<8x8xf32> to vector<8xf32>
    %166 = vector.shape_cast %165 : vector<8xf32> to vector<8x1xf32>
    %167 = vector.broadcast %166 : vector<8x1xf32> to vector<8x8xf32>
    %168 = arith.subf %164, %167 : vector<8x8xf32>
    %169 = math.exp %168 : vector<8x8xf32>
    %cst_51 = arith.constant dense<0.000000e+00> : vector<8xf32>
    %170 = vector.multi_reduction <add>, %169, %cst_51 [1] : vector<8x8xf32> to vector<8xf32>
    %171 = vector.shape_cast %170 : vector<8xf32> to vector<8x1xf32>
    %172 = tpu.reciprocal %171 {approx = true} : vector<8x1xf32> -> vector<8x1xf32>
    %173 = vector.broadcast %172 : vector<8x1xf32> to vector<8x8xf32>
    %174 = arith.mulf %169, %173 : vector<8x8xf32>
    %175 = arith.truncf %174 : vector<8x8xf32> to vector<8x8xbf16>
    %cst_52 = arith.constant dense<0.000000e+00> : vector<8x16xf32>
    %176 = tpu.matmul %175, %162, %cst_52 {dimension_numbers = #tpu.dot_dimension_numbers<[1], [0], [0], [1], [0, 0, 1, 1], [], []>} : vector<8x8xbf16>, vector<8x16xbf16>, vector<8x16xf32> -> vector<8x16xf32>
    %177 = tpu.concatenate %125, %142, %159, %176 in 1 : vector<8x16xf32>, vector<8x16xf32>, vector<8x16xf32>, vector<8x16xf32> -> vector<8x64xf32>
    %178 = tpu.concatenate %108, %177 in 0 : vector<8x64xf32>, vector<8x64xf32> -> vector<16x64xf32>
    %179 = arith.truncf %178 : vector<16x64xf32> to vector<16x64xbf16>
    %c0_53 = arith.constant 0 : index
    %c0_54 = arith.constant 0 : index
    %c0_55 = arith.constant 0 : index
    %180 = vector.load %arg7[%c0_53, %c0_54, %c0_55] : memref<2x64x64xbf16, #tpu.memory_space<vmem>>, vector<1x64x64xbf16>
    %181 = vector.shape_cast %180 : vector<1x64x64xbf16> to vector<64x64xbf16>
    %cst_56 = arith.constant dense<0.000000e+00> : vector<16x64xf32>
    %182 = tpu.matmul %179, %181, %cst_56 {dimension_numbers = #tpu.dot_dimension_numbers<[1], [0], [0], [1], [0, 0, 1, 1], [], []>} : vector<16x64xbf16>, vector<64x64xbf16>, vector<16x64xf32> -> vector<16x64xf32>
    %c0_57 = arith.constant 0 : index
    %c0_58 = arith.constant 0 : index
    %c0_59 = arith.constant 0 : index
    %183 = vector.load %arg8[%c0_57, %c0_58, %c0_59] : memref<2x1x64xf32, #tpu.memory_space<vmem>>, vector<1x1x64xf32>
    %184 = vector.shape_cast %183 : vector<1x1x64xf32> to vector<1x64xf32>
    %185 = vector.broadcast %184 : vector<1x64xf32> to vector<16x64xf32>
    %186 = arith.addf %182, %185 : vector<16x64xf32>
    %187 = arith.addf %186, %22 : vector<16x64xf32>
    %c0_60 = arith.constant 0 : index
    %c0_61 = arith.constant 0 : index
    %c0_62 = arith.constant 0 : index
    %188 = vector.load %arg9[%c0_60, %c0_61, %c0_62] : memref<2x1x64xf32, #tpu.memory_space<vmem>>, vector<1x1x64xf32>
    %189 = vector.shape_cast %188 : vector<1x1x64xf32> to vector<1x64xf32>
    %c0_63 = arith.constant 0 : index
    %c0_64 = arith.constant 0 : index
    %c0_65 = arith.constant 0 : index
    %190 = vector.load %arg10[%c0_63, %c0_64, %c0_65] : memref<2x1x64xf32, #tpu.memory_space<vmem>>, vector<1x1x64xf32>
    %191 = vector.shape_cast %190 : vector<1x1x64xf32> to vector<1x64xf32>
    %cst_66 = arith.constant dense<0.000000e+00> : vector<16xf32>
    %192 = vector.multi_reduction <add>, %187, %cst_66 [1] : vector<16x64xf32> to vector<16xf32>
    %193 = vector.shape_cast %192 : vector<16xf32> to vector<16x1xf32>
    %cst_67 = arith.constant 6.400000e+01 : f32
    %194 = vector.broadcast %cst_67 : f32 to vector<16x1xf32>
    %195 = arith.divf %193, %194 : vector<16x1xf32>
    %196 = vector.broadcast %195 : vector<16x1xf32> to vector<16x64xf32>
    %197 = arith.subf %187, %196 : vector<16x64xf32>
    %198 = arith.mulf %197, %197 : vector<16x64xf32>
    %cst_68 = arith.constant dense<0.000000e+00> : vector<16xf32>
    %199 = vector.multi_reduction <add>, %198, %cst_68 [1] : vector<16x64xf32> to vector<16xf32>
    %200 = vector.shape_cast %199 : vector<16xf32> to vector<16x1xf32>
    %cst_69 = arith.constant 6.400000e+01 : f32
    %201 = vector.broadcast %cst_69 : f32 to vector<16x1xf32>
    %202 = arith.divf %200, %201 : vector<16x1xf32>
    %cst_70 = arith.constant 9.99999974E-6 : f32
    %203 = vector.broadcast %cst_70 : f32 to vector<16x1xf32>
    %204 = arith.addf %202, %203 : vector<16x1xf32>
    %205 = math.rsqrt %204 : vector<16x1xf32>
    %206 = vector.broadcast %205 : vector<16x1xf32> to vector<16x64xf32>
    %207 = arith.mulf %197, %206 : vector<16x64xf32>
    %208 = vector.broadcast %189 : vector<1x64xf32> to vector<16x64xf32>
    %209 = arith.mulf %207, %208 : vector<16x64xf32>
    %210 = vector.broadcast %191 : vector<1x64xf32> to vector<16x64xf32>
    %211 = arith.addf %209, %210 : vector<16x64xf32>
    %212 = arith.truncf %211 : vector<16x64xf32> to vector<16x64xbf16>
    %c0_71 = arith.constant 0 : index
    %c0_72 = arith.constant 0 : index
    %c0_73 = arith.constant 0 : index
    %213 = vector.load %arg11[%c0_71, %c0_72, %c0_73] : memref<2x64x128xbf16, #tpu.memory_space<vmem>>, vector<1x64x128xbf16>
    %214 = vector.shape_cast %213 : vector<1x64x128xbf16> to vector<64x128xbf16>
    %cst_74 = arith.constant dense<0.000000e+00> : vector<16x128xf32>
    %215 = tpu.matmul %212, %214, %cst_74 {dimension_numbers = #tpu.dot_dimension_numbers<[1], [0], [0], [1], [0, 0, 1, 1], [], []>} : vector<16x64xbf16>, vector<64x128xbf16>, vector<16x128xf32> -> vector<16x128xf32>
    %c0_75 = arith.constant 0 : index
    %c0_76 = arith.constant 0 : index
    %c0_77 = arith.constant 0 : index
    %216 = vector.load %arg12[%c0_75, %c0_76, %c0_77] : memref<2x1x128xf32, #tpu.memory_space<vmem>>, vector<1x1x128xf32>
    %217 = vector.shape_cast %216 : vector<1x1x128xf32> to vector<1x128xf32>
    %218 = vector.broadcast %217 : vector<1x128xf32> to vector<16x128xf32>
    %219 = arith.addf %215, %218 : vector<16x128xf32>
    %cst_78 = arith.constant 5.000000e-01 : f32
    %220 = vector.broadcast %cst_78 : f32 to vector<16x128xf32>
    %221 = arith.mulf %220, %219 : vector<16x128xf32>
    %cst_79 = arith.constant 4.471500e-02 : f32
    %222 = vector.broadcast %cst_79 : f32 to vector<16x128xf32>
    %223 = arith.mulf %222, %219 : vector<16x128xf32>
    %224 = arith.mulf %223, %219 : vector<16x128xf32>
    %225 = arith.mulf %224, %219 : vector<16x128xf32>
    %226 = arith.addf %219, %225 : vector<16x128xf32>
    %cst_80 = arith.constant 0.797884583 : f32
    %227 = vector.broadcast %cst_80 : f32 to vector<16x128xf32>
    %228 = arith.mulf %227, %226 : vector<16x128xf32>
    %229 = math.tanh %228 : vector<16x128xf32>
    %cst_81 = arith.constant 1.000000e+00 : f32
    %230 = vector.broadcast %cst_81 : f32 to vector<16x128xf32>
    %231 = arith.addf %230, %229 : vector<16x128xf32>
    %232 = arith.mulf %221, %231 : vector<16x128xf32>
    %233 = arith.truncf %232 : vector<16x128xf32> to vector<16x128xbf16>
    %c0_82 = arith.constant 0 : index
    %c0_83 = arith.constant 0 : index
    %c0_84 = arith.constant 0 : index
    %234 = vector.load %arg13[%c0_82, %c0_83, %c0_84] : memref<2x128x64xbf16, #tpu.memory_space<vmem>>, vector<1x128x64xbf16>
    %235 = vector.shape_cast %234 : vector<1x128x64xbf16> to vector<128x64xbf16>
    %cst_85 = arith.constant dense<0.000000e+00> : vector<16x64xf32>
    %236 = tpu.matmul %233, %235, %cst_85 {dimension_numbers = #tpu.dot_dimension_numbers<[1], [0], [0], [1], [0, 0, 1, 1], [], []>} : vector<16x128xbf16>, vector<128x64xbf16>, vector<16x64xf32> -> vector<16x64xf32>
    %c0_86 = arith.constant 0 : index
    %c0_87 = arith.constant 0 : index
    %c0_88 = arith.constant 0 : index
    %237 = vector.load %arg14[%c0_86, %c0_87, %c0_88] : memref<2x1x64xf32, #tpu.memory_space<vmem>>, vector<1x1x64xf32>
    %238 = vector.shape_cast %237 : vector<1x1x64xf32> to vector<1x64xf32>
    %239 = vector.broadcast %238 : vector<1x64xf32> to vector<16x64xf32>
    %240 = arith.addf %236, %239 : vector<16x64xf32>
    %241 = arith.addf %240, %211 : vector<16x64xf32>
    %c0_89 = arith.constant 0 : index
    %c0_90 = arith.constant 0 : index
    %c0_91 = arith.constant 0 : index
    %242 = vector.load %arg15[%c0_89, %c0_90, %c0_91] : memref<2x1x64xf32, #tpu.memory_space<vmem>>, vector<1x1x64xf32>
    %243 = vector.shape_cast %242 : vector<1x1x64xf32> to vector<1x64xf32>
    %c0_92 = arith.constant 0 : index
    %c0_93 = arith.constant 0 : index
    %c0_94 = arith.constant 0 : index
    %244 = vector.load %arg16[%c0_92, %c0_93, %c0_94] : memref<2x1x64xf32, #tpu.memory_space<vmem>>, vector<1x1x64xf32>
    %245 = vector.shape_cast %244 : vector<1x1x64xf32> to vector<1x64xf32>
    %cst_95 = arith.constant dense<0.000000e+00> : vector<16xf32>
    %246 = vector.multi_reduction <add>, %241, %cst_95 [1] : vector<16x64xf32> to vector<16xf32>
    %247 = vector.shape_cast %246 : vector<16xf32> to vector<16x1xf32>
    %cst_96 = arith.constant 6.400000e+01 : f32
    %248 = vector.broadcast %cst_96 : f32 to vector<16x1xf32>
    %249 = arith.divf %247, %248 : vector<16x1xf32>
    %250 = vector.broadcast %249 : vector<16x1xf32> to vector<16x64xf32>
    %251 = arith.subf %241, %250 : vector<16x64xf32>
    %252 = arith.mulf %251, %251 : vector<16x64xf32>
    %cst_97 = arith.constant dense<0.000000e+00> : vector<16xf32>
    %253 = vector.multi_reduction <add>, %252, %cst_97 [1] : vector<16x64xf32> to vector<16xf32>
    %254 = vector.shape_cast %253 : vector<16xf32> to vector<16x1xf32>
    %cst_98 = arith.constant 6.400000e+01 : f32
    %255 = vector.broadcast %cst_98 : f32 to vector<16x1xf32>
    %256 = arith.divf %254, %255 : vector<16x1xf32>
    %cst_99 = arith.constant 9.99999974E-6 : f32
    %257 = vector.broadcast %cst_99 : f32 to vector<16x1xf32>
    %258 = arith.addf %256, %257 : vector<16x1xf32>
    %259 = math.rsqrt %258 : vector<16x1xf32>
    %260 = vector.broadcast %259 : vector<16x1xf32> to vector<16x64xf32>
    %261 = arith.mulf %251, %260 : vector<16x64xf32>
    %262 = vector.broadcast %243 : vector<1x64xf32> to vector<16x64xf32>
    %263 = arith.mulf %261, %262 : vector<16x64xf32>
    %264 = vector.broadcast %245 : vector<1x64xf32> to vector<16x64xf32>
    %265 = arith.addf %263, %264 : vector<16x64xf32>
    %266 = arith.truncf %265 : vector<16x64xf32> to vector<16x64xbf16>
    %c1_100 = arith.constant 1 : index
    %c0_101 = arith.constant 0 : index
    %c0_102 = arith.constant 0 : index
    %267 = vector.load %arg5[%c1_100, %c0_101, %c0_102] : memref<2x64x192xbf16, #tpu.memory_space<vmem>>, vector<1x64x192xbf16>
    %268 = vector.shape_cast %267 : vector<1x64x192xbf16> to vector<64x192xbf16>
    %cst_103 = arith.constant dense<0.000000e+00> : vector<16x192xf32>
    %269 = tpu.matmul %266, %268, %cst_103 {dimension_numbers = #tpu.dot_dimension_numbers<[1], [0], [0], [1], [0, 0, 1, 1], [], []>} : vector<16x64xbf16>, vector<64x192xbf16>, vector<16x192xf32> -> vector<16x192xf32>
    %c1_104 = arith.constant 1 : index
    %c0_105 = arith.constant 0 : index
    %c0_106 = arith.constant 0 : index
    %270 = vector.load %arg6[%c1_104, %c0_105, %c0_106] : memref<2x1x192xf32, #tpu.memory_space<vmem>>, vector<1x1x192xf32>
    %271 = vector.shape_cast %270 : vector<1x1x192xf32> to vector<1x192xf32>
    %272 = vector.broadcast %271 : vector<1x192xf32> to vector<16x192xf32>
    %273 = arith.addf %269, %272 : vector<16x192xf32>
    %274 = arith.truncf %273 : vector<16x192xf32> to vector<16x192xbf16>
    %275 = vector.extract_strided_slice %274 {offsets = [0, 0], sizes = [8, 16], strides = [1, 1]} : vector<16x192xbf16> to vector<8x16xbf16>
    %276 = vector.extract_strided_slice %274 {offsets = [0, 64], sizes = [8, 16], strides = [1, 1]} : vector<16x192xbf16> to vector<8x16xbf16>
    %277 = vector.extract_strided_slice %274 {offsets = [0, 128], sizes = [8, 16], strides = [1, 1]} : vector<16x192xbf16> to vector<8x16xbf16>
    %cst_107 = arith.constant dense<0.000000e+00> : vector<8x8xf32>
    %278 = tpu.matmul %275, %276, %cst_107 {dimension_numbers = #tpu.dot_dimension_numbers<[1], [1], [0], [0], [0, 0, 1, 0], [], []>} : vector<8x16xbf16>, vector<8x16xbf16>, vector<8x8xf32> -> vector<8x8xf32>
    %279 = arith.addf %278, %26 : vector<8x8xf32>
    %cst_108 = arith.constant dense<0xFF800000> : vector<8xf32>
    %280 = vector.multi_reduction <maximumf>, %279, %cst_108 [1] : vector<8x8xf32> to vector<8xf32>
    %281 = vector.shape_cast %280 : vector<8xf32> to vector<8x1xf32>
    %282 = vector.broadcast %281 : vector<8x1xf32> to vector<8x8xf32>
    %283 = arith.subf %279, %282 : vector<8x8xf32>
    %284 = math.exp %283 : vector<8x8xf32>
    %cst_109 = arith.constant dense<0.000000e+00> : vector<8xf32>
    %285 = vector.multi_reduction <add>, %284, %cst_109 [1] : vector<8x8xf32> to vector<8xf32>
    %286 = vector.shape_cast %285 : vector<8xf32> to vector<8x1xf32>
    %287 = tpu.reciprocal %286 {approx = true} : vector<8x1xf32> -> vector<8x1xf32>
    %288 = vector.broadcast %287 : vector<8x1xf32> to vector<8x8xf32>
    %289 = arith.mulf %284, %288 : vector<8x8xf32>
    %290 = arith.truncf %289 : vector<8x8xf32> to vector<8x8xbf16>
    %cst_110 = arith.constant dense<0.000000e+00> : vector<8x16xf32>
    %291 = tpu.matmul %290, %277, %cst_110 {dimension_numbers = #tpu.dot_dimension_numbers<[1], [0], [0], [1], [0, 0, 1, 1], [], []>} : vector<8x8xbf16>, vector<8x16xbf16>, vector<8x16xf32> -> vector<8x16xf32>
    %292 = vector.extract_strided_slice %274 {offsets = [0, 16], sizes = [8, 16], strides = [1, 1]} : vector<16x192xbf16> to vector<8x16xbf16>
    %293 = vector.extract_strided_slice %274 {offsets = [0, 80], sizes = [8, 16], strides = [1, 1]} : vector<16x192xbf16> to vector<8x16xbf16>
    %294 = vector.extract_strided_slice %274 {offsets = [0, 144], sizes = [8, 16], strides = [1, 1]} : vector<16x192xbf16> to vector<8x16xbf16>
    %cst_111 = arith.constant dense<0.000000e+00> : vector<8x8xf32>
    %295 = tpu.matmul %292, %293, %cst_111 {dimension_numbers = #tpu.dot_dimension_numbers<[1], [1], [0], [0], [0, 0, 1, 0], [], []>} : vector<8x16xbf16>, vector<8x16xbf16>, vector<8x8xf32> -> vector<8x8xf32>
    %296 = arith.addf %295, %26 : vector<8x8xf32>
    %cst_112 = arith.constant dense<0xFF800000> : vector<8xf32>
    %297 = vector.multi_reduction <maximumf>, %296, %cst_112 [1] : vector<8x8xf32> to vector<8xf32>
    %298 = vector.shape_cast %297 : vector<8xf32> to vector<8x1xf32>
    %299 = vector.broadcast %298 : vector<8x1xf32> to vector<8x8xf32>
    %300 = arith.subf %296, %299 : vector<8x8xf32>
    %301 = math.exp %300 : vector<8x8xf32>
    %cst_113 = arith.constant dense<0.000000e+00> : vector<8xf32>
    %302 = vector.multi_reduction <add>, %301, %cst_113 [1] : vector<8x8xf32> to vector<8xf32>
    %303 = vector.shape_cast %302 : vector<8xf32> to vector<8x1xf32>
    %304 = tpu.reciprocal %303 {approx = true} : vector<8x1xf32> -> vector<8x1xf32>
    %305 = vector.broadcast %304 : vector<8x1xf32> to vector<8x8xf32>
    %306 = arith.mulf %301, %305 : vector<8x8xf32>
    %307 = arith.truncf %306 : vector<8x8xf32> to vector<8x8xbf16>
    %cst_114 = arith.constant dense<0.000000e+00> : vector<8x16xf32>
    %308 = tpu.matmul %307, %294, %cst_114 {dimension_numbers = #tpu.dot_dimension_numbers<[1], [0], [0], [1], [0, 0, 1, 1], [], []>} : vector<8x8xbf16>, vector<8x16xbf16>, vector<8x16xf32> -> vector<8x16xf32>
    %309 = vector.extract_strided_slice %274 {offsets = [0, 32], sizes = [8, 16], strides = [1, 1]} : vector<16x192xbf16> to vector<8x16xbf16>
    %310 = vector.extract_strided_slice %274 {offsets = [0, 96], sizes = [8, 16], strides = [1, 1]} : vector<16x192xbf16> to vector<8x16xbf16>
    %311 = vector.extract_strided_slice %274 {offsets = [0, 160], sizes = [8, 16], strides = [1, 1]} : vector<16x192xbf16> to vector<8x16xbf16>
    %cst_115 = arith.constant dense<0.000000e+00> : vector<8x8xf32>
    %312 = tpu.matmul %309, %310, %cst_115 {dimension_numbers = #tpu.dot_dimension_numbers<[1], [1], [0], [0], [0, 0, 1, 0], [], []>} : vector<8x16xbf16>, vector<8x16xbf16>, vector<8x8xf32> -> vector<8x8xf32>
    %313 = arith.addf %312, %26 : vector<8x8xf32>
    %cst_116 = arith.constant dense<0xFF800000> : vector<8xf32>
    %314 = vector.multi_reduction <maximumf>, %313, %cst_116 [1] : vector<8x8xf32> to vector<8xf32>
    %315 = vector.shape_cast %314 : vector<8xf32> to vector<8x1xf32>
    %316 = vector.broadcast %315 : vector<8x1xf32> to vector<8x8xf32>
    %317 = arith.subf %313, %316 : vector<8x8xf32>
    %318 = math.exp %317 : vector<8x8xf32>
    %cst_117 = arith.constant dense<0.000000e+00> : vector<8xf32>
    %319 = vector.multi_reduction <add>, %318, %cst_117 [1] : vector<8x8xf32> to vector<8xf32>
    %320 = vector.shape_cast %319 : vector<8xf32> to vector<8x1xf32>
    %321 = tpu.reciprocal %320 {approx = true} : vector<8x1xf32> -> vector<8x1xf32>
    %322 = vector.broadcast %321 : vector<8x1xf32> to vector<8x8xf32>
    %323 = arith.mulf %318, %322 : vector<8x8xf32>
    %324 = arith.truncf %323 : vector<8x8xf32> to vector<8x8xbf16>
    %cst_118 = arith.constant dense<0.000000e+00> : vector<8x16xf32>
    %325 = tpu.matmul %324, %311, %cst_118 {dimension_numbers = #tpu.dot_dimension_numbers<[1], [0], [0], [1], [0, 0, 1, 1], [], []>} : vector<8x8xbf16>, vector<8x16xbf16>, vector<8x16xf32> -> vector<8x16xf32>
    %326 = vector.extract_strided_slice %274 {offsets = [0, 48], sizes = [8, 16], strides = [1, 1]} : vector<16x192xbf16> to vector<8x16xbf16>
    %327 = vector.extract_strided_slice %274 {offsets = [0, 112], sizes = [8, 16], strides = [1, 1]} : vector<16x192xbf16> to vector<8x16xbf16>
    %328 = vector.extract_strided_slice %274 {offsets = [0, 176], sizes = [8, 16], strides = [1, 1]} : vector<16x192xbf16> to vector<8x16xbf16>
    %cst_119 = arith.constant dense<0.000000e+00> : vector<8x8xf32>
    %329 = tpu.matmul %326, %327, %cst_119 {dimension_numbers = #tpu.dot_dimension_numbers<[1], [1], [0], [0], [0, 0, 1, 0], [], []>} : vector<8x16xbf16>, vector<8x16xbf16>, vector<8x8xf32> -> vector<8x8xf32>
    %330 = arith.addf %329, %26 : vector<8x8xf32>
    %cst_120 = arith.constant dense<0xFF800000> : vector<8xf32>
    %331 = vector.multi_reduction <maximumf>, %330, %cst_120 [1] : vector<8x8xf32> to vector<8xf32>
    %332 = vector.shape_cast %331 : vector<8xf32> to vector<8x1xf32>
    %333 = vector.broadcast %332 : vector<8x1xf32> to vector<8x8xf32>
    %334 = arith.subf %330, %333 : vector<8x8xf32>
    %335 = math.exp %334 : vector<8x8xf32>
    %cst_121 = arith.constant dense<0.000000e+00> : vector<8xf32>
    %336 = vector.multi_reduction <add>, %335, %cst_121 [1] : vector<8x8xf32> to vector<8xf32>
    %337 = vector.shape_cast %336 : vector<8xf32> to vector<8x1xf32>
    %338 = tpu.reciprocal %337 {approx = true} : vector<8x1xf32> -> vector<8x1xf32>
    %339 = vector.broadcast %338 : vector<8x1xf32> to vector<8x8xf32>
    %340 = arith.mulf %335, %339 : vector<8x8xf32>
    %341 = arith.truncf %340 : vector<8x8xf32> to vector<8x8xbf16>
    %cst_122 = arith.constant dense<0.000000e+00> : vector<8x16xf32>
    %342 = tpu.matmul %341, %328, %cst_122 {dimension_numbers = #tpu.dot_dimension_numbers<[1], [0], [0], [1], [0, 0, 1, 1], [], []>} : vector<8x8xbf16>, vector<8x16xbf16>, vector<8x16xf32> -> vector<8x16xf32>
    %343 = tpu.concatenate %291, %308, %325, %342 in 1 : vector<8x16xf32>, vector<8x16xf32>, vector<8x16xf32>, vector<8x16xf32> -> vector<8x64xf32>
    %344 = vector.extract_strided_slice %274 {offsets = [8, 0], sizes = [8, 16], strides = [1, 1]} : vector<16x192xbf16> to vector<8x16xbf16>
    %345 = vector.extract_strided_slice %274 {offsets = [8, 64], sizes = [8, 16], strides = [1, 1]} : vector<16x192xbf16> to vector<8x16xbf16>
    %346 = vector.extract_strided_slice %274 {offsets = [8, 128], sizes = [8, 16], strides = [1, 1]} : vector<16x192xbf16> to vector<8x16xbf16>
    %cst_123 = arith.constant dense<0.000000e+00> : vector<8x8xf32>
    %347 = tpu.matmul %344, %345, %cst_123 {dimension_numbers = #tpu.dot_dimension_numbers<[1], [1], [0], [0], [0, 0, 1, 0], [], []>} : vector<8x16xbf16>, vector<8x16xbf16>, vector<8x8xf32> -> vector<8x8xf32>
    %348 = arith.addf %347, %30 : vector<8x8xf32>
    %cst_124 = arith.constant dense<0xFF800000> : vector<8xf32>
    %349 = vector.multi_reduction <maximumf>, %348, %cst_124 [1] : vector<8x8xf32> to vector<8xf32>
    %350 = vector.shape_cast %349 : vector<8xf32> to vector<8x1xf32>
    %351 = vector.broadcast %350 : vector<8x1xf32> to vector<8x8xf32>
    %352 = arith.subf %348, %351 : vector<8x8xf32>
    %353 = math.exp %352 : vector<8x8xf32>
    %cst_125 = arith.constant dense<0.000000e+00> : vector<8xf32>
    %354 = vector.multi_reduction <add>, %353, %cst_125 [1] : vector<8x8xf32> to vector<8xf32>
    %355 = vector.shape_cast %354 : vector<8xf32> to vector<8x1xf32>
    %356 = tpu.reciprocal %355 {approx = true} : vector<8x1xf32> -> vector<8x1xf32>
    %357 = vector.broadcast %356 : vector<8x1xf32> to vector<8x8xf32>
    %358 = arith.mulf %353, %357 : vector<8x8xf32>
    %359 = arith.truncf %358 : vector<8x8xf32> to vector<8x8xbf16>
    %cst_126 = arith.constant dense<0.000000e+00> : vector<8x16xf32>
    %360 = tpu.matmul %359, %346, %cst_126 {dimension_numbers = #tpu.dot_dimension_numbers<[1], [0], [0], [1], [0, 0, 1, 1], [], []>} : vector<8x8xbf16>, vector<8x16xbf16>, vector<8x16xf32> -> vector<8x16xf32>
    %361 = vector.extract_strided_slice %274 {offsets = [8, 16], sizes = [8, 16], strides = [1, 1]} : vector<16x192xbf16> to vector<8x16xbf16>
    %362 = vector.extract_strided_slice %274 {offsets = [8, 80], sizes = [8, 16], strides = [1, 1]} : vector<16x192xbf16> to vector<8x16xbf16>
    %363 = vector.extract_strided_slice %274 {offsets = [8, 144], sizes = [8, 16], strides = [1, 1]} : vector<16x192xbf16> to vector<8x16xbf16>
    %cst_127 = arith.constant dense<0.000000e+00> : vector<8x8xf32>
    %364 = tpu.matmul %361, %362, %cst_127 {dimension_numbers = #tpu.dot_dimension_numbers<[1], [1], [0], [0], [0, 0, 1, 0], [], []>} : vector<8x16xbf16>, vector<8x16xbf16>, vector<8x8xf32> -> vector<8x8xf32>
    %365 = arith.addf %364, %30 : vector<8x8xf32>
    %cst_128 = arith.constant dense<0xFF800000> : vector<8xf32>
    %366 = vector.multi_reduction <maximumf>, %365, %cst_128 [1] : vector<8x8xf32> to vector<8xf32>
    %367 = vector.shape_cast %366 : vector<8xf32> to vector<8x1xf32>
    %368 = vector.broadcast %367 : vector<8x1xf32> to vector<8x8xf32>
    %369 = arith.subf %365, %368 : vector<8x8xf32>
    %370 = math.exp %369 : vector<8x8xf32>
    %cst_129 = arith.constant dense<0.000000e+00> : vector<8xf32>
    %371 = vector.multi_reduction <add>, %370, %cst_129 [1] : vector<8x8xf32> to vector<8xf32>
    %372 = vector.shape_cast %371 : vector<8xf32> to vector<8x1xf32>
    %373 = tpu.reciprocal %372 {approx = true} : vector<8x1xf32> -> vector<8x1xf32>
    %374 = vector.broadcast %373 : vector<8x1xf32> to vector<8x8xf32>
    %375 = arith.mulf %370, %374 : vector<8x8xf32>
    %376 = arith.truncf %375 : vector<8x8xf32> to vector<8x8xbf16>
    %cst_130 = arith.constant dense<0.000000e+00> : vector<8x16xf32>
    %377 = tpu.matmul %376, %363, %cst_130 {dimension_numbers = #tpu.dot_dimension_numbers<[1], [0], [0], [1], [0, 0, 1, 1], [], []>} : vector<8x8xbf16>, vector<8x16xbf16>, vector<8x16xf32> -> vector<8x16xf32>
    %378 = vector.extract_strided_slice %274 {offsets = [8, 32], sizes = [8, 16], strides = [1, 1]} : vector<16x192xbf16> to vector<8x16xbf16>
    %379 = vector.extract_strided_slice %274 {offsets = [8, 96], sizes = [8, 16], strides = [1, 1]} : vector<16x192xbf16> to vector<8x16xbf16>
    %380 = vector.extract_strided_slice %274 {offsets = [8, 160], sizes = [8, 16], strides = [1, 1]} : vector<16x192xbf16> to vector<8x16xbf16>
    %cst_131 = arith.constant dense<0.000000e+00> : vector<8x8xf32>
    %381 = tpu.matmul %378, %379, %cst_131 {dimension_numbers = #tpu.dot_dimension_numbers<[1], [1], [0], [0], [0, 0, 1, 0], [], []>} : vector<8x16xbf16>, vector<8x16xbf16>, vector<8x8xf32> -> vector<8x8xf32>
    %382 = arith.addf %381, %30 : vector<8x8xf32>
    %cst_132 = arith.constant dense<0xFF800000> : vector<8xf32>
    %383 = vector.multi_reduction <maximumf>, %382, %cst_132 [1] : vector<8x8xf32> to vector<8xf32>
    %384 = vector.shape_cast %383 : vector<8xf32> to vector<8x1xf32>
    %385 = vector.broadcast %384 : vector<8x1xf32> to vector<8x8xf32>
    %386 = arith.subf %382, %385 : vector<8x8xf32>
    %387 = math.exp %386 : vector<8x8xf32>
    %cst_133 = arith.constant dense<0.000000e+00> : vector<8xf32>
    %388 = vector.multi_reduction <add>, %387, %cst_133 [1] : vector<8x8xf32> to vector<8xf32>
    %389 = vector.shape_cast %388 : vector<8xf32> to vector<8x1xf32>
    %390 = tpu.reciprocal %389 {approx = true} : vector<8x1xf32> -> vector<8x1xf32>
    %391 = vector.broadcast %390 : vector<8x1xf32> to vector<8x8xf32>
    %392 = arith.mulf %387, %391 : vector<8x8xf32>
    %393 = arith.truncf %392 : vector<8x8xf32> to vector<8x8xbf16>
    %cst_134 = arith.constant dense<0.000000e+00> : vector<8x16xf32>
    %394 = tpu.matmul %393, %380, %cst_134 {dimension_numbers = #tpu.dot_dimension_numbers<[1], [0], [0], [1], [0, 0, 1, 1], [], []>} : vector<8x8xbf16>, vector<8x16xbf16>, vector<8x16xf32> -> vector<8x16xf32>
    %395 = vector.extract_strided_slice %274 {offsets = [8, 48], sizes = [8, 16], strides = [1, 1]} : vector<16x192xbf16> to vector<8x16xbf16>
    %396 = vector.extract_strided_slice %274 {offsets = [8, 112], sizes = [8, 16], strides = [1, 1]} : vector<16x192xbf16> to vector<8x16xbf16>
    %397 = vector.extract_strided_slice %274 {offsets = [8, 176], sizes = [8, 16], strides = [1, 1]} : vector<16x192xbf16> to vector<8x16xbf16>
    %cst_135 = arith.constant dense<0.000000e+00> : vector<8x8xf32>
    %398 = tpu.matmul %395, %396, %cst_135 {dimension_numbers = #tpu.dot_dimension_numbers<[1], [1], [0], [0], [0, 0, 1, 0], [], []>} : vector<8x16xbf16>, vector<8x16xbf16>, vector<8x8xf32> -> vector<8x8xf32>
    %399 = arith.addf %398, %30 : vector<8x8xf32>
    %cst_136 = arith.constant dense<0xFF800000> : vector<8xf32>
    %400 = vector.multi_reduction <maximumf>, %399, %cst_136 [1] : vector<8x8xf32> to vector<8xf32>
    %401 = vector.shape_cast %400 : vector<8xf32> to vector<8x1xf32>
    %402 = vector.broadcast %401 : vector<8x1xf32> to vector<8x8xf32>
    %403 = arith.subf %399, %402 : vector<8x8xf32>
    %404 = math.exp %403 : vector<8x8xf32>
    %cst_137 = arith.constant dense<0.000000e+00> : vector<8xf32>
    %405 = vector.multi_reduction <add>, %404, %cst_137 [1] : vector<8x8xf32> to vector<8xf32>
    %406 = vector.shape_cast %405 : vector<8xf32> to vector<8x1xf32>
    %407 = tpu.reciprocal %406 {approx = true} : vector<8x1xf32> -> vector<8x1xf32>
    %408 = vector.broadcast %407 : vector<8x1xf32> to vector<8x8xf32>
    %409 = arith.mulf %404, %408 : vector<8x8xf32>
    %410 = arith.truncf %409 : vector<8x8xf32> to vector<8x8xbf16>
    %cst_138 = arith.constant dense<0.000000e+00> : vector<8x16xf32>
    %411 = tpu.matmul %410, %397, %cst_138 {dimension_numbers = #tpu.dot_dimension_numbers<[1], [0], [0], [1], [0, 0, 1, 1], [], []>} : vector<8x8xbf16>, vector<8x16xbf16>, vector<8x16xf32> -> vector<8x16xf32>
    %412 = tpu.concatenate %360, %377, %394, %411 in 1 : vector<8x16xf32>, vector<8x16xf32>, vector<8x16xf32>, vector<8x16xf32> -> vector<8x64xf32>
    %413 = tpu.concatenate %343, %412 in 0 : vector<8x64xf32>, vector<8x64xf32> -> vector<16x64xf32>
    %414 = arith.truncf %413 : vector<16x64xf32> to vector<16x64xbf16>
    %c1_139 = arith.constant 1 : index
    %c0_140 = arith.constant 0 : index
    %c0_141 = arith.constant 0 : index
    %415 = vector.load %arg7[%c1_139, %c0_140, %c0_141] : memref<2x64x64xbf16, #tpu.memory_space<vmem>>, vector<1x64x64xbf16>
    %416 = vector.shape_cast %415 : vector<1x64x64xbf16> to vector<64x64xbf16>
    %cst_142 = arith.constant dense<0.000000e+00> : vector<16x64xf32>
    %417 = tpu.matmul %414, %416, %cst_142 {dimension_numbers = #tpu.dot_dimension_numbers<[1], [0], [0], [1], [0, 0, 1, 1], [], []>} : vector<16x64xbf16>, vector<64x64xbf16>, vector<16x64xf32> -> vector<16x64xf32>
    %c1_143 = arith.constant 1 : index
    %c0_144 = arith.constant 0 : index
    %c0_145 = arith.constant 0 : index
    %418 = vector.load %arg8[%c1_143, %c0_144, %c0_145] : memref<2x1x64xf32, #tpu.memory_space<vmem>>, vector<1x1x64xf32>
    %419 = vector.shape_cast %418 : vector<1x1x64xf32> to vector<1x64xf32>
    %420 = vector.broadcast %419 : vector<1x64xf32> to vector<16x64xf32>
    %421 = arith.addf %417, %420 : vector<16x64xf32>
    %422 = arith.addf %421, %265 : vector<16x64xf32>
    %c1_146 = arith.constant 1 : index
    %c0_147 = arith.constant 0 : index
    %c0_148 = arith.constant 0 : index
    %423 = vector.load %arg9[%c1_146, %c0_147, %c0_148] : memref<2x1x64xf32, #tpu.memory_space<vmem>>, vector<1x1x64xf32>
    %424 = vector.shape_cast %423 : vector<1x1x64xf32> to vector<1x64xf32>
    %c1_149 = arith.constant 1 : index
    %c0_150 = arith.constant 0 : index
    %c0_151 = arith.constant 0 : index
    %425 = vector.load %arg10[%c1_149, %c0_150, %c0_151] : memref<2x1x64xf32, #tpu.memory_space<vmem>>, vector<1x1x64xf32>
    %426 = vector.shape_cast %425 : vector<1x1x64xf32> to vector<1x64xf32>
    %cst_152 = arith.constant dense<0.000000e+00> : vector<16xf32>
    %427 = vector.multi_reduction <add>, %422, %cst_152 [1] : vector<16x64xf32> to vector<16xf32>
    %428 = vector.shape_cast %427 : vector<16xf32> to vector<16x1xf32>
    %cst_153 = arith.constant 6.400000e+01 : f32
    %429 = vector.broadcast %cst_153 : f32 to vector<16x1xf32>
    %430 = arith.divf %428, %429 : vector<16x1xf32>
    %431 = vector.broadcast %430 : vector<16x1xf32> to vector<16x64xf32>
    %432 = arith.subf %422, %431 : vector<16x64xf32>
    %433 = arith.mulf %432, %432 : vector<16x64xf32>
    %cst_154 = arith.constant dense<0.000000e+00> : vector<16xf32>
    %434 = vector.multi_reduction <add>, %433, %cst_154 [1] : vector<16x64xf32> to vector<16xf32>
    %435 = vector.shape_cast %434 : vector<16xf32> to vector<16x1xf32>
    %cst_155 = arith.constant 6.400000e+01 : f32
    %436 = vector.broadcast %cst_155 : f32 to vector<16x1xf32>
    %437 = arith.divf %435, %436 : vector<16x1xf32>
    %cst_156 = arith.constant 9.99999974E-6 : f32
    %438 = vector.broadcast %cst_156 : f32 to vector<16x1xf32>
    %439 = arith.addf %437, %438 : vector<16x1xf32>
    %440 = math.rsqrt %439 : vector<16x1xf32>
    %441 = vector.broadcast %440 : vector<16x1xf32> to vector<16x64xf32>
    %442 = arith.mulf %432, %441 : vector<16x64xf32>
    %443 = vector.broadcast %424 : vector<1x64xf32> to vector<16x64xf32>
    %444 = arith.mulf %442, %443 : vector<16x64xf32>
    %445 = vector.broadcast %426 : vector<1x64xf32> to vector<16x64xf32>
    %446 = arith.addf %444, %445 : vector<16x64xf32>
    %447 = arith.truncf %446 : vector<16x64xf32> to vector<16x64xbf16>
    %c1_157 = arith.constant 1 : index
    %c0_158 = arith.constant 0 : index
    %c0_159 = arith.constant 0 : index
    %448 = vector.load %arg11[%c1_157, %c0_158, %c0_159] : memref<2x64x128xbf16, #tpu.memory_space<vmem>>, vector<1x64x128xbf16>
    %449 = vector.shape_cast %448 : vector<1x64x128xbf16> to vector<64x128xbf16>
    %cst_160 = arith.constant dense<0.000000e+00> : vector<16x128xf32>
    %450 = tpu.matmul %447, %449, %cst_160 {dimension_numbers = #tpu.dot_dimension_numbers<[1], [0], [0], [1], [0, 0, 1, 1], [], []>} : vector<16x64xbf16>, vector<64x128xbf16>, vector<16x128xf32> -> vector<16x128xf32>
    %c1_161 = arith.constant 1 : index
    %c0_162 = arith.constant 0 : index
    %c0_163 = arith.constant 0 : index
    %451 = vector.load %arg12[%c1_161, %c0_162, %c0_163] : memref<2x1x128xf32, #tpu.memory_space<vmem>>, vector<1x1x128xf32>
    %452 = vector.shape_cast %451 : vector<1x1x128xf32> to vector<1x128xf32>
    %453 = vector.broadcast %452 : vector<1x128xf32> to vector<16x128xf32>
    %454 = arith.addf %450, %453 : vector<16x128xf32>
    %cst_164 = arith.constant 5.000000e-01 : f32
    %455 = vector.broadcast %cst_164 : f32 to vector<16x128xf32>
    %456 = arith.mulf %455, %454 : vector<16x128xf32>
    %cst_165 = arith.constant 4.471500e-02 : f32
    %457 = vector.broadcast %cst_165 : f32 to vector<16x128xf32>
    %458 = arith.mulf %457, %454 : vector<16x128xf32>
    %459 = arith.mulf %458, %454 : vector<16x128xf32>
    %460 = arith.mulf %459, %454 : vector<16x128xf32>
    %461 = arith.addf %454, %460 : vector<16x128xf32>
    %cst_166 = arith.constant 0.797884583 : f32
    %462 = vector.broadcast %cst_166 : f32 to vector<16x128xf32>
    %463 = arith.mulf %462, %461 : vector<16x128xf32>
    %464 = math.tanh %463 : vector<16x128xf32>
    %cst_167 = arith.constant 1.000000e+00 : f32
    %465 = vector.broadcast %cst_167 : f32 to vector<16x128xf32>
    %466 = arith.addf %465, %464 : vector<16x128xf32>
    %467 = arith.mulf %456, %466 : vector<16x128xf32>
    %468 = arith.truncf %467 : vector<16x128xf32> to vector<16x128xbf16>
    %c1_168 = arith.constant 1 : index
    %c0_169 = arith.constant 0 : index
    %c0_170 = arith.constant 0 : index
    %469 = vector.load %arg13[%c1_168, %c0_169, %c0_170] : memref<2x128x64xbf16, #tpu.memory_space<vmem>>, vector<1x128x64xbf16>
    %470 = vector.shape_cast %469 : vector<1x128x64xbf16> to vector<128x64xbf16>
    %cst_171 = arith.constant dense<0.000000e+00> : vector<16x64xf32>
    %471 = tpu.matmul %468, %470, %cst_171 {dimension_numbers = #tpu.dot_dimension_numbers<[1], [0], [0], [1], [0, 0, 1, 1], [], []>} : vector<16x128xbf16>, vector<128x64xbf16>, vector<16x64xf32> -> vector<16x64xf32>
    %c1_172 = arith.constant 1 : index
    %c0_173 = arith.constant 0 : index
    %c0_174 = arith.constant 0 : index
    %472 = vector.load %arg14[%c1_172, %c0_173, %c0_174] : memref<2x1x64xf32, #tpu.memory_space<vmem>>, vector<1x1x64xf32>
    %473 = vector.shape_cast %472 : vector<1x1x64xf32> to vector<1x64xf32>
    %474 = vector.broadcast %473 : vector<1x64xf32> to vector<16x64xf32>
    %475 = arith.addf %471, %474 : vector<16x64xf32>
    %476 = arith.addf %475, %446 : vector<16x64xf32>
    %c1_175 = arith.constant 1 : index
    %c0_176 = arith.constant 0 : index
    %c0_177 = arith.constant 0 : index
    %477 = vector.load %arg15[%c1_175, %c0_176, %c0_177] : memref<2x1x64xf32, #tpu.memory_space<vmem>>, vector<1x1x64xf32>
    %478 = vector.shape_cast %477 : vector<1x1x64xf32> to vector<1x64xf32>
    %c1_178 = arith.constant 1 : index
    %c0_179 = arith.constant 0 : index
    %c0_180 = arith.constant 0 : index
    %479 = vector.load %arg16[%c1_178, %c0_179, %c0_180] : memref<2x1x64xf32, #tpu.memory_space<vmem>>, vector<1x1x64xf32>
    %480 = vector.shape_cast %479 : vector<1x1x64xf32> to vector<1x64xf32>
    %cst_181 = arith.constant dense<0.000000e+00> : vector<16xf32>
    %481 = vector.multi_reduction <add>, %476, %cst_181 [1] : vector<16x64xf32> to vector<16xf32>
    %482 = vector.shape_cast %481 : vector<16xf32> to vector<16x1xf32>
    %cst_182 = arith.constant 6.400000e+01 : f32
    %483 = vector.broadcast %cst_182 : f32 to vector<16x1xf32>
    %484 = arith.divf %482, %483 : vector<16x1xf32>
    %485 = vector.broadcast %484 : vector<16x1xf32> to vector<16x64xf32>
    %486 = arith.subf %476, %485 : vector<16x64xf32>
    %487 = arith.mulf %486, %486 : vector<16x64xf32>
    %cst_183 = arith.constant dense<0.000000e+00> : vector<16xf32>
    %488 = vector.multi_reduction <add>, %487, %cst_183 [1] : vector<16x64xf32> to vector<16xf32>
    %489 = vector.shape_cast %488 : vector<16xf32> to vector<16x1xf32>
    %cst_184 = arith.constant 6.400000e+01 : f32
    %490 = vector.broadcast %cst_184 : f32 to vector<16x1xf32>
    %491 = arith.divf %489, %490 : vector<16x1xf32>
    %cst_185 = arith.constant 9.99999974E-6 : f32
    %492 = vector.broadcast %cst_185 : f32 to vector<16x1xf32>
    %493 = arith.addf %491, %492 : vector<16x1xf32>
    %494 = math.rsqrt %493 : vector<16x1xf32>
    %495 = vector.broadcast %494 : vector<16x1xf32> to vector<16x64xf32>
    %496 = arith.mulf %486, %495 : vector<16x64xf32>
    %497 = vector.broadcast %478 : vector<1x64xf32> to vector<16x64xf32>
    %498 = arith.mulf %496, %497 : vector<16x64xf32>
    %499 = vector.broadcast %480 : vector<1x64xf32> to vector<16x64xf32>
    %500 = arith.addf %498, %499 : vector<16x64xf32>
    %501 = vector.extract_strided_slice %500 {offsets = [0, 0], sizes = [1, 64], strides = [1, 1]} : vector<16x64xf32> to vector<1x64xf32>
    %502 = vector.extract_strided_slice %500 {offsets = [8, 0], sizes = [1, 64], strides = [1, 1]} : vector<16x64xf32> to vector<1x64xf32>
    %503 = tpu.concatenate %501, %502 in 0 : vector<1x64xf32>, vector<1x64xf32> -> vector<2x64xf32>
    %504 = arith.truncf %503 : vector<2x64xf32> to vector<2x64xbf16>
    %c0_186 = arith.constant 0 : index
    %c0_187 = arith.constant 0 : index
    %505 = vector.load %arg17[%c0_186, %c0_187] : memref<64x64xbf16, #tpu.memory_space<vmem>>, vector<64x64xbf16>
    %cst_188 = arith.constant dense<0.000000e+00> : vector<2x64xf32>
    %506 = tpu.matmul %504, %505, %cst_188 {dimension_numbers = #tpu.dot_dimension_numbers<[1], [0], [0], [1], [0, 0, 1, 1], [], []>} : vector<2x64xbf16>, vector<64x64xbf16>, vector<2x64xf32> -> vector<2x64xf32>
    %c0_189 = arith.constant 0 : index
    %c0_190 = arith.constant 0 : index
    %507 = vector.load %arg18[%c0_189, %c0_190] : memref<1x64xf32, #tpu.memory_space<vmem>>, vector<1x64xf32>
    %508 = vector.broadcast %507 : vector<1x64xf32> to vector<2x64xf32>
    %509 = arith.addf %506, %508 : vector<2x64xf32>
    %510 = math.tanh %509 : vector<2x64xf32>
    %c0_191 = arith.constant 0 : index
    %c0_192 = arith.constant 0 : index
    %511 = vector.load %arg22[%c0_191, %c0_192] : memref<2x64xf32, #tpu.memory_space<vmem>>, vector<2x64xf32>
    tpu.vector_store %arg22[%c0_191, %c0_192], %510 {strides = array<i32>} : memref<2x64xf32, #tpu.memory_space<vmem>>, vector<2x64xf32>,
    %512 = arith.truncf %510 : vector<2x64xf32> to vector<2x64xbf16>
    %c0_193 = arith.constant 0 : index
    %c0_194 = arith.constant 0 : index
    %513 = vector.load %arg19[%c0_193, %c0_194] : memref<64x3xbf16, #tpu.memory_space<vmem>>, vector<64x3xbf16>
    %cst_195 = arith.constant dense<0.000000e+00> : vector<2x3xf32>
    %514 = tpu.matmul %512, %513, %cst_195 {dimension_numbers = #tpu.dot_dimension_numbers<[1], [0], [0], [1], [0, 0, 1, 1], [], []>} : vector<2x64xbf16>, vector<64x3xbf16>, vector<2x3xf32> -> vector<2x3xf32>
    %c0_196 = arith.constant 0 : index
    %c0_197 = arith.constant 0 : index
    %515 = vector.load %arg20[%c0_196, %c0_197] : memref<1x3xf32, #tpu.memory_space<vmem>>, vector<1x3xf32>
    %516 = vector.broadcast %515 : vector<1x3xf32> to vector<2x3xf32>
    %517 = arith.addf %514, %516 : vector<2x3xf32>
    %c0_198 = arith.constant 0 : index
    %c0_199 = arith.constant 0 : index
    %518 = vector.load %arg21[%c0_198, %c0_199] : memref<2x3xf32, #tpu.memory_space<vmem>>, vector<2x3xf32>
    tpu.vector_store %arg21[%c0_198, %c0_199], %517 {strides = array<i32>} : memref<2x3xf32, #tpu.memory_space<vmem>>, vector<2x3xf32>,
    return
  }
  func.func @transform_0(%arg0: i32) -> (i32, i32) {
    %c0_i32 = arith.constant 0 : i32
    %c0_i32_0 = arith.constant 0 : i32
    return %arg0, %c0_i32 : i32, i32
  }
  func.func @transform_1(%arg0: i32) -> (i32, i32, i32) {
    %c0_i32 = arith.constant 0 : i32
    %c0_i32_0 = arith.constant 0 : i32
    %c0_i32_1 = arith.constant 0 : i32
    return %arg0, %c0_i32, %c0_i32_0 : i32, i32, i32
  }
  func.func @transform_2(%arg0: i32) -> (i32, i32) {
    %c0_i32 = arith.constant 0 : i32
    %c0_i32_0 = arith.constant 0 : i32
    %c0_i32_1 = arith.constant 0 : i32
    return %c0_i32, %c0_i32_0 : i32, i32
  }
  func.func @transform_3(%arg0: i32) -> (i32, i32) {
    %c0_i32 = arith.constant 0 : i32
    %c0_i32_0 = arith.constant 0 : i32
    %c0_i32_1 = arith.constant 0 : i32
    return %c0_i32, %c0_i32_0 : i32, i32
  }
  func.func @transform_4(%arg0: i32) -> (i32, i32, i32) {
    %c0_i32 = arith.constant 0 : i32
    %c0_i32_0 = arith.constant 0 : i32
    %c0_i32_1 = arith.constant 0 : i32
    %c0_i32_2 = arith.constant 0 : i32
    return %c0_i32, %c0_i32_0, %c0_i32_1 : i32, i32, i32
  }
  func.func @transform_5(%arg0: i32) -> (i32, i32, i32) {
    %c0_i32 = arith.constant 0 : i32
    %c0_i32_0 = arith.constant 0 : i32
    %c0_i32_1 = arith.constant 0 : i32
    %c0_i32_2 = arith.constant 0 : i32
    return %c0_i32, %c0_i32_0, %c0_i32_1 : i32, i32, i32
  }
  func.func @transform_6(%arg0: i32) -> (i32, i32, i32) {
    %c0_i32 = arith.constant 0 : i32
    %c0_i32_0 = arith.constant 0 : i32
    %c0_i32_1 = arith.constant 0 : i32
    %c0_i32_2 = arith.constant 0 : i32
    return %c0_i32, %c0_i32_0, %c0_i32_1 : i32, i32, i32
  }
  func.func @transform_7(%arg0: i32) -> (i32, i32, i32) {
    %c0_i32 = arith.constant 0 : i32
    %c0_i32_0 = arith.constant 0 : i32
    %c0_i32_1 = arith.constant 0 : i32
    %c0_i32_2 = arith.constant 0 : i32
    return %c0_i32, %c0_i32_0, %c0_i32_1 : i32, i32, i32
  }
  func.func @transform_8(%arg0: i32) -> (i32, i32, i32) {
    %c0_i32 = arith.constant 0 : i32
    %c0_i32_0 = arith.constant 0 : i32
    %c0_i32_1 = arith.constant 0 : i32
    %c0_i32_2 = arith.constant 0 : i32
    return %c0_i32, %c0_i32_0, %c0_i32_1 : i32, i32, i32
  }
  func.func @transform_9(%arg0: i32) -> (i32, i32, i32) {
    %c0_i32 = arith.constant 0 : i32
    %c0_i32_0 = arith.constant 0 : i32
    %c0_i32_1 = arith.constant 0 : i32
    %c0_i32_2 = arith.constant 0 : i32
    return %c0_i32, %c0_i32_0, %c0_i32_1 : i32, i32, i32
  }
  func.func @transform_10(%arg0: i32) -> (i32, i32, i32) {
    %c0_i32 = arith.constant 0 : i32
    %c0_i32_0 = arith.constant 0 : i32
    %c0_i32_1 = arith.constant 0 : i32
    %c0_i32_2 = arith.constant 0 : i32
    return %c0_i32, %c0_i32_0, %c0_i32_1 : i32, i32, i32
  }
  func.func @transform_11(%arg0: i32) -> (i32, i32, i32) {
    %c0_i32 = arith.constant 0 : i32
    %c0_i32_0 = arith.constant 0 : i32
    %c0_i32_1 = arith.constant 0 : i32
    %c0_i32_2 = arith.constant 0 : i32
    return %c0_i32, %c0_i32_0, %c0_i32_1 : i32, i32, i32
  }
  func.func @transform_12(%arg0: i32) -> (i32, i32, i32) {
    %c0_i32 = arith.constant 0 : i32
    %c0_i32_0 = arith.constant 0 : i32
    %c0_i32_1 = arith.constant 0 : i32
    %c0_i32_2 = arith.constant 0 : i32
    return %c0_i32, %c0_i32_0, %c0_i32_1 : i32, i32, i32
  }
  func.func @transform_13(%arg0: i32) -> (i32, i32, i32) {
    %c0_i32 = arith.constant 0 : i32
    %c0_i32_0 = arith.constant 0 : i32
    %c0_i32_1 = arith.constant 0 : i32
    %c0_i32_2 = arith.constant 0 : i32
    return %c0_i32, %c0_i32_0, %c0_i32_1 : i32, i32, i32
  }
  func.func @transform_14(%arg0: i32) -> (i32, i32, i32) {
    %c0_i32 = arith.constant 0 : i32
    %c0_i32_0 = arith.constant 0 : i32
    %c0_i32_1 = arith.constant 0 : i32
    %c0_i32_2 = arith.constant 0 : i32
    return %c0_i32, %c0_i32_0, %c0_i32_1 : i32, i32, i32
  }
  func.func @transform_15(%arg0: i32) -> (i32, i32, i32) {
    %c0_i32 = arith.constant 0 : i32
    %c0_i32_0 = arith.constant 0 : i32
    %c0_i32_1 = arith.constant 0 : i32
    %c0_i32_2 = arith.constant 0 : i32
    return %c0_i32, %c0_i32_0, %c0_i32_1 : i32, i32, i32
  }
  func.func @transform_16(%arg0: i32) -> (i32, i32) {
    %c0_i32 = arith.constant 0 : i32
    %c0_i32_0 = arith.constant 0 : i32
    %c0_i32_1 = arith.constant 0 : i32
    return %c0_i32, %c0_i32_0 : i32, i32
  }
  func.func @transform_17(%arg0: i32) -> (i32, i32) {
    %c0_i32 = arith.constant 0 : i32
    %c0_i32_0 = arith.constant 0 : i32
    %c0_i32_1 = arith.constant 0 : i32
    return %c0_i32, %c0_i32_0 : i32, i32
  }
  func.func @transform_18(%arg0: i32) -> (i32, i32) {
    %c0_i32 = arith.constant 0 : i32
    %c0_i32_0 = arith.constant 0 : i32
    %c0_i32_1 = arith.constant 0 : i32
    return %c0_i32, %c0_i32_0 : i32, i32
  }
  func.func @transform_19(%arg0: i32) -> (i32, i32) {
    %c0_i32 = arith.constant 0 : i32
    %c0_i32_0 = arith.constant 0 : i32
    %c0_i32_1 = arith.constant 0 : i32
    return %c0_i32, %c0_i32_0 : i32, i32
  }
  func.func @transform_20(%arg0: i32) -> (i32, i32) {
    %c0_i32 = arith.constant 0 : i32
    %c0_i32_0 = arith.constant 0 : i32
    return %arg0, %c0_i32 : i32, i32
  }
  func.func @transform_21(%arg0: i32) -> (i32, i32) {
    %c0_i32 = arith.constant 0 : i32
    %c0_i32_0 = arith.constant 0 : i32
    return %arg0, %c0_i32 : i32, i32
  }
}

</mosaic_0001>

<llo_original>
// kernel: roberta_forward.1
$region0: #{roberta_forward.1}
  #allocation0 [shape = 'u32[]', space=smem, size = 0x4, offset = 0x4, fixed_abs, tag = 'smem constant byte address 0x4 - core index']
  #allocation1 [shape = 'u32[144,128]{1,0:T(1,128)}', space=vmem, size = 0x12000, scoped, tag = 'internal scratch']
  %s0 = inlined_call_operand.vmem [shape: f32[16,64], index: 0, kind: input, shape index: {}]
  %s1 = inlined_call_operand.vmem [shape: f32[2,1,8], index: 1, kind: input, shape index: {}]
  %s2 = inlined_call_operand.vmem [shape: f32[1,64], index: 2, kind: input, shape index: {}]
  %s3 = inlined_call_operand.vmem [shape: f32[1,64], index: 3, kind: input, shape index: {}]
  %s4 = inlined_call_operand.vmem [shape: bf16[2,64,192], index: 4, kind: input, shape index: {}]
  %s5 = inlined_call_operand.vmem [shape: f32[2,1,192], index: 5, kind: input, shape index: {}]
  %s6 = inlined_call_operand.vmem [shape: bf16[2,64,64], index: 6, kind: input, shape index: {}]
  %s7 = inlined_call_operand.vmem [shape: f32[2,1,64], index: 7, kind: input, shape index: {}]
  %s8 = inlined_call_operand.vmem [shape: f32[2,1,64], index: 8, kind: input, shape index: {}]
  %s9 = inlined_call_operand.vmem [shape: f32[2,1,64], index: 9, kind: input, shape index: {}]
  %s10 = inlined_call_operand.vmem [shape: bf16[2,64,128], index: 10, kind: input, shape index: {}]
  %s11 = inlined_call_operand.vmem [shape: f32[2,1,128], index: 11, kind: input, shape index: {}]
  %s12 = inlined_call_operand.vmem [shape: bf16[2,128,64], index: 12, kind: input, shape index: {}]
  %s13 = inlined_call_operand.vmem [shape: f32[2,1,64], index: 13, kind: input, shape index: {}]
  %s14 = inlined_call_operand.vmem [shape: f32[2,1,64], index: 14, kind: input, shape index: {}]
  %s15 = inlined_call_operand.vmem [shape: f32[2,1,64], index: 15, kind: input, shape index: {}]
  %s16 = inlined_call_operand.vmem [shape: bf16[64,64], index: 16, kind: input, shape index: {}]
  %s17 = inlined_call_operand.vmem [shape: f32[1,64], index: 17, kind: input, shape index: {}]
  %s18 = inlined_call_operand.vmem [shape: bf16[64,3], index: 18, kind: input, shape index: {}]
  %s19 = inlined_call_operand.vmem [shape: f32[1,3], index: 19, kind: input, shape index: {}]
  %s20 = inlined_call_operand.hbm [shape: f32[2,3], index: 20, kind: output, shape index: {0}]
  %s21 = inlined_call_operand.hbm [shape: f32[2,64], index: 21, kind: output, shape index: {1}]
  %22 = xla_tuple %s20, %s21
  %s23 = sld [smem:[#allocation0]]
  $region98: #{roberta_forward.1} parent=0
    _
  %s25 = ssub.s32 1, %s23
  %s26 = scalar_select 0, %s25, %s23
  $region1: #{roberta_forward.1} parent=0
    #allocation2 [shape = 'u8[1024]{0}', space=vmem, size = 0x400, scoped, tag = 'output window, operand 0, single buffered']
    #allocation3 [shape = 's32[1]{0}', space=sflag, size = 0x4, scoped, tag = 'scoped memory for roberta_forward.1']
    #allocation4 [shape = 'u8[1024]{0}', space=vmem, size = 0x400, scoped, tag = 'output window, operand 1, single buffered']
    #allocation5 [shape = 's32[1]{0}', space=sflag, size = 0x4, scoped, tag = 'scoped memory for roberta_forward.1']
    %27 = vsyncpa [#allocation3], 0
    %28 = vsyncpa [#allocation5], 0
    // Predicated region
    $region2: #{roberta_forward.1} parent=1 // pred_check
      _
    $region3: #{roberta_forward.1} parent=1 // pred_check_branch
      %30 = sbr.rel (0) target = $region5
    $region4: #{roberta_forward.1} parent=1 // pred_region
      _
    $region5: #{roberta_forward.1} parent=1 // pred_fallthru
      _
    // Predicated region
    $region6: #{roberta_forward.1} parent=1 // pred_check
      _
    $region7: #{roberta_forward.1} parent=1 // pred_check_branch
      %32 = sbr.rel (0) target = $region9
    $region8: #{roberta_forward.1} parent=1 // pred_region
      _
    $region9: #{roberta_forward.1} parent=1 // pred_fallthru
      _
    // Predicated region
    $region10: #{roberta_forward.1} parent=1 // pred_check
      _
    $region11: #{roberta_forward.1} parent=1 // pred_check_branch
      %34 = sbr.rel (0) target = $region13
    $region12: #{roberta_forward.1} parent=1 // pred_region
      _
    $region13: #{roberta_forward.1} parent=1 // pred_fallthru
      _
    // Predicated region
    $region14: #{roberta_forward.1} parent=1 // pred_check
      _
    $region15: #{roberta_forward.1} parent=1 // pred_check_branch
      %36 = sbr.rel (0) target = $region17
    $region16: #{roberta_forward.1} parent=1 // pred_region
      _
    $region17: #{roberta_forward.1} parent=1 // pred_fallthru
      _
    // Predicated region
    $region18: #{roberta_forward.1} parent=1 // pred_check
      _
    $region19: #{roberta_forward.1} parent=1 // pred_check_branch
      %38 = sbr.rel (0) target = $region21
    $region20: #{roberta_forward.1} parent=1 // pred_region
      _
    $region21: #{roberta_forward.1} parent=1 // pred_fallthru
      _
    // Predicated region
    $region22: #{roberta_forward.1} parent=1 // pred_check
      _
    $region23: #{roberta_forward.1} parent=1 // pred_check_branch
      %40 = sbr.rel (0) target = $region25
    $region24: #{roberta_forward.1} parent=1 // pred_region
      _
    $region25: #{roberta_forward.1} parent=1 // pred_fallthru
      _
    // Predicated region
    $region26: #{roberta_forward.1} parent=1 // pred_check
      _
    $region27: #{roberta_forward.1} parent=1 // pred_check_branch
      %42 = sbr.rel (0) target = $region29
    $region28: #{roberta_forward.1} parent=1 // pred_region
      _
    $region29: #{roberta_forward.1} parent=1 // pred_fallthru
      _
    // Predicated region
    $region30: #{roberta_forward.1} parent=1 // pred_check
      _
    $region31: #{roberta_forward.1} parent=1 // pred_check_branch
      %44 = sbr.rel (0) target = $region33
    $region32: #{roberta_forward.1} parent=1 // pred_region
      _
    $region33: #{roberta_forward.1} parent=1 // pred_fallthru
      _
    // Predicated region
    $region34: #{roberta_forward.1} parent=1 // pred_check
      _
    $region35: #{roberta_forward.1} parent=1 // pred_check_branch
      %46 = sbr.rel (0) target = $region37
    $region36: #{roberta_forward.1} parent=1 // pred_region
      _
    $region37: #{roberta_forward.1} parent=1 // pred_fallthru
      _
    // Predicated region
    $region38: #{roberta_forward.1} parent=1 // pred_check
      _
    $region39: #{roberta_forward.1} parent=1 // pred_check_branch
      %48 = sbr.rel (0) target = $region41
    $region40: #{roberta_forward.1} parent=1 // pred_region
      _
    $region41: #{roberta_forward.1} parent=1 // pred_fallthru
      _
    // Predicated region
    $region42: #{roberta_forward.1} parent=1 // pred_check
      _
    $region43: #{roberta_forward.1} parent=1 // pred_check_branch
      %50 = sbr.rel (0) target = $region45
    $region44: #{roberta_forward.1} parent=1 // pred_region
      _
    $region45: #{roberta_forward.1} parent=1 // pred_fallthru
      _
    // Predicated region
    $region46: #{roberta_forward.1} parent=1 // pred_check
      _
    $region47: #{roberta_forward.1} parent=1 // pred_check_branch
      %52 = sbr.rel (0) target = $region49
    $region48: #{roberta_forward.1} parent=1 // pred_region
      _
    $region49: #{roberta_forward.1} parent=1 // pred_fallthru
      _
    // Predicated region
    $region50: #{roberta_forward.1} parent=1 // pred_check
      _
    $region51: #{roberta_forward.1} parent=1 // pred_check_branch
      %54 = sbr.rel (0) target = $region53
    $region52: #{roberta_forward.1} parent=1 // pred_region
      _
    $region53: #{roberta_forward.1} parent=1 // pred_fallthru
      _
    // Predicated region
    $region54: #{roberta_forward.1} parent=1 // pred_check
      _
    $region55: #{roberta_forward.1} parent=1 // pred_check_branch
      %56 = sbr.rel (0) target = $region57
    $region56: #{roberta_forward.1} parent=1 // pred_region
      _
    $region57: #{roberta_forward.1} parent=1 // pred_fallthru
      _
    // Predicated region
    $region58: #{roberta_forward.1} parent=1 // pred_check
      _
    $region59: #{roberta_forward.1} parent=1 // pred_check_branch
      %58 = sbr.rel (0) target = $region61
    $region60: #{roberta_forward.1} parent=1 // pred_region
      _
    $region61: #{roberta_forward.1} parent=1 // pred_fallthru
      _
    // Predicated region
    $region62: #{roberta_forward.1} parent=1 // pred_check
      _
    $region63: #{roberta_forward.1} parent=1 // pred_check_branch
      %60 = sbr.rel (0) target = $region65
    $region64: #{roberta_forward.1} parent=1 // pred_region
      _
    $region65: #{roberta_forward.1} parent=1 // pred_fallthru
      _
    // Predicated region
    $region66: #{roberta_forward.1} parent=1 // pred_check
      _
    $region67: #{roberta_forward.1} parent=1 // pred_check_branch
      %62 = sbr.rel (0) target = $region69
    $region68: #{roberta_forward.1} parent=1 // pred_region
      _
    $region69: #{roberta_forward.1} parent=1 // pred_fallthru
      _
    // Predicated region
    $region70: #{roberta_forward.1} parent=1 // pred_check
      _
    $region71: #{roberta_forward.1} parent=1 // pred_check_branch
      %64 = sbr.rel (0) target = $region73
    $region72: #{roberta_forward.1} parent=1 // pred_region
      _
    $region73: #{roberta_forward.1} parent=1 // pred_fallthru
      _
    // Predicated region
    $region74: #{roberta_forward.1} parent=1 // pred_check
      _
    $region75: #{roberta_forward.1} parent=1 // pred_check_branch
      %66 = sbr.rel (0) target = $region77
    $region76: #{roberta_forward.1} parent=1 // pred_region
      _
    $region77: #{roberta_forward.1} parent=1 // pred_fallthru
      _
    // Predicated region
    $region78: #{roberta_forward.1} parent=1 // pred_check
      _
    $region79: #{roberta_forward.1} parent=1 // pred_check_branch
      %68 = sbr.rel (0) target = $region81
    $region80: #{roberta_forward.1} parent=1 // pred_region
      _
    $region81: #{roberta_forward.1} parent=1 // pred_fallthru
      _
    %v70 = vld [vmem:[%s0] sm:$0xff]
    %v71 = vld [vmem:[%s0 + $0x8] sm:$0xff]
    %v72 = vld [vmem:[%s2] sm:$0x1]
    %v73 = vld [vmem:[%s3] sm:$0x1]
    %vm74 = vcmask 523264
    %v75 = vsel %vm74, %v70, 0.0
    %76 = vadd.xlane.f32.xlu0 %v75
    %v77 = vpop.xlane.xlu0 %76
    %v78 = vsel %vm74, %v71, 0.0
    %79 = vadd.xlane.f32.xlu0 %v78
    %v80 = vpop.xlane.xlu0 %79
    %v81 = vrcp.pop 64.0
    %v82 = vmul.f32 %v77, %v81
    %v83 = vmul.f32 %v80, %v81
    %v84 = vsub.f32 %v70, %v82
    %v85 = vsub.f32 %v71, %v83
    %v86 = vmul.f32 %v84, %v84
    %v87 = vmul.f32 %v85, %v85
    %v88 = vsel %vm74, %v86, 0.0
    %89 = vadd.xlane.f32.xlu0 %v88
    %v90 = vpop.xlane.xlu0 %89
    %v91 = vsel %vm74, %v87, 0.0
    %92 = vadd.xlane.f32.xlu0 %v91
    %v93 = vpop.xlane.xlu0 %92
    %v94 = vmul.f32 %v90, %v81
    %v95 = vmul.f32 %v93, %v81
    %v96 = vadd.f32 %v94, 1e-05
    %v97 = vadd.f32 %v95, 1e-05
    %v98 = vrsqrt.pop %v96
    %v99 = vrsqrt.pop %v97
    %v100 = vmul.f32 %v84, %v98
    %v101 = vmul.f32 %v85, %v99
    %v103 = vlaneseq
    %v104 = vshrl.u32 %v103, 7
    %v105 = vsub.s32 0, %v104
    %v106 = vrot.slane %v72, %v105
    %v108 = vmul.f32 %v100, %v106
    %v109 = vmul.f32 %v101, %v106
    %v111 = vlaneseq
    %v112 = vshrl.u32 %v111, 7
    %v113 = vsub.s32 0, %v112
    %v114 = vrot.slane %v73, %v113
    %v116 = vadd.f32 %v108, %v114
    %v117 = vadd.f32 %v109, %v114
    %v118 = vld [vmem:[%s1] sm:$0x1]
    %v120 = vlaneseq
    %v121 = vshrl.u32 %v120, 7
    %v122 = vsub.s32 0, %v121
    %v123 = vrot.slane %v118, %v122
    %s125 = scalar_lea.vmem %s1, 1
    %v126 = vld [vmem:[%s125] sm:$0x1]
    %v128 = vlaneseq
    %v129 = vshrl.u32 %v128, 7
    %v130 = vsub.s32 0, %v129
    %v131 = vrot.slane %v126, %v130
    %v133 = vpack.c.bf16 %v117, %v116
    %v134 = vld [vmem:[%s4] sm:$0xff]
    %v135 = vld [vmem:[%s4 + $0x8] sm:$0xff]
    %v136 = vld [vmem:[%s4 + $0x10] sm:$0xff]
    %v137 = vld [vmem:[%s4 + $0x18] sm:$0xff]
    %v138 = vld [vmem:[%s4 + $0x20] sm:$0xff]
    %v139 = vld [vmem:[%s4 + $0x28] sm:$0xff]
    %v140 = vld [vmem:[%s4 + $0x30] sm:$0xff]
    %v141 = vld [vmem:[%s4 + $0x38] sm:$0xff]
    %v142 = vld [vmem:[%s5] sm:$0x3]
    %v144 = vlaneseq
    %v145 = vshrl.u32 %v144, 7
    %v146 = vsub.s32 0, %v145
    %v147 = vrot.slane %v142, %v146
    %v148 = vlaneseq
    %v149 = vshrl.u32 %v148, 7
    %v150 = vsub.s32 1, %v149
    %v151 = vrot.slane %v142, %v150
    %v162 = vunpack.c.l.b16 %v134
    %v163 = vunpack.c.h.b16 %v134
    %v164 = vunpack.c.l.b16 %v135
    %v165 = vunpack.c.h.b16 %v135
    %v166 = vunpack.c.l.b16 %v136
    %v167 = vunpack.c.h.b16 %v136
    %v168 = vunpack.c.l.b16 %v137
    %v169 = vunpack.c.h.b16 %v137
    %v170 = vunpack.c.l.b16 %v138
    %v171 = vunpack.c.h.b16 %v138
    %v172 = vunpack.c.l.b16 %v139
    %v173 = vunpack.c.h.b16 %v139
    %v174 = vunpack.c.l.b16 %v140
    %v175 = vunpack.c.h.b16 %v140
    %v176 = vunpack.c.l.b16 %v141
    %v177 = vunpack.c.h.b16 %v141
    %v178 = vpack.c.b16 %v164, %v162
    %v179 = vpack.c.b16 %v165, %v163
    %v180 = vpack.c.b16 %v168, %v166
    %v181 = vpack.c.b16 %v169, %v167
    %v182 = vpack.c.b16 %v172, %v170
    %v183 = vpack.c.b16 %v173, %v171
    %v184 = vpack.c.b16 %v176, %v174
    %v185 = vpack.c.b16 %v177, %v175
    %v195 = vsel %vm74, %v133, 0
    %197 = vmatprep.subr.bf16.mxu0 %v179
    %198 = vmatpush1.bf16.msra.mxu0 %v178
    %199 = vmatprep.subr.bf16.mxu0 %v181
    %200 = vmatpush1.bf16.msra.mxu0 %v180
    %201 = vmatprep.subr.bf16.mxu0 %v183
    %202 = vmatpush1.bf16.msra.mxu0 %v182
    %203 = vmatprep.subr.bf16.mxu0 %v185
    %204 = vmatpush1.bf16.msra.mxu0 %v184
    %205 = vmatprep.subr.bf16.mxu0 0
    %206 = vmatpush1.bf16.msra.mxu0 0
    %207 = vmatprep.subr.bf16.mxu0 0
    %208 = vmatpush1.bf16.msra.mxu0 0
    %209 = vmatprep.subr.bf16.mxu0 0
    %210 = vmatpush1.bf16.msra.mxu0 0
    %211 = vmatprep.subr.bf16.mxu0 0
    %212 = vmatpush1.bf16.msra.mxu0 0
    %213 = vmatprep.subr.bf16.mxu0 0
    %214 = vmatpush1.bf16.msra.mxu0 0
    %215 = vmatprep.subr.bf16.mxu0 0
    %216 = vmatpush1.bf16.msra.mxu0 0
    %217 = vmatprep.subr.bf16.mxu0 0
    %218 = vmatpush1.bf16.msra.mxu0 0
    %219 = vmatprep.subr.bf16.mxu0 0
    %220 = vmatpush1.bf16.msra.mxu0 0
    %221 = vmatprep.subr.bf16.mxu0 0
    %222 = vmatpush1.bf16.msra.mxu0 0
    %223 = vmatprep.subr.bf16.mxu0 0
    %224 = vmatpush1.bf16.msra.mxu0 0
    %225 = vmatprep.subr.bf16.mxu0 0
    %226 = vmatpush1.bf16.msra.mxu0 0
    %227 = vmatprep.subr.bf16.mxu0 0
    %228 = vmatpush1.bf16.msra.mxu0 0
    %229 = vmatprep.mubr.bf16.mxu0 0
    %230 = vmatmul.mubr.bf16.gmra.mrb[0].mxu0 %v195
    %v231 = vpop.f32.mrb[0].mxu0
    %v232 = vadd.f32 %v147, %v231
    %v233 = vpop.f32.mrb[0].mxu0
    %v234 = vadd.f32 %v151, %v233
    %v235 = vpop.f32.mrb[0].mxu0
    %v236 = vadd.f32 %v147, %v235
    %v237 = vpop.f32.mrb[0].mxu0
    %v238 = vadd.f32 %v151, %v237
    %239 = vdwg.mxu0
    %v240 = vpack.c.bf16 %v236, %v232
    %v241 = vpack.c.bf16 %v238, %v234
    %243 = vrot.lane.b32.xlu0 %v240, 64
    %v244 = vpop.permute.xlu0 %243
    %vm245 = vcmask 130048
    %v247 = vsel %vm245, %v240, 0
    %v250 = vsel %vm245, %v244, 0
    %252 = vmatprep.subr.bf16.mxu0 0
    %253 = vmatpush1.bf16.xpose.msra.mxu0 %v250
    %254 = vmatprep.subr.bf16.mxu0 0
    %255 = vmatpush1.bf16.xpose.msra.mxu0 0
    %256 = vmatprep.subr.bf16.mxu0 0
    %257 = vmatpush1.bf16.xpose.msra.mxu0 0
    %258 = vmatprep.subr.bf16.mxu0 0
    %259 = vmatpush1.bf16.xpose.msra.mxu0 0
    %260 = vmatprep.subr.bf16.mxu0 0
    %261 = vmatpush1.bf16.xpose.msra.mxu0 0
    %262 = vmatprep.subr.bf16.mxu0 0
    %263 = vmatpush1.bf16.xpose.msra.mxu0 0
    %264 = vmatprep.subr.bf16.mxu0 0
    %265 = vmatpush1.bf16.xpose.msra.mxu0 0
    %266 = vmatprep.subr.bf16.mxu0 0
    %267 = vmatpush1.bf16.xpose.msra.mxu0 0
    %268 = vmatprep.subr.bf16.mxu0 0
    %269 = vmatpush1.bf16.xpose.msra.mxu0 0
    %270 = vmatprep.subr.bf16.mxu0 0
    %271 = vmatpush1.bf16.xpose.msra.mxu0 0
    %272 = vmatprep.subr.bf16.mxu0 0
    %273 = vmatpush1.bf16.xpose.msra.mxu0 0
    %274 = vmatprep.subr.bf16.mxu0 0
    %275 = vmatpush1.bf16.xpose.msra.mxu0 0
    %276 = vmatprep.subr.bf16.mxu0 0
    %277 = vmatpush1.bf16.xpose.msra.mxu0 0
    %278 = vmatprep.subr.bf16.mxu0 0
    %279 = vmatpush1.bf16.xpose.msra.mxu0 0
    %280 = vmatprep.subr.bf16.mxu0 0
    %281 = vmatpush1.bf16.xpose.msra.mxu0 0
    %282 = vmatprep.subr.bf16.mxu0 0
    %283 = vmatpush1.bf16.xpose.msra.mxu0 0
    %284 = vmatprep.mubr.bf16.mxu0 0
    %285 = vmatmul.mubr.bf16.gmra.mrb[0].mxu0 %v247
    %v286 = vpop.f32.mrb[0].mxu0
    %v287 = vadd.f32 %v123, %v286
    %v288 = vpop.f32.mrb[0].mxu0
    %v289 = vpop.f32.mrb[0].mxu0
    %v290 = vpop.f32.mrb[0].mxu0
    %291 = vdwg.mxu0
    %vm292 = vcmask 64512
    %v293 = vsel %vm292, %v287, -inf
    %294 = vmax.xlane.f32.xlu0 %v293
    %v295 = vpop.xlane.xlu0 %294
    %v296 = vsub.f32 %v287, %v295
    %v297 = vmul.f32 %v296, 1.442695
    %v298 = vpow.pop %v297
    %v299 = vsel %vm292, %v298, 0.0
    %300 = vadd.xlane.f32.xlu0 %v299
    %v301 = vpop.xlane.xlu0 %300
    %v302 = vrcp.pop %v301
    %v303 = vmul.f32 %v298, %v302
    %v304 = vpack.c.bf16 %v303, %v303
    %v306 = vsel %vm292, %v304, 0
    %vm308 = vcmask 1043456
    %v310 = vsel %vm308, %v241, 0
    %312 = vmatprep.subr.bf16.mxu0 0
    %313 = vmatpush1.bf16.msra.mxu0 %v310
    %314 = vmatprep.subr.bf16.mxu0 0
    %315 = vmatpush1.bf16.msra.mxu0 0
    %316 = vmatprep.subr.bf16.mxu0 0
    %317 = vmatpush1.bf16.msra.mxu0 0
    %318 = vmatprep.subr.bf16.mxu0 0
    %319 = vmatpush1.bf16.msra.mxu0 0
    %320 = vmatprep.subr.bf16.mxu0 0
    %321 = vmatpush1.bf16.msra.mxu0 0
    %322 = vmatprep.subr.bf16.mxu0 0
    %323 = vmatpush1.bf16.msra.mxu0 0
    %324 = vmatprep.subr.bf16.mxu0 0
    %325 = vmatpush1.bf16.msra.mxu0 0
    %326 = vmatprep.subr.bf16.mxu0 0
    %327 = vmatpush1.bf16.msra.mxu0 0
    %328 = vmatprep.subr.bf16.mxu0 0
    %329 = vmatpush1.bf16.msra.mxu0 0
    %330 = vmatprep.subr.bf16.mxu0 0
    %331 = vmatpush1.bf16.msra.mxu0 0
    %332 = vmatprep.subr.bf16.mxu0 0
    %333 = vmatpush1.bf16.msra.mxu0 0
    %334 = vmatprep.subr.bf16.mxu0 0
    %335 = vmatpush1.bf16.msra.mxu0 0
    %336 = vmatprep.subr.bf16.mxu0 0
    %337 = vmatpush1.bf16.msra.mxu0 0
    %338 = vmatprep.subr.bf16.mxu0 0
    %339 = vmatpush1.bf16.msra.mxu0 0
    %340 = vmatprep.subr.bf16.mxu0 0
    %341 = vmatpush1.bf16.msra.mxu0 0
    %342 = vmatprep.subr.bf16.mxu0 0
    %343 = vmatpush1.bf16.msra.mxu0 0
    %344 = vmatprep.mubr.bf16.mxu0 0
    %345 = vmatmul.mubr.bf16.gmra.mrb[0].mxu0 %v306
    %v346 = vpop.f32.mrb[0].mxu0
    %v347 = vadd.f32 0.0, %v346
    %v348 = vpop.f32.mrb[0].mxu0
    %v349 = vpop.f32.mrb[0].mxu0
    %v350 = vpop.f32.mrb[0].mxu0
    %351 = vdwg.mxu0
    %352 = vrot.lane.b32.xlu0 %v240, 112
    %v353 = vpop.permute.xlu0 %352
    %354 = vrot.lane.b32.xlu0 %v240, 48
    %v355 = vpop.permute.xlu0 %354
    %v357 = vsel %vm245, %v353, 0
    %v360 = vsel %vm245, %v355, 0
    %362 = vmatprep.subr.bf16.mxu0 0
    %363 = vmatpush1.bf16.xpose.msra.mxu0 %v360
    %364 = vmatprep.subr.bf16.mxu0 0
    %365 = vmatpush1.bf16.xpose.msra.mxu0 0
    %366 = vmatprep.subr.bf16.mxu0 0
    %367 = vmatpush1.bf16.xpose.msra.mxu0 0
    %368 = vmatprep.subr.bf16.mxu0 0
    %369 = vmatpush1.bf16.xpose.msra.mxu0 0
    %370 = vmatprep.subr.bf16.mxu0 0
    %371 = vmatpush1.bf16.xpose.msra.mxu0 0
    %372 = vmatprep.subr.bf16.mxu0 0
    %373 = vmatpush1.bf16.xpose.msra.mxu0 0
    %374 = vmatprep.subr.bf16.mxu0 0
    %375 = vmatpush1.bf16.xpose.msra.mxu0 0
    %376 = vmatprep.subr.bf16.mxu0 0
    %377 = vmatpush1.bf16.xpose.msra.mxu0 0
    %378 = vmatprep.subr.bf16.mxu0 0
    %379 = vmatpush1.bf16.xpose.msra.mxu0 0
    %380 = vmatprep.subr.bf16.mxu0 0
    %381 = vmatpush1.bf16.xpose.msra.mxu0 0
    %382 = vmatprep.subr.bf16.mxu0 0
    %383 = vmatpush1.bf16.xpose.msra.mxu0 0
    %384 = vmatprep.subr.bf16.mxu0 0
    %385 = vmatpush1.bf16.xpose.msra.mxu0 0
    %386 = vmatprep.subr.bf16.mxu0 0
    %387 = vmatpush1.bf16.xpose.msra.mxu0 0
    %388 = vmatprep.subr.bf16.mxu0 0
    %389 = vmatpush1.bf16.xpose.msra.mxu0 0
    %390 = vmatprep.subr.bf16.mxu0 0
    %391 = vmatpush1.bf16.xpose.msra.mxu0 0
    %392 = vmatprep.subr.bf16.mxu0 0
    %393 = vmatpush1.bf16.xpose.msra.mxu0 0
    %394 = vmatprep.mubr.bf16.mxu0 0
    %395 = vmatmul.mubr.bf16.gmra.mrb[0].mxu0 %v357
    %v396 = vpop.f32.mrb[0].mxu0
    %v397 = vadd.f32 %v123, %v396
    %v398 = vpop.f32.mrb[0].mxu0
    %v399 = vpop.f32.mrb[0].mxu0
    %v400 = vpop.f32.mrb[0].mxu0
    %401 = vdwg.mxu0
    %v402 = vsel %vm292, %v397, -inf
    %403 = vmax.xlane.f32.xlu0 %v402
    %v404 = vpop.xlane.xlu0 %403
    %v405 = vsub.f32 %v397, %v404
    %v406 = vmul.f32 %v405, 1.442695
    %v407 = vpow.pop %v406
    %v408 = vsel %vm292, %v407, 0.0
    %409 = vadd.xlane.f32.xlu0 %v408
    %v410 = vpop.xlane.xlu0 %409
    %v411 = vrcp.pop %v410
    %v412 = vmul.f32 %v407, %v411
    %v413 = vpack.c.bf16 %v412, %v412
    %415 = vrot.lane.b32.xlu0 %v241, 112
    %v416 = vpop.permute.xlu0 %415
    %v418 = vsel %vm292, %v413, 0
    %v421 = vsel %vm308, %v416, 0
    %423 = vmatprep.subr.bf16.mxu0 0
    %424 = vmatpush1.bf16.msra.mxu0 %v421
    %425 = vmatprep.subr.bf16.mxu0 0
    %426 = vmatpush1.bf16.msra.mxu0 0
    %427 = vmatprep.subr.bf16.mxu0 0
    %428 = vmatpush1.bf16.msra.mxu0 0
    %429 = vmatprep.subr.bf16.mxu0 0
    %430 = vmatpush1.bf16.msra.mxu0 0
    %431 = vmatprep.subr.bf16.mxu0 0
    %432 = vmatpush1.bf16.msra.mxu0 0
    %433 = vmatprep.subr.bf16.mxu0 0
    %434 = vmatpush1.bf16.msra.mxu0 0
    %435 = vmatprep.subr.bf16.mxu0 0
    %436 = vmatpush1.bf16.msra.mxu0 0
    %437 = vmatprep.subr.bf16.mxu0 0
    %438 = vmatpush1.bf16.msra.mxu0 0
    %439 = vmatprep.subr.bf16.mxu0 0
    %440 = vmatpush1.bf16.msra.mxu0 0
    %441 = vmatprep.subr.bf16.mxu0 0
    %442 = vmatpush1.bf16.msra.mxu0 0
    %443 = vmatprep.subr.bf16.mxu0 0
    %444 = vmatpush1.bf16.msra.mxu0 0
    %445 = vmatprep.subr.bf16.mxu0 0
    %446 = vmatpush1.bf16.msra.mxu0 0
    %447 = vmatprep.subr.bf16.mxu0 0
    %448 = vmatpush1.bf16.msra.mxu0 0
    %449 = vmatprep.subr.bf16.mxu0 0
    %450 = vmatpush1.bf16.msra.mxu0 0
    %451 = vmatprep.subr.bf16.mxu0 0
    %452 = vmatpush1.bf16.msra.mxu0 0
    %453 = vmatprep.subr.bf16.mxu0 0
    %454 = vmatpush1.bf16.msra.mxu0 0
    %455 = vmatprep.mubr.bf16.mxu0 0
    %456 = vmatmul.mubr.bf16.gmra.mrb[0].mxu0 %v418
    %v457 = vpop.f32.mrb[0].mxu0
    %v458 = vadd.f32 0.0, %v457
    %v459 = vpop.f32.mrb[0].mxu0
    %v460 = vpop.f32.mrb[0].mxu0
    %v461 = vpop.f32.mrb[0].mxu0
    %462 = vdwg.mxu0
    %463 = vrot.lane.b32.xlu0 %v240, 96
    %v464 = vpop.permute.xlu0 %463
    %465 = vrot.lane.b32.xlu0 %v240, 32
    %v466 = vpop.permute.xlu0 %465
    %v468 = vsel %vm245, %v464, 0
    %v471 = vsel %vm245, %v466, 0
    %473 = vmatprep.subr.bf16.mxu0 0
    %474 = vmatpush1.bf16.xpose.msra.mxu0 %v471
    %475 = vmatprep.subr.bf16.mxu0 0
    %476 = vmatpush1.bf16.xpose.msra.mxu0 0
    %477 = vmatprep.subr.bf16.mxu0 0
    %478 = vmatpush1.bf16.xpose.msra.mxu0 0
    %479 = vmatprep.subr.bf16.mxu0 0
    %480 = vmatpush1.bf16.xpose.msra.mxu0 0
    %481 = vmatprep.subr.bf16.mxu0 0
    %482 = vmatpush1.bf16.xpose.msra.mxu0 0
    %483 = vmatprep.subr.bf16.mxu0 0
    %484 = vmatpush1.bf16.xpose.msra.mxu0 0
    %485 = vmatprep.subr.bf16.mxu0 0
    %486 = vmatpush1.bf16.xpose.msra.mxu0 0
    %487 = vmatprep.subr.bf16.mxu0 0
    %488 = vmatpush1.bf16.xpose.msra.mxu0 0
    %489 = vmatprep.subr.bf16.mxu0 0
    %490 = vmatpush1.bf16.xpose.msra.mxu0 0
    %491 = vmatprep.subr.bf16.mxu0 0
    %492 = vmatpush1.bf16.xpose.msra.mxu0 0
    %493 = vmatprep.subr.bf16.mxu0 0
    %494 = vmatpush1.bf16.xpose.msra.mxu0 0
    %495 = vmatprep.subr.bf16.mxu0 0
    %496 = vmatpush1.bf16.xpose.msra.mxu0 0
    %497 = vmatprep.subr.bf16.mxu0 0
    %498 = vmatpush1.bf16.xpose.msra.mxu0 0
    %499 = vmatprep.subr.bf16.mxu0 0
    %500 = vmatpush1.bf16.xpose.msra.mxu0 0
    %501 = vmatprep.subr.bf16.mxu0 0
    %502 = vmatpush1.bf16.xpose.msra.mxu0 0
    %503 = vmatprep.subr.bf16.mxu0 0
    %504 = vmatpush1.bf16.xpose.msra.mxu0 0
    %505 = vmatprep.mubr.bf16.mxu0 0
    %506 = vmatmul.mubr.bf16.gmra.mrb[0].mxu0 %v468
    %v507 = vpop.f32.mrb[0].mxu0
    %v508 = vadd.f32 %v123, %v507
    %v509 = vpop.f32.mrb[0].mxu0
    %v510 = vpop.f32.mrb[0].mxu0
    %v511 = vpop.f32.mrb[0].mxu0
    %512 = vdwg.mxu0
    %v513 = vsel %vm292, %v508, -inf
    %514 = vmax.xlane.f32.xlu0 %v513
    %v515 = vpop.xlane.xlu0 %514
    %v516 = vsub.f32 %v508, %v515
    %v517 = vmul.f32 %v516, 1.442695
    %v518 = vpow.pop %v517
    %v519 = vsel %vm292, %v518, 0.0
    %520 = vadd.xlane.f32.xlu0 %v519
    %v521 = vpop.xlane.xlu0 %520
    %v522 = vrcp.pop %v521
    %v523 = vmul.f32 %v518, %v522
    %v524 = vpack.c.bf16 %v523, %v523
    %525 = vrot.lane.b32.xlu0 %v241, 96
    %v526 = vpop.permute.xlu0 %525
    %v528 = vsel %vm292, %v524, 0
    %v531 = vsel %vm308, %v526, 0
    %533 = vmatprep.subr.bf16.mxu0 0
    %534 = vmatpush1.bf16.msra.mxu0 %v531
    %535 = vmatprep.subr.bf16.mxu0 0
    %536 = vmatpush1.bf16.msra.mxu0 0
    %537 = vmatprep.subr.bf16.mxu0 0
    %538 = vmatpush1.bf16.msra.mxu0 0
    %539 = vmatprep.subr.bf16.mxu0 0
    %540 = vmatpush1.bf16.msra.mxu0 0
    %541 = vmatprep.subr.bf16.mxu0 0
    %542 = vmatpush1.bf16.msra.mxu0 0
    %543 = vmatprep.subr.bf16.mxu0 0
    %544 = vmatpush1.bf16.msra.mxu0 0
    %545 = vmatprep.subr.bf16.mxu0 0
    %546 = vmatpush1.bf16.msra.mxu0 0
    %547 = vmatprep.subr.bf16.mxu0 0
    %548 = vmatpush1.bf16.msra.mxu0 0
    %549 = vmatprep.subr.bf16.mxu0 0
    %550 = vmatpush1.bf16.msra.mxu0 0
    %551 = vmatprep.subr.bf16.mxu0 0
    %552 = vmatpush1.bf16.msra.mxu0 0
    %553 = vmatprep.subr.bf16.mxu0 0
    %554 = vmatpush1.bf16.msra.mxu0 0
    %555 = vmatprep.subr.bf16.mxu0 0
    %556 = vmatpush1.bf16.msra.mxu0 0
    %557 = vmatprep.subr.bf16.mxu0 0
    %558 = vmatpush1.bf16.msra.mxu0 0
    %559 = vmatprep.subr.bf16.mxu0 0
    %560 = vmatpush1.bf16.msra.mxu0 0
    %561 = vmatprep.subr.bf16.mxu0 0
    %562 = vmatpush1.bf16.msra.mxu0 0
    %563 = vmatprep.subr.bf16.mxu0 0
    %564 = vmatpush1.bf16.msra.mxu0 0
    %565 = vmatprep.mubr.bf16.mxu0 0
    %566 = vmatmul.mubr.bf16.gmra.mrb[0].mxu0 %v528
    %v567 = vpop.f32.mrb[0].mxu0
    %v568 = vadd.f32 0.0, %v567
    %v569 = vpop.f32.mrb[0].mxu0
    %v570 = vpop.f32.mrb[0].mxu0
    %v571 = vpop.f32.mrb[0].mxu0
    %572 = vdwg.mxu0
    %573 = vrot.lane.b32.xlu0 %v240, 80
    %v574 = vpop.permute.xlu0 %573
    %575 = vrot.lane.b32.xlu0 %v240, 16
    %v576 = vpop.permute.xlu0 %575
    %v578 = vsel %vm245, %v574, 0
    %v581 = vsel %vm245, %v576, 0
    %583 = vmatprep.subr.bf16.mxu0 0
    %584 = vmatpush1.bf16.xpose.msra.mxu0 %v581
    %585 = vmatprep.subr.bf16.mxu0 0
    %586 = vmatpush1.bf16.xpose.msra.mxu0 0
    %587 = vmatprep.subr.bf16.mxu0 0
    %588 = vmatpush1.bf16.xpose.msra.mxu0 0
    %589 = vmatprep.subr.bf16.mxu0 0
    %590 = vmatpush1.bf16.xpose.msra.mxu0 0
    %591 = vmatprep.subr.bf16.mxu0 0
    %592 = vmatpush1.bf16.xpose.msra.mxu0 0
    %593 = vmatprep.subr.bf16.mxu0 0
    %594 = vmatpush1.bf16.xpose.msra.mxu0 0
    %595 = vmatprep.subr.bf16.mxu0 0
    %596 = vmatpush1.bf16.xpose.msra.mxu0 0
    %597 = vmatprep.subr.bf16.mxu0 0
    %598 = vmatpush1.bf16.xpose.msra.mxu0 0
    %599 = vmatprep.subr.bf16.mxu0 0
    %600 = vmatpush1.bf16.xpose.msra.mxu0 0
    %601 = vmatprep.subr.bf16.mxu0 0
    %602 = vmatpush1.bf16.xpose.msra.mxu0 0
    %603 = vmatprep.subr.bf16.mxu0 0
    %604 = vmatpush1.bf16.xpose.msra.mxu0 0
    %605 = vmatprep.subr.bf16.mxu0 0
    %606 = vmatpush1.bf16.xpose.msra.mxu0 0
    %607 = vmatprep.subr.bf16.mxu0 0
    %608 = vmatpush1.bf16.xpose.msra.mxu0 0
    %609 = vmatprep.subr.bf16.mxu0 0
    %610 = vmatpush1.bf16.xpose.msra.mxu0 0
    %611 = vmatprep.subr.bf16.mxu0 0
    %612 = vmatpush1.bf16.xpose.msra.mxu0 0
    %613 = vmatprep.subr.bf16.mxu0 0
    %614 = vmatpush1.bf16.xpose.msra.mxu0 0
    %615 = vmatprep.mubr.bf16.mxu0 0
    %616 = vmatmul.mubr.bf16.gmra.mrb[0].mxu0 %v578
    %v617 = vpop.f32.mrb[0].mxu0
    %v618 = vadd.f32 %v123, %v617
    %v619 = vpop.f32.mrb[0].mxu0
    %v620 = vpop.f32.mrb[0].mxu0
    %v621 = vpop.f32.mrb[0].mxu0
    %622 = vdwg.mxu0
    %v623 = vsel %vm292, %v618, -inf
    %624 = vmax.xlane.f32.xlu0 %v623
    %v625 = vpop.xlane.xlu0 %624
    %v626 = vsub.f32 %v618, %v625
    %v627 = vmul.f32 %v626, 1.442695
    %v628 = vpow.pop %v627
    %v629 = vsel %vm292, %v628, 0.0
    %630 = vadd.xlane.f32.xlu0 %v629
    %v631 = vpop.xlane.xlu0 %630
    %v632 = vrcp.pop %v631
    %v633 = vmul.f32 %v628, %v632
    %v634 = vpack.c.bf16 %v633, %v633
    %635 = vrot.lane.b32.xlu0 %v241, 80
    %v636 = vpop.permute.xlu0 %635
    %v638 = vsel %vm292, %v634, 0
    %v641 = vsel %vm308, %v636, 0
    %643 = vmatprep.subr.bf16.mxu0 0
    %644 = vmatpush1.bf16.msra.mxu0 %v641
    %645 = vmatprep.subr.bf16.mxu0 0
    %646 = vmatpush1.bf16.msra.mxu0 0
    %647 = vmatprep.subr.bf16.mxu0 0
    %648 = vmatpush1.bf16.msra.mxu0 0
    %649 = vmatprep.subr.bf16.mxu0 0
    %650 = vmatpush1.bf16.msra.mxu0 0
    %651 = vmatprep.subr.bf16.mxu0 0
    %652 = vmatpush1.bf16.msra.mxu0 0
    %653 = vmatprep.subr.bf16.mxu0 0
    %654 = vmatpush1.bf16.msra.mxu0 0
    %655 = vmatprep.subr.bf16.mxu0 0
    %656 = vmatpush1.bf16.msra.mxu0 0
    %657 = vmatprep.subr.bf16.mxu0 0
    %658 = vmatpush1.bf16.msra.mxu0 0
    %659 = vmatprep.subr.bf16.mxu0 0
    %660 = vmatpush1.bf16.msra.mxu0 0
    %661 = vmatprep.subr.bf16.mxu0 0
    %662 = vmatpush1.bf16.msra.mxu0 0
    %663 = vmatprep.subr.bf16.mxu0 0
    %664 = vmatpush1.bf16.msra.mxu0 0
    %665 = vmatprep.subr.bf16.mxu0 0
    %666 = vmatpush1.bf16.msra.mxu0 0
    %667 = vmatprep.subr.bf16.mxu0 0
    %668 = vmatpush1.bf16.msra.mxu0 0
    %669 = vmatprep.subr.bf16.mxu0 0
    %670 = vmatpush1.bf16.msra.mxu0 0
    %671 = vmatprep.subr.bf16.mxu0 0
    %672 = vmatpush1.bf16.msra.mxu0 0
    %673 = vmatprep.subr.bf16.mxu0 0
    %674 = vmatpush1.bf16.msra.mxu0 0
    %675 = vmatprep.mubr.bf16.mxu0 0
    %676 = vmatmul.mubr.bf16.gmra.mrb[0].mxu0 %v638
    %v677 = vpop.f32.mrb[0].mxu0
    %v678 = vadd.f32 0.0, %v677
    %v679 = vpop.f32.mrb[0].mxu0
    %v680 = vpop.f32.mrb[0].mxu0
    %v681 = vpop.f32.mrb[0].mxu0
    %682 = vdwg.mxu0
    %684 = vrot.lane.b32.xlu0 %v458, 16
    %v685 = vpop.permute.xlu0 %684
    %688 = vrot.lane.b32.xlu0 %v568, 32
    %v689 = vpop.permute.xlu0 %688
    %692 = vrot.lane.b32.xlu0 %v678, 48
    %v693 = vpop.permute.xlu0 %692
    %v695 = vsel %vm245, %v347, %v685
    %vm696 = vcmask 261120
    %v697 = vsel %vm696, %v695, %v689
    %vm698 = vcmask 392192
    %v699 = vsel %vm698, %v697, %v693
    %v700 = vrot.slane %v240, 4
    %701 = vrot.lane.b32.xlu0 %v700, 64
    %v702 = vpop.permute.xlu0 %701
    %v704 = vsel %vm245, %v700, 0
    %v707 = vsel %vm245, %v702, 0
    %709 = vmatprep.subr.bf16.mxu0 0
    %710 = vmatpush1.bf16.xpose.msra.mxu0 %v707
    %711 = vmatprep.subr.bf16.mxu0 0
    %712 = vmatpush1.bf16.xpose.msra.mxu0 0
    %713 = vmatprep.subr.bf16.mxu0 0
    %714 = vmatpush1.bf16.xpose.msra.mxu0 0
    %715 = vmatprep.subr.bf16.mxu0 0
    %716 = vmatpush1.bf16.xpose.msra.mxu0 0
    %717 = vmatprep.subr.bf16.mxu0 0
    %718 = vmatpush1.bf16.xpose.msra.mxu0 0
    %719 = vmatprep.subr.bf16.mxu0 0
    %720 = vmatpush1.bf16.xpose.msra.mxu0 0
    %721 = vmatprep.subr.bf16.mxu0 0
    %722 = vmatpush1.bf16.xpose.msra.mxu0 0
    %723 = vmatprep.subr.bf16.mxu0 0
    %724 = vmatpush1.bf16.xpose.msra.mxu0 0
    %725 = vmatprep.subr.bf16.mxu0 0
    %726 = vmatpush1.bf16.xpose.msra.mxu0 0
    %727 = vmatprep.subr.bf16.mxu0 0
    %728 = vmatpush1.bf16.xpose.msra.mxu0 0
    %729 = vmatprep.subr.bf16.mxu0 0
    %730 = vmatpush1.bf16.xpose.msra.mxu0 0
    %731 = vmatprep.subr.bf16.mxu0 0
    %732 = vmatpush1.bf16.xpose.msra.mxu0 0
    %733 = vmatprep.subr.bf16.mxu0 0
    %734 = vmatpush1.bf16.xpose.msra.mxu0 0
    %735 = vmatprep.subr.bf16.mxu0 0
    %736 = vmatpush1.bf16.xpose.msra.mxu0 0
    %737 = vmatprep.subr.bf16.mxu0 0
    %738 = vmatpush1.bf16.xpose.msra.mxu0 0
    %739 = vmatprep.subr.bf16.mxu0 0
    %740 = vmatpush1.bf16.xpose.msra.mxu0 0
    %741 = vmatprep.mubr.bf16.mxu0 0
    %742 = vmatmul.mubr.bf16.gmra.mrb[0].mxu0 %v704
    %v743 = vpop.f32.mrb[0].mxu0
    %v744 = vadd.f32 %v131, %v743
    %v745 = vpop.f32.mrb[0].mxu0
    %v746 = vpop.f32.mrb[0].mxu0
    %v747 = vpop.f32.mrb[0].mxu0
    %748 = vdwg.mxu0
    %v749 = vsel %vm292, %v744, -inf
    %750 = vmax.xlane.f32.xlu0 %v749
    %v751 = vpop.xlane.xlu0 %750
    %v752 = vsub.f32 %v744, %v751
    %v753 = vmul.f32 %v752, 1.442695
    %v754 = vpow.pop %v753
    %v755 = vsel %vm292, %v754, 0.0
    %756 = vadd.xlane.f32.xlu0 %v755
    %v757 = vpop.xlane.xlu0 %756
    %v758 = vrcp.pop %v757
    %v759 = vmul.f32 %v754, %v758
    %v760 = vpack.c.bf16 %v759, %v759
    %v761 = vrot.slane %v241, 4
    %v763 = vsel %vm292, %v760, 0
    %v766 = vsel %vm308, %v761, 0
    %768 = vmatprep.subr.bf16.mxu0 0
    %769 = vmatpush1.bf16.msra.mxu0 %v766
    %770 = vmatprep.subr.bf16.mxu0 0
    %771 = vmatpush1.bf16.msra.mxu0 0
    %772 = vmatprep.subr.bf16.mxu0 0
    %773 = vmatpush1.bf16.msra.mxu0 0
    %774 = vmatprep.subr.bf16.mxu0 0
    %775 = vmatpush1.bf16.msra.mxu0 0
    %776 = vmatprep.subr.bf16.mxu0 0
    %777 = vmatpush1.bf16.msra.mxu0 0
    %778 = vmatprep.subr.bf16.mxu0 0
    %779 = vmatpush1.bf16.msra.mxu0 0
    %780 = vmatprep.subr.bf16.mxu0 0
    %781 = vmatpush1.bf16.msra.mxu0 0
    %782 = vmatprep.subr.bf16.mxu0 0
    %783 = vmatpush1.bf16.msra.mxu0 0
    %784 = vmatprep.subr.bf16.mxu0 0
    %785 = vmatpush1.bf16.msra.mxu0 0
    %786 = vmatprep.subr.bf16.mxu0 0
    %787 = vmatpush1.bf16.msra.mxu0 0
    %788 = vmatprep.subr.bf16.mxu0 0
    %789 = vmatpush1.bf16.msra.mxu0 0
    %790 = vmatprep.subr.bf16.mxu0 0
    %791 = vmatpush1.bf16.msra.mxu0 0
    %792 = vmatprep.subr.bf16.mxu0 0
    %793 = vmatpush1.bf16.msra.mxu0 0
    %794 = vmatprep.subr.bf16.mxu0 0
    %795 = vmatpush1.bf16.msra.mxu0 0
    %796 = vmatprep.subr.bf16.mxu0 0
    %797 = vmatpush1.bf16.msra.mxu0 0
    %798 = vmatprep.subr.bf16.mxu0 0
    %799 = vmatpush1.bf16.msra.mxu0 0
    %800 = vmatprep.mubr.bf16.mxu0 0
    %801 = vmatmul.mubr.bf16.gmra.mrb[0].mxu0 %v763
    %v802 = vpop.f32.mrb[0].mxu0
    %v803 = vadd.f32 0.0, %v802
    %v804 = vpop.f32.mrb[0].mxu0
    %v805 = vpop.f32.mrb[0].mxu0
    %v806 = vpop.f32.mrb[0].mxu0
    %807 = vdwg.mxu0
    %808 = vrot.lane.b32.xlu0 %v700, 112
    %v809 = vpop.permute.xlu0 %808
    %810 = vrot.lane.b32.xlu0 %v700, 48
    %v811 = vpop.permute.xlu0 %810
    %v813 = vsel %vm245, %v809, 0
    %v816 = vsel %vm245, %v811, 0
    %818 = vmatprep.subr.bf16.mxu0 0
    %819 = vmatpush1.bf16.xpose.msra.mxu0 %v816
    %820 = vmatprep.subr.bf16.mxu0 0
    %821 = vmatpush1.bf16.xpose.msra.mxu0 0
    %822 = vmatprep.subr.bf16.mxu0 0
    %823 = vmatpush1.bf16.xpose.msra.mxu0 0
    %824 = vmatprep.subr.bf16.mxu0 0
    %825 = vmatpush1.bf16.xpose.msra.mxu0 0
    %826 = vmatprep.subr.bf16.mxu0 0
    %827 = vmatpush1.bf16.xpose.msra.mxu0 0
    %828 = vmatprep.subr.bf16.mxu0 0
    %829 = vmatpush1.bf16.xpose.msra.mxu0 0
    %830 = vmatprep.subr.bf16.mxu0 0
    %831 = vmatpush1.bf16.xpose.msra.mxu0 0
    %832 = vmatprep.subr.bf16.mxu0 0
    %833 = vmatpush1.bf16.xpose.msra.mxu0 0
    %834 = vmatprep.subr.bf16.mxu0 0
    %835 = vmatpush1.bf16.xpose.msra.mxu0 0
    %836 = vmatprep.subr.bf16.mxu0 0
    %837 = vmatpush1.bf16.xpose.msra.mxu0 0
    %838 = vmatprep.subr.bf16.mxu0 0
    %839 = vmatpush1.bf16.xpose.msra.mxu0 0
    %840 = vmatprep.subr.bf16.mxu0 0
    %841 = vmatpush1.bf16.xpose.msra.mxu0 0
    %842 = vmatprep.subr.bf16.mxu0 0
    %843 = vmatpush1.bf16.xpose.msra.mxu0 0
    %844 = vmatprep.subr.bf16.mxu0 0
    %845 = vmatpush1.bf16.xpose.msra.mxu0 0
    %846 = vmatprep.subr.bf16.mxu0 0
    %847 = vmatpush1.bf16.xpose.msra.mxu0 0
    %848 = vmatprep.subr.bf16.mxu0 0
    %849 = vmatpush1.bf16.xpose.msra.mxu0 0
    %850 = vmatprep.mubr.bf16.mxu0 0
    %851 = vmatmul.mubr.bf16.gmra.mrb[0].mxu0 %v813
    %v852 = vpop.f32.mrb[0].mxu0
    %v853 = vadd.f32 %v131, %v852
    %v854 = vpop.f32.mrb[0].mxu0
    %v855 = vpop.f32.mrb[0].mxu0
    %v856 = vpop.f32.mrb[0].mxu0
    %857 = vdwg.mxu0
    %v858 = vsel %vm292, %v853, -inf
    %859 = vmax.xlane.f32.xlu0 %v858
    %v860 = vpop.xlane.xlu0 %859
    %v861 = vsub.f32 %v853, %v860
    %v862 = vmul.f32 %v861, 1.442695
    %v863 = vpow.pop %v862
    %v864 = vsel %vm292, %v863, 0.0
    %865 = vadd.xlane.f32.xlu0 %v864
    %v866 = vpop.xlane.xlu0 %865
    %v867 = vrcp.pop %v866
    %v868 = vmul.f32 %v863, %v867
    %v869 = vpack.c.bf16 %v868, %v868
    %870 = vrot.lane.b32.xlu0 %v761, 112
    %v871 = vpop.permute.xlu0 %870
    %v873 = vsel %vm292, %v869, 0
    %v876 = vsel %vm308, %v871, 0
    %878 = vmatprep.subr.bf16.mxu0 0
    %879 = vmatpush1.bf16.msra.mxu0 %v876
    %880 = vmatprep.subr.bf16.mxu0 0
    %881 = vmatpush1.bf16.msra.mxu0 0
    %882 = vmatprep.subr.bf16.mxu0 0
    %883 = vmatpush1.bf16.msra.mxu0 0
    %884 = vmatprep.subr.bf16.mxu0 0
    %885 = vmatpush1.bf16.msra.mxu0 0
    %886 = vmatprep.subr.bf16.mxu0 0
    %887 = vmatpush1.bf16.msra.mxu0 0
    %888 = vmatprep.subr.bf16.mxu0 0
    %889 = vmatpush1.bf16.msra.mxu0 0
    %890 = vmatprep.subr.bf16.mxu0 0
    %891 = vmatpush1.bf16.msra.mxu0 0
    %892 = vmatprep.subr.bf16.mxu0 0
    %893 = vmatpush1.bf16.msra.mxu0 0
    %894 = vmatprep.subr.bf16.mxu0 0
    %895 = vmatpush1.bf16.msra.mxu0 0
    %896 = vmatprep.subr.bf16.mxu0 0
    %897 = vmatpush1.bf16.msra.mxu0 0
    %898 = vmatprep.subr.bf16.mxu0 0
    %899 = vmatpush1.bf16.msra.mxu0 0
    %900 = vmatprep.subr.bf16.mxu0 0
    %901 = vmatpush1.bf16.msra.mxu0 0
    %902 = vmatprep.subr.bf16.mxu0 0
    %903 = vmatpush1.bf16.msra.mxu0 0
    %904 = vmatprep.subr.bf16.mxu0 0
    %905 = vmatpush1.bf16.msra.mxu0 0
    %906 = vmatprep.subr.bf16.mxu0 0
    %907 = vmatpush1.bf16.msra.mxu0 0
    %908 = vmatprep.subr.bf16.mxu0 0
    %909 = vmatpush1.bf16.msra.mxu0 0
    %910 = vmatprep.mubr.bf16.mxu0 0
    %911 = vmatmul.mubr.bf16.gmra.mrb[0].mxu0 %v873
    %v912 = vpop.f32.mrb[0].mxu0
    %v913 = vadd.f32 0.0, %v912
    %v914 = vpop.f32.mrb[0].mxu0
    %v915 = vpop.f32.mrb[0].mxu0
    %v916 = vpop.f32.mrb[0].mxu0
    %917 = vdwg.mxu0
    %918 = vrot.lane.b32.xlu0 %v700, 96
    %v919 = vpop.permute.xlu0 %918
    %920 = vrot.lane.b32.xlu0 %v700, 32
    %v921 = vpop.permute.xlu0 %920
    %v923 = vsel %vm245, %v919, 0
    %v926 = vsel %vm245, %v921, 0
    %928 = vmatprep.subr.bf16.mxu0 0
    %929 = vmatpush1.bf16.xpose.msra.mxu0 %v926
    %930 = vmatprep.subr.bf16.mxu0 0
    %931 = vmatpush1.bf16.xpose.msra.mxu0 0
    %932 = vmatprep.subr.bf16.mxu0 0
    %933 = vmatpush1.bf16.xpose.msra.mxu0 0
    %934 = vmatprep.subr.bf16.mxu0 0
    %935 = vmatpush1.bf16.xpose.msra.mxu0 0
    %936 = vmatprep.subr.bf16.mxu0 0
    %937 = vmatpush1.bf16.xpose.msra.mxu0 0
    %938 = vmatprep.subr.bf16.mxu0 0
    %939 = vmatpush1.bf16.xpose.msra.mxu0 0
    %940 = vmatprep.subr.bf16.mxu0 0
    %941 = vmatpush1.bf16.xpose.msra.mxu0 0
    %942 = vmatprep.subr.bf16.mxu0 0
    %943 = vmatpush1.bf16.xpose.msra.mxu0 0
    %944 = vmatprep.subr.bf16.mxu0 0
    %945 = vmatpush1.bf16.xpose.msra.mxu0 0
    %946 = vmatprep.subr.bf16.mxu0 0
    %947 = vmatpush1.bf16.xpose.msra.mxu0 0
    %948 = vmatprep.subr.bf16.mxu0 0
    %949 = vmatpush1.bf16.xpose.msra.mxu0 0
    %950 = vmatprep.subr.bf16.mxu0 0
    %951 = vmatpush1.bf16.xpose.msra.mxu0 0
    %952 = vmatprep.subr.bf16.mxu0 0
    %953 = vmatpush1.bf16.xpose.msra.mxu0 0
    %954 = vmatprep.subr.bf16.mxu0 0
    %955 = vmatpush1.bf16.xpose.msra.mxu0 0
    %956 = vmatprep.subr.bf16.mxu0 0
    %957 = vmatpush1.bf16.xpose.msra.mxu0 0
    %958 = vmatprep.subr.bf16.mxu0 0
    %959 = vmatpush1.bf16.xpose.msra.mxu0 0
    %960 = vmatprep.mubr.bf16.mxu0 0
    %961 = vmatmul.mubr.bf16.gmra.mrb[0].mxu0 %v923
    %v962 = vpop.f32.mrb[0].mxu0
    %v963 = vadd.f32 %v131, %v962
    %v964 = vpop.f32.mrb[0].mxu0
    %v965 = vpop.f32.mrb[0].mxu0
    %v966 = vpop.f32.mrb[0].mxu0
    %967 = vdwg.mxu0
    %v968 = vsel %vm292, %v963, -inf
    %969 = vmax.xlane.f32.xlu0 %v968
    %v970 = vpop.xlane.xlu0 %969
    %v971 = vsub.f32 %v963, %v970
    %v972 = vmul.f32 %v971, 1.442695
    %v973 = vpow.pop %v972
    %v974 = vsel %vm292, %v973, 0.0
    %975 = vadd.xlane.f32.xlu0 %v974
    %v976 = vpop.xlane.xlu0 %975
    %v977 = vrcp.pop %v976
    %v978 = vmul.f32 %v973, %v977
    %v979 = vpack.c.bf16 %v978, %v978
    %980 = vrot.lane.b32.xlu0 %v761, 96
    %v981 = vpop.permute.xlu0 %980
    %v983 = vsel %vm292, %v979, 0
    %v986 = vsel %vm308, %v981, 0
    %988 = vmatprep.subr.bf16.mxu0 0
    %989 = vmatpush1.bf16.msra.mxu0 %v986
    %990 = vmatprep.subr.bf16.mxu0 0
    %991 = vmatpush1.bf16.msra.mxu0 0
    %992 = vmatprep.subr.bf16.mxu0 0
    %993 = vmatpush1.bf16.msra.mxu0 0
    %994 = vmatprep.subr.bf16.mxu0 0
    %995 = vmatpush1.bf16.msra.mxu0 0
    %996 = vmatprep.subr.bf16.mxu0 0
    %997 = vmatpush1.bf16.msra.mxu0 0
    %998 = vmatprep.subr.bf16.mxu0 0
    %999 = vmatpush1.bf16.msra.mxu0 0
    %1000 = vmatprep.subr.bf16.mxu0 0
    %1001 = vmatpush1.bf16.msra.mxu0 0
    %1002 = vmatprep.subr.bf16.mxu0 0
    %1003 = vmatpush1.bf16.msra.mxu0 0
    %1004 = vmatprep.subr.bf16.mxu0 0
    %1005 = vmatpush1.bf16.msra.mxu0 0
    %1006 = vmatprep.subr.bf16.mxu0 0
    %1007 = vmatpush1.bf16.msra.mxu0 0
    %1008 = vmatprep.subr.bf16.mxu0 0
    %1009 = vmatpush1.bf16.msra.mxu0 0
    %1010 = vmatprep.subr.bf16.mxu0 0
    %1011 = vmatpush1.bf16.msra.mxu0 0
    %1012 = vmatprep.subr.bf16.mxu0 0
    %1013 = vmatpush1.bf16.msra.mxu0 0
    %1014 = vmatprep.subr.bf16.mxu0 0
    %1015 = vmatpush1.bf16.msra.mxu0 0
    %1016 = vmatprep.subr.bf16.mxu0 0
    %1017 = vmatpush1.bf16.msra.mxu0 0
    %1018 = vmatprep.subr.bf16.mxu0 0
    %1019 = vmatpush1.bf16.msra.mxu0 0
    %1020 = vmatprep.mubr.bf16.mxu0 0
    %1021 = vmatmul.mubr.bf16.gmra.mrb[0].mxu0 %v983
    %v1022 = vpop.f32.mrb[0].mxu0
    %v1023 = vadd.f32 0.0, %v1022
    %v1024 = vpop.f32.mrb[0].mxu0
    %v1025 = vpop.f32.mrb[0].mxu0
    %v1026 = vpop.f32.mrb[0].mxu0
    %1027 = vdwg.mxu0
    %1028 = vrot.lane.b32.xlu0 %v700, 80
    %v1029 = vpop.permute.xlu0 %1028
    %1030 = vrot.lane.b32.xlu0 %v700, 16
    %v1031 = vpop.permute.xlu0 %1030
    %v1033 = vsel %vm245, %v1029, 0
    %v1036 = vsel %vm245, %v1031, 0
    %1038 = vmatprep.subr.bf16.mxu0 0
    %1039 = vmatpush1.bf16.xpose.msra.mxu0 %v1036
    %1040 = vmatprep.subr.bf16.mxu0 0
    %1041 = vmatpush1.bf16.xpose.msra.mxu0 0
    %1042 = vmatprep.subr.bf16.mxu0 0
    %1043 = vmatpush1.bf16.xpose.msra.mxu0 0
    %1044 = vmatprep.subr.bf16.mxu0 0
    %1045 = vmatpush1.bf16.xpose.msra.mxu0 0
    %1046 = vmatprep.subr.bf16.mxu0 0
    %1047 = vmatpush1.bf16.xpose.msra.mxu0 0
    %1048 = vmatprep.subr.bf16.mxu0 0
    %1049 = vmatpush1.bf16.xpose.msra.mxu0 0
    %1050 = vmatprep.subr.bf16.mxu0 0
    %1051 = vmatpush1.bf16.xpose.msra.mxu0 0
    %1052 = vmatprep.subr.bf16.mxu0 0
    %1053 = vmatpush1.bf16.xpose.msra.mxu0 0
    %1054 = vmatprep.subr.bf16.mxu0 0
    %1055 = vmatpush1.bf16.xpose.msra.mxu0 0
    %1056 = vmatprep.subr.bf16.mxu0 0
    %1057 = vmatpush1.bf16.xpose.msra.mxu0 0
    %1058 = vmatprep.subr.bf16.mxu0 0
    %1059 = vmatpush1.bf16.xpose.msra.mxu0 0
    %1060 = vmatprep.subr.bf16.mxu0 0
    %1061 = vmatpush1.bf16.xpose.msra.mxu0 0
    %1062 = vmatprep.subr.bf16.mxu0 0
    %1063 = vmatpush1.bf16.xpose.msra.mxu0 0
    %1064 = vmatprep.subr.bf16.mxu0 0
    %1065 = vmatpush1.bf16.xpose.msra.mxu0 0
    %1066 = vmatprep.subr.bf16.mxu0 0
    %1067 = vmatpush1.bf16.xpose.msra.mxu0 0
    %1068 = vmatprep.subr.bf16.mxu0 0
    %1069 = vmatpush1.bf16.xpose.msra.mxu0 0
    %1070 = vmatprep.mubr.bf16.mxu0 0
    %1071 = vmatmul.mubr.bf16.gmra.mrb[0].mxu0 %v1033
    %v1072 = vpop.f32.mrb[0].mxu0
    %v1073 = vadd.f32 %v131, %v1072
    %v1074 = vpop.f32.mrb[0].mxu0
    %v1075 = vpop.f32.mrb[0].mxu0
    %v1076 = vpop.f32.mrb[0].mxu0
    %1077 = vdwg.mxu0
    %v1078 = vsel %vm292, %v1073, -inf
    %1079 = vmax.xlane.f32.xlu0 %v1078
    %v1080 = vpop.xlane.xlu0 %1079
    %v1081 = vsub.f32 %v1073, %v1080
    %v1082 = vmul.f32 %v1081, 1.442695
    %v1083 = vpow.pop %v1082
    %v1084 = vsel %vm292, %v1083, 0.0
    %1085 = vadd.xlane.f32.xlu0 %v1084
    %v1086 = vpop.xlane.xlu0 %1085
    %v1087 = vrcp.pop %v1086
    %v1088 = vmul.f32 %v1083, %v1087
    %v1089 = vpack.c.bf16 %v1088, %v1088
    %1090 = vrot.lane.b32.xlu0 %v761, 80
    %v1091 = vpop.permute.xlu0 %1090
    %v1093 = vsel %vm292, %v1089, 0
    %v1096 = vsel %vm308, %v1091, 0
    %1098 = vmatprep.subr.bf16.mxu0 0
    %1099 = vmatpush1.bf16.msra.mxu0 %v1096
    %1100 = vmatprep.subr.bf16.mxu0 0
    %1101 = vmatpush1.bf16.msra.mxu0 0
    %1102 = vmatprep.subr.bf16.mxu0 0
    %1103 = vmatpush1.bf16.msra.mxu0 0
    %1104 = vmatprep.subr.bf16.mxu0 0
    %1105 = vmatpush1.bf16.msra.mxu0 0
    %1106 = vmatprep.subr.bf16.mxu0 0
    %1107 = vmatpush1.bf16.msra.mxu0 0
    %1108 = vmatprep.subr.bf16.mxu0 0
    %1109 = vmatpush1.bf16.msra.mxu0 0
    %1110 = vmatprep.subr.bf16.mxu0 0
    %1111 = vmatpush1.bf16.msra.mxu0 0
    %1112 = vmatprep.subr.bf16.mxu0 0
    %1113 = vmatpush1.bf16.msra.mxu0 0
    %1114 = vmatprep.subr.bf16.mxu0 0
    %1115 = vmatpush1.bf16.msra.mxu0 0
    %1116 = vmatprep.subr.bf16.mxu0 0
    %1117 = vmatpush1.bf16.msra.mxu0 0
    %1118 = vmatprep.subr.bf16.mxu0 0
    %1119 = vmatpush1.bf16.msra.mxu0 0
    %1120 = vmatprep.subr.bf16.mxu0 0
    %1121 = vmatpush1.bf16.msra.mxu0 0
    %1122 = vmatprep.subr.bf16.mxu0 0
    %1123 = vmatpush1.bf16.msra.mxu0 0
    %1124 = vmatprep.subr.bf16.mxu0 0
    %1125 = vmatpush1.bf16.msra.mxu0 0
    %1126 = vmatprep.subr.bf16.mxu0 0
    %1127 = vmatpush1.bf16.msra.mxu0 0
    %1128 = vmatprep.subr.bf16.mxu0 0
    %1129 = vmatpush1.bf16.msra.mxu0 0
    %1130 = vmatprep.mubr.bf16.mxu0 0
    %1131 = vmatmul.mubr.bf16.gmra.mrb[0].mxu0 %v1093
    %v1132 = vpop.f32.mrb[0].mxu0
    %v1133 = vadd.f32 0.0, %v1132
    %v1134 = vpop.f32.mrb[0].mxu0
    %v1135 = vpop.f32.mrb[0].mxu0
    %v1136 = vpop.f32.mrb[0].mxu0
    %1137 = vdwg.mxu0
    %1139 = vrot.lane.b32.xlu0 %v913, 16
    %v1140 = vpop.permute.xlu0 %1139
    %1143 = vrot.lane.b32.xlu0 %v1023, 32
    %v1144 = vpop.permute.xlu0 %1143
    %1147 = vrot.lane.b32.xlu0 %v1133, 48
    %v1148 = vpop.permute.xlu0 %1147
    %v1150 = vsel %vm245, %v803, %v1140
    %v1151 = vsel %vm696, %v1150, %v1144
    %v1152 = vsel %vm698, %v1151, %v1148
    %v1153 = vpack.c.bf16 %v1152, %v699
    %v1154 = vld [vmem:[%s6] sm:$0xf]
    %v1155 = vld [vmem:[%s6 + $0x4] sm:$0xf]
    %v1156 = vld [vmem:[%s6 + $0x8] sm:$0xf]
    %v1157 = vld [vmem:[%s6 + $0xc] sm:$0xf]
    %v1158 = vld [vmem:[%s6 + $0x10] sm:$0xf]
    %v1159 = vld [vmem:[%s6 + $0x14] sm:$0xf]
    %v1160 = vld [vmem:[%s6 + $0x18] sm:$0xf]
    %v1161 = vld [vmem:[%s6 + $0x1c] sm:$0xf]
    %v1162 = vld [vmem:[%s7] sm:$0x1]
    %v1164 = vlaneseq
    %v1165 = vshrl.u32 %v1164, 7
    %v1166 = vsub.s32 0, %v1165
    %v1167 = vrot.slane %v1162, %v1166
    %v1177 = vunpack.c.l.b16 %v1154
    %v1178 = vunpack.c.l.b16 %v1155
    %v1179 = vunpack.c.l.b16 %v1156
    %v1180 = vunpack.c.l.b16 %v1157
    %v1181 = vunpack.c.l.b16 %v1158
    %v1182 = vunpack.c.l.b16 %v1159
    %v1183 = vunpack.c.l.b16 %v1160
    %v1184 = vunpack.c.l.b16 %v1161
    %v1185 = vpack.c.b16 %v1178, %v1177
    %v1186 = vpack.c.b16 %v1180, %v1179
    %v1187 = vpack.c.b16 %v1182, %v1181
    %v1188 = vpack.c.b16 %v1184, %v1183
    %v1194 = vsel %vm74, %v1153, 0
    %1196 = vmatprep.subr.bf16.mxu0 0
    %1197 = vmatpush1.bf16.msra.mxu0 %v1185
    %1198 = vmatprep.subr.bf16.mxu0 0
    %1199 = vmatpush1.bf16.msra.mxu0 %v1186
    %1200 = vmatprep.subr.bf16.mxu0 0
    %1201 = vmatpush1.bf16.msra.mxu0 %v1187
    %1202 = vmatprep.subr.bf16.mxu0 0
    %1203 = vmatpush1.bf16.msra.mxu0 %v1188
    %1204 = vmatprep.subr.bf16.mxu0 0
    %1205 = vmatpush1.bf16.msra.mxu0 0
    %1206 = vmatprep.subr.bf16.mxu0 0
    %1207 = vmatpush1.bf16.msra.mxu0 0
    %1208 = vmatprep.subr.bf16.mxu0 0
    %1209 = vmatpush1.bf16.msra.mxu0 0
    %1210 = vmatprep.subr.bf16.mxu0 0
    %1211 = vmatpush1.bf16.msra.mxu0 0
    %1212 = vmatprep.subr.bf16.mxu0 0
    %1213 = vmatpush1.bf16.msra.mxu0 0
    %1214 = vmatprep.subr.bf16.mxu0 0
    %1215 = vmatpush1.bf16.msra.mxu0 0
    %1216 = vmatprep.subr.bf16.mxu0 0
    %1217 = vmatpush1.bf16.msra.mxu0 0
    %1218 = vmatprep.subr.bf16.mxu0 0
    %1219 = vmatpush1.bf16.msra.mxu0 0
    %1220 = vmatprep.subr.bf16.mxu0 0
    %1221 = vmatpush1.bf16.msra.mxu0 0
    %1222 = vmatprep.subr.bf16.mxu0 0
    %1223 = vmatpush1.bf16.msra.mxu0 0
    %1224 = vmatprep.subr.bf16.mxu0 0
    %1225 = vmatpush1.bf16.msra.mxu0 0
    %1226 = vmatprep.subr.bf16.mxu0 0
    %1227 = vmatpush1.bf16.msra.mxu0 0
    %1228 = vmatprep.mubr.bf16.mxu0 0
    %1229 = vmatmul.mubr.bf16.gmra.mrb[0].mxu0 %v1194
    %v1230 = vpop.f32.mrb[0].mxu0
    %v1231 = vadd.f32 %v1167, %v1230
    %v1232 = vpop.f32.mrb[0].mxu0
    %v1233 = vpop.f32.mrb[0].mxu0
    %v1234 = vadd.f32 %v1167, %v1233
    %v1235 = vpop.f32.mrb[0].mxu0
    %1236 = vdwg.mxu0
    %v1237 = vadd.f32 %v1231, %v116
    %v1238 = vadd.f32 %v1234, %v117
    %v1239 = vld [vmem:[%s8] sm:$0x1]
    %v1240 = vld [vmem:[%s9] sm:$0x1]
    %v1241 = vsel %vm74, %v1237, 0.0
    %1242 = vadd.xlane.f32.xlu0 %v1241
    %v1243 = vpop.xlane.xlu0 %1242
    %v1244 = vsel %vm74, %v1238, 0.0
    %1245 = vadd.xlane.f32.xlu0 %v1244
    %v1246 = vpop.xlane.xlu0 %1245
    %v1247 = vmul.f32 %v1243, %v81
    %v1248 = vmul.f32 %v1246, %v81
    %v1249 = vsub.f32 %v1237, %v1247
    %v1250 = vsub.f32 %v1238, %v1248
    %v1251 = vmul.f32 %v1249, %v1249
    %v1252 = vmul.f32 %v1250, %v1250
    %v1253 = vsel %vm74, %v1251, 0.0
    %1254 = vadd.xlane.f32.xlu0 %v1253
    %v1255 = vpop.xlane.xlu0 %1254
    %v1256 = vsel %vm74, %v1252, 0.0
    %1257 = vadd.xlane.f32.xlu0 %v1256
    %v1258 = vpop.xlane.xlu0 %1257
    %v1259 = vmul.f32 %v1255, %v81
    %v1260 = vmul.f32 %v1258, %v81
    %v1261 = vadd.f32 %v1259, 1e-05
    %v1262 = vadd.f32 %v1260, 1e-05
    %v1263 = vrsqrt.pop %v1261
    %v1264 = vrsqrt.pop %v1262
    %v1265 = vmul.f32 %v1249, %v1263
    %v1266 = vmul.f32 %v1250, %v1264
    %v1268 = vlaneseq
    %v1269 = vshrl.u32 %v1268, 7
    %v1270 = vsub.s32 0, %v1269
    %v1271 = vrot.slane %v1239, %v1270
    %v1273 = vmul.f32 %v1265, %v1271
    %v1274 = vmul.f32 %v1266, %v1271
    %v1276 = vlaneseq
    %v1277 = vshrl.u32 %v1276, 7
    %v1278 = vsub.s32 0, %v1277
    %v1279 = vrot.slane %v1240, %v1278
    %v1281 = vadd.f32 %v1273, %v1279
    %v1282 = vadd.f32 %v1274, %v1279
    %v1283 = vpack.c.bf16 %v1282, %v1281
    %v1284 = vld [vmem:[%s10] sm:$0xf]
    %v1285 = vld [vmem:[%s10 + $0x4] sm:$0xf]
    %v1286 = vld [vmem:[%s10 + $0x8] sm:$0xf]
    %v1287 = vld [vmem:[%s10 + $0xc] sm:$0xf]
    %v1288 = vld [vmem:[%s10 + $0x10] sm:$0xf]
    %v1289 = vld [vmem:[%s10 + $0x14] sm:$0xf]
    %v1290 = vld [vmem:[%s10 + $0x18] sm:$0xf]
    %v1291 = vld [vmem:[%s10 + $0x1c] sm:$0xf]
    %v1292 = vld [vmem:[%s11] sm:$0x1]
    %v1294 = vlaneseq
    %v1295 = vshrl.u32 %v1294, 7
    %v1296 = vsub.s32 0, %v1295
    %v1297 = vrot.slane %v1292, %v1296
    %v1307 = vunpack.c.l.b16 %v1284
    %v1308 = vunpack.c.l.b16 %v1285
    %v1309 = vunpack.c.l.b16 %v1286
    %v1310 = vunpack.c.l.b16 %v1287
    %v1311 = vunpack.c.l.b16 %v1288
    %v1312 = vunpack.c.l.b16 %v1289
    %v1313 = vunpack.c.l.b16 %v1290
    %v1314 = vunpack.c.l.b16 %v1291
    %v1315 = vpack.c.b16 %v1308, %v1307
    %v1316 = vpack.c.b16 %v1310, %v1309
    %v1317 = vpack.c.b16 %v1312, %v1311
    %v1318 = vpack.c.b16 %v1314, %v1313
    %v1324 = vsel %vm74, %v1283, 0
    %1326 = vmatprep.subr.bf16.mxu0 0
    %1327 = vmatpush1.bf16.msra.mxu0 %v1315
    %1328 = vmatprep.subr.bf16.mxu0 0
    %1329 = vmatpush1.bf16.msra.mxu0 %v1316
    %1330 = vmatprep.subr.bf16.mxu0 0
    %1331 = vmatpush1.bf16.msra.mxu0 %v1317
    %1332 = vmatprep.subr.bf16.mxu0 0
    %1333 = vmatpush1.bf16.msra.mxu0 %v1318
    %1334 = vmatprep.subr.bf16.mxu0 0
    %1335 = vmatpush1.bf16.msra.mxu0 0
    %1336 = vmatprep.subr.bf16.mxu0 0
    %1337 = vmatpush1.bf16.msra.mxu0 0
    %1338 = vmatprep.subr.bf16.mxu0 0
    %1339 = vmatpush1.bf16.msra.mxu0 0
    %1340 = vmatprep.subr.bf16.mxu0 0
    %1341 = vmatpush1.bf16.msra.mxu0 0
    %1342 = vmatprep.subr.bf16.mxu0 0
    %1343 = vmatpush1.bf16.msra.mxu0 0
    %1344 = vmatprep.subr.bf16.mxu0 0
    %1345 = vmatpush1.bf16.msra.mxu0 0
    %1346 = vmatprep.subr.bf16.mxu0 0
    %1347 = vmatpush1.bf16.msra.mxu0 0
    %1348 = vmatprep.subr.bf16.mxu0 0
    %1349 = vmatpush1.bf16.msra.mxu0 0
    %1350 = vmatprep.subr.bf16.mxu0 0
    %1351 = vmatpush1.bf16.msra.mxu0 0
    %1352 = vmatprep.subr.bf16.mxu0 0
    %1353 = vmatpush1.bf16.msra.mxu0 0
    %1354 = vmatprep.subr.bf16.mxu0 0
    %1355 = vmatpush1.bf16.msra.mxu0 0
    %1356 = vmatprep.subr.bf16.mxu0 0
    %1357 = vmatpush1.bf16.msra.mxu0 0
    %1358 = vmatprep.mubr.bf16.mxu0 0
    %1359 = vmatmul.mubr.bf16.gmra.mrb[0].mxu0 %v1324
    %v1360 = vpop.f32.mrb[0].mxu0
    %v1361 = vadd.f32 %v1297, %v1360
    %v1362 = vpop.f32.mrb[0].mxu0
    %v1363 = vpop.f32.mrb[0].mxu0
    %v1364 = vadd.f32 %v1297, %v1363
    %v1365 = vpop.f32.mrb[0].mxu0
    %1366 = vdwg.mxu0
    %v1367 = vmul.f32 %v1361, 0.5
    %v1368 = vmul.f32 %v1364, 0.5
    %v1369 = vmul.f32 %v1361, 0.044715
    %v1370 = vmul.f32 %v1364, 0.044715
    %v1371 = vmul.f32 %v1369, %v1361
    %v1372 = vmul.f32 %v1370, %v1364
    %v1373 = vmul.f32 %v1371, %v1361
    %v1374 = vmul.f32 %v1372, %v1364
    %v1375 = vadd.f32 %v1361, %v1373
    %v1376 = vadd.f32 %v1364, %v1374
    %v1377 = vmul.f32 %v1375, 0.7978846
    %v1378 = vmul.f32 %v1376, 0.7978846
    %v1379 = vtanh.pop %v1377
    %v1380 = vtanh.pop %v1378
    %v1381 = vadd.f32 %v1379, 1.0
    %v1382 = vadd.f32 %v1380, 1.0
    %v1383 = vmul.f32 %v1367, %v1381
    %v1384 = vmul.f32 %v1368, %v1382
    %v1385 = vpack.c.bf16 %v1384, %v1383
    %v1386 = vld [vmem:[%s12] sm:$0xf]
    %v1387 = vld [vmem:[%s12 + $0x4] sm:$0xf]
    %v1388 = vld [vmem:[%s12 + $0x8] sm:$0xf]
    %v1389 = vld [vmem:[%s12 + $0xc] sm:$0xf]
    %v1390 = vld [vmem:[%s12 + $0x10] sm:$0xf]
    %v1391 = vld [vmem:[%s12 + $0x14] sm:$0xf]
    %v1392 = vld [vmem:[%s12 + $0x18] sm:$0xf]
    %v1393 = vld [vmem:[%s12 + $0x1c] sm:$0xf]
    %v1394 = vld [vmem:[%s12 + $0x20] sm:$0xf]
    %v1395 = vld [vmem:[%s12 + $0x24] sm:$0xf]
    %v1396 = vld [vmem:[%s12 + $0x28] sm:$0xf]
    %v1397 = vld [vmem:[%s12 + $0x2c] sm:$0xf]
    %v1398 = vld [vmem:[%s12 + $0x30] sm:$0xf]
    %v1399 = vld [vmem:[%s12 + $0x34] sm:$0xf]
    %v1400 = vld [vmem:[%s12 + $0x38] sm:$0xf]
    %v1401 = vld [vmem:[%s12 + $0x3c] sm:$0xf]
    %v1402 = vld [vmem:[%s13] sm:$0x1]
    %v1404 = vlaneseq
    %v1405 = vshrl.u32 %v1404, 7
    %v1406 = vsub.s32 0, %v1405
    %v1407 = vrot.slane %v1402, %v1406
    %v1425 = vunpack.c.l.b16 %v1386
    %v1426 = vunpack.c.l.b16 %v1387
    %v1427 = vunpack.c.l.b16 %v1388
    %v1428 = vunpack.c.l.b16 %v1389
    %v1429 = vunpack.c.l.b16 %v1390
    %v1430 = vunpack.c.l.b16 %v1391
    %v1431 = vunpack.c.l.b16 %v1392
    %v1432 = vunpack.c.l.b16 %v1393
    %v1433 = vunpack.c.l.b16 %v1394
    %v1434 = vunpack.c.l.b16 %v1395
    %v1435 = vunpack.c.l.b16 %v1396
    %v1436 = vunpack.c.l.b16 %v1397
    %v1437 = vunpack.c.l.b16 %v1398
    %v1438 = vunpack.c.l.b16 %v1399
    %v1439 = vunpack.c.l.b16 %v1400
    %v1440 = vunpack.c.l.b16 %v1401
    %v1441 = vpack.c.b16 %v1426, %v1425
    %v1442 = vpack.c.b16 %v1428, %v1427
    %v1443 = vpack.c.b16 %v1430, %v1429
    %v1444 = vpack.c.b16 %v1432, %v1431
    %v1445 = vpack.c.b16 %v1434, %v1433
    %v1446 = vpack.c.b16 %v1436, %v1435
    %v1447 = vpack.c.b16 %v1438, %v1437
    %v1448 = vpack.c.b16 %v1440, %v1439
    %1457 = vmatprep.subr.bf16.mxu0 0
    %1458 = vmatpush1.bf16.msra.mxu0 %v1441
    %1459 = vmatprep.subr.bf16.mxu0 0
    %1460 = vmatpush1.bf16.msra.mxu0 %v1442
    %1461 = vmatprep.subr.bf16.mxu0 0
    %1462 = vmatpush1.bf16.msra.mxu0 %v1443
    %1463 = vmatprep.subr.bf16.mxu0 0
    %1464 = vmatpush1.bf16.msra.mxu0 %v1444
    %1465 = vmatprep.subr.bf16.mxu0 0
    %1466 = vmatpush1.bf16.msra.mxu0 %v1445
    %1467 = vmatprep.subr.bf16.mxu0 0
    %1468 = vmatpush1.bf16.msra.mxu0 %v1446
    %1469 = vmatprep.subr.bf16.mxu0 0
    %1470 = vmatpush1.bf16.msra.mxu0 %v1447
    %1471 = vmatprep.subr.bf16.mxu0 0
    %1472 = vmatpush1.bf16.msra.mxu0 %v1448
    %1473 = vmatprep.subr.bf16.mxu0 0
    %1474 = vmatpush1.bf16.msra.mxu0 0
    %1475 = vmatprep.subr.bf16.mxu0 0
    %1476 = vmatpush1.bf16.msra.mxu0 0
    %1477 = vmatprep.subr.bf16.mxu0 0
    %1478 = vmatpush1.bf16.msra.mxu0 0
    %1479 = vmatprep.subr.bf16.mxu0 0
    %1480 = vmatpush1.bf16.msra.mxu0 0
    %1481 = vmatprep.subr.bf16.mxu0 0
    %1482 = vmatpush1.bf16.msra.mxu0 0
    %1483 = vmatprep.subr.bf16.mxu0 0
    %1484 = vmatpush1.bf16.msra.mxu0 0
    %1485 = vmatprep.subr.bf16.mxu0 0
    %1486 = vmatpush1.bf16.msra.mxu0 0
    %1487 = vmatprep.subr.bf16.mxu0 0
    %1488 = vmatpush1.bf16.msra.mxu0 0
    %1489 = vmatprep.mubr.bf16.mxu0 0
    %1490 = vmatmul.mubr.bf16.gmra.mrb[0].mxu0 %v1385
    %v1491 = vpop.f32.mrb[0].mxu0
    %v1492 = vadd.f32 %v1407, %v1491
    %v1493 = vpop.f32.mrb[0].mxu0
    %v1494 = vpop.f32.mrb[0].mxu0
    %v1495 = vadd.f32 %v1407, %v1494
    %v1496 = vpop.f32.mrb[0].mxu0
    %1497 = vdwg.mxu0
    %v1498 = vadd.f32 %v1492, %v1281
    %v1499 = vadd.f32 %v1495, %v1282
    %v1500 = vld [vmem:[%s14] sm:$0x1]
    %v1501 = vld [vmem:[%s15] sm:$0x1]
    %v1502 = vsel %vm74, %v1498, 0.0
    %1503 = vadd.xlane.f32.xlu0 %v1502
    %v1504 = vpop.xlane.xlu0 %1503
    %v1505 = vsel %vm74, %v1499, 0.0
    %1506 = vadd.xlane.f32.xlu0 %v1505
    %v1507 = vpop.xlane.xlu0 %1506
    %v1508 = vmul.f32 %v1504, %v81
    %v1509 = vmul.f32 %v1507, %v81
    %v1510 = vsub.f32 %v1498, %v1508
    %v1511 = vsub.f32 %v1499, %v1509
    %v1512 = vmul.f32 %v1510, %v1510
    %v1513 = vmul.f32 %v1511, %v1511
    %v1514 = vsel %vm74, %v1512, 0.0
    %1515 = vadd.xlane.f32.xlu0 %v1514
    %v1516 = vpop.xlane.xlu0 %1515
    %v1517 = vsel %vm74, %v1513, 0.0
    %1518 = vadd.xlane.f32.xlu0 %v1517
    %v1519 = vpop.xlane.xlu0 %1518
    %v1520 = vmul.f32 %v1516, %v81
    %v1521 = vmul.f32 %v1519, %v81
    %v1522 = vadd.f32 %v1520, 1e-05
    %v1523 = vadd.f32 %v1521, 1e-05
    %v1524 = vrsqrt.pop %v1522
    %v1525 = vrsqrt.pop %v1523
    %v1526 = vmul.f32 %v1510, %v1524
    %v1527 = vmul.f32 %v1511, %v1525
    %v1529 = vlaneseq
    %v1530 = vshrl.u32 %v1529, 7
    %v1531 = vsub.s32 0, %v1530
    %v1532 = vrot.slane %v1500, %v1531
    %v1534 = vmul.f32 %v1526, %v1532
    %v1535 = vmul.f32 %v1527, %v1532
    %v1537 = vlaneseq
    %v1538 = vshrl.u32 %v1537, 7
    %v1539 = vsub.s32 0, %v1538
    %v1540 = vrot.slane %v1501, %v1539
    %v1542 = vadd.f32 %v1534, %v1540
    %v1543 = vadd.f32 %v1535, %v1540
    %v1544 = vpack.c.bf16 %v1543, %v1542
    %s1545 = scalar_lea.vmem %s4, 64
    %v1546 = vld [vmem:[%s1545] sm:$0xff]
    %v1547 = vld [vmem:[%s1545 + $0x8] sm:$0xff]
    %v1548 = vld [vmem:[%s1545 + $0x10] sm:$0xff]
    %v1549 = vld [vmem:[%s1545 + $0x18] sm:$0xff]
    %v1550 = vld [vmem:[%s1545 + $0x20] sm:$0xff]
    %v1551 = vld [vmem:[%s1545 + $0x28] sm:$0xff]
    %v1552 = vld [vmem:[%s1545 + $0x30] sm:$0xff]
    %v1553 = vld [vmem:[%s1545 + $0x38] sm:$0xff]
    %s1554 = scalar_lea.vmem %s5, 2
    %v1555 = vld [vmem:[%s1554] sm:$0x3]
    %v1557 = vlaneseq
    %v1558 = vshrl.u32 %v1557, 7
    %v1559 = vsub.s32 0, %v1558
    %v1560 = vrot.slane %v1555, %v1559
    %v1561 = vlaneseq
    %v1562 = vshrl.u32 %v1561, 7
    %v1563 = vsub.s32 1, %v1562
    %v1564 = vrot.slane %v1555, %v1563
    %v1575 = vunpack.c.l.b16 %v1546
    %v1576 = vunpack.c.h.b16 %v1546
    %v1577 = vunpack.c.l.b16 %v1547
    %v1578 = vunpack.c.h.b16 %v1547
    %v1579 = vunpack.c.l.b16 %v1548
    %v1580 = vunpack.c.h.b16 %v1548
    %v1581 = vunpack.c.l.b16 %v1549
    %v1582 = vunpack.c.h.b16 %v1549
    %v1583 = vunpack.c.l.b16 %v1550
    %v1584 = vunpack.c.h.b16 %v1550
    %v1585 = vunpack.c.l.b16 %v1551
    %v1586 = vunpack.c.h.b16 %v1551
    %v1587 = vunpack.c.l.b16 %v1552
    %v1588 = vunpack.c.h.b16 %v1552
    %v1589 = vunpack.c.l.b16 %v1553
    %v1590 = vunpack.c.h.b16 %v1553
    %v1591 = vpack.c.b16 %v1577, %v1575
    %v1592 = vpack.c.b16 %v1578, %v1576
    %v1593 = vpack.c.b16 %v1581, %v1579
    %v1594 = vpack.c.b16 %v1582, %v1580
    %v1595 = vpack.c.b16 %v1585, %v1583
    %v1596 = vpack.c.b16 %v1586, %v1584
    %v1597 = vpack.c.b16 %v1589, %v1587
    %v1598 = vpack.c.b16 %v1590, %v1588
    %v1608 = vsel %vm74, %v1544, 0
    %1610 = vmatprep.subr.bf16.mxu0 %v1592
    %1611 = vmatpush1.bf16.msra.mxu0 %v1591
    %1612 = vmatprep.subr.bf16.mxu0 %v1594
    %1613 = vmatpush1.bf16.msra.mxu0 %v1593
    %1614 = vmatprep.subr.bf16.mxu0 %v1596
    %1615 = vmatpush1.bf16.msra.mxu0 %v1595
    %1616 = vmatprep.subr.bf16.mxu0 %v1598
    %1617 = vmatpush1.bf16.msra.mxu0 %v1597
    %1618 = vmatprep.subr.bf16.mxu0 0
    %1619 = vmatpush1.bf16.msra.mxu0 0
    %1620 = vmatprep.subr.bf16.mxu0 0
    %1621 = vmatpush1.bf16.msra.mxu0 0
    %1622 = vmatprep.subr.bf16.mxu0 0
    %1623 = vmatpush1.bf16.msra.mxu0 0
    %1624 = vmatprep.subr.bf16.mxu0 0
    %1625 = vmatpush1.bf16.msra.mxu0 0
    %1626 = vmatprep.subr.bf16.mxu0 0
    %1627 = vmatpush1.bf16.msra.mxu0 0
    %1628 = vmatprep.subr.bf16.mxu0 0
    %1629 = vmatpush1.bf16.msra.mxu0 0
    %1630 = vmatprep.subr.bf16.mxu0 0
    %1631 = vmatpush1.bf16.msra.mxu0 0
    %1632 = vmatprep.subr.bf16.mxu0 0
    %1633 = vmatpush1.bf16.msra.mxu0 0
    %1634 = vmatprep.subr.bf16.mxu0 0
    %1635 = vmatpush1.bf16.msra.mxu0 0
    %1636 = vmatprep.subr.bf16.mxu0 0
    %1637 = vmatpush1.bf16.msra.mxu0 0
    %1638 = vmatprep.subr.bf16.mxu0 0
    %1639 = vmatpush1.bf16.msra.mxu0 0
    %1640 = vmatprep.subr.bf16.mxu0 0
    %1641 = vmatpush1.bf16.msra.mxu0 0
    %1642 = vmatprep.mubr.bf16.mxu0 0
    %1643 = vmatmul.mubr.bf16.gmra.mrb[0].mxu0 %v1608
    %v1644 = vpop.f32.mrb[0].mxu0
    %v1645 = vadd.f32 %v1560, %v1644
    %v1646 = vpop.f32.mrb[0].mxu0
    %v1647 = vadd.f32 %v1564, %v1646
    %v1648 = vpop.f32.mrb[0].mxu0
    %v1649 = vadd.f32 %v1560, %v1648
    %v1650 = vpop.f32.mrb[0].mxu0
    %v1651 = vadd.f32 %v1564, %v1650
    %1652 = vdwg.mxu0
    %v1653 = vpack.c.bf16 %v1649, %v1645
    %v1654 = vpack.c.bf16 %v1651, %v1647
    %1656 = vrot.lane.b32.xlu0 %v1653, 64
    %v1657 = vpop.permute.xlu0 %1656
    %v1659 = vsel %vm245, %v1653, 0
    %v1662 = vsel %vm245, %v1657, 0
    %1664 = vmatprep.subr.bf16.mxu0 0
    %1665 = vmatpush1.bf16.xpose.msra.mxu0 %v1662
    %1666 = vmatprep.subr.bf16.mxu0 0
    %1667 = vmatpush1.bf16.xpose.msra.mxu0 0
    %1668 = vmatprep.subr.bf16.mxu0 0
    %1669 = vmatpush1.bf16.xpose.msra.mxu0 0
    %1670 = vmatprep.subr.bf16.mxu0 0
    %1671 = vmatpush1.bf16.xpose.msra.mxu0 0
    %1672 = vmatprep.subr.bf16.mxu0 0
    %1673 = vmatpush1.bf16.xpose.msra.mxu0 0
    %1674 = vmatprep.subr.bf16.mxu0 0
    %1675 = vmatpush1.bf16.xpose.msra.mxu0 0
    %1676 = vmatprep.subr.bf16.mxu0 0
    %1677 = vmatpush1.bf16.xpose.msra.mxu0 0
    %1678 = vmatprep.subr.bf16.mxu0 0
    %1679 = vmatpush1.bf16.xpose.msra.mxu0 0
    %1680 = vmatprep.subr.bf16.mxu0 0
    %1681 = vmatpush1.bf16.xpose.msra.mxu0 0
    %1682 = vmatprep.subr.bf16.mxu0 0
    %1683 = vmatpush1.bf16.xpose.msra.mxu0 0
    %1684 = vmatprep.subr.bf16.mxu0 0
    %1685 = vmatpush1.bf16.xpose.msra.mxu0 0
    %1686 = vmatprep.subr.bf16.mxu0 0
    %1687 = vmatpush1.bf16.xpose.msra.mxu0 0
    %1688 = vmatprep.subr.bf16.mxu0 0
    %1689 = vmatpush1.bf16.xpose.msra.mxu0 0
    %1690 = vmatprep.subr.bf16.mxu0 0
    %1691 = vmatpush1.bf16.xpose.msra.mxu0 0
    %1692 = vmatprep.subr.bf16.mxu0 0
    %1693 = vmatpush1.bf16.xpose.msra.mxu0 0
    %1694 = vmatprep.subr.bf16.mxu0 0
    %1695 = vmatpush1.bf16.xpose.msra.mxu0 0
    %1696 = vmatprep.mubr.bf16.mxu0 0
    %1697 = vmatmul.mubr.bf16.gmra.mrb[0].mxu0 %v1659
    %v1698 = vpop.f32.mrb[0].mxu0
    %v1699 = vadd.f32 %v123, %v1698
    %v1700 = vpop.f32.mrb[0].mxu0
    %v1701 = vpop.f32.mrb[0].mxu0
    %v1702 = vpop.f32.mrb[0].mxu0
    %1703 = vdwg.mxu0
    %v1704 = vsel %vm292, %v1699, -inf
    %1705 = vmax.xlane.f32.xlu0 %v1704
    %v1706 = vpop.xlane.xlu0 %1705
    %v1707 = vsub.f32 %v1699, %v1706
    %v1708 = vmul.f32 %v1707, 1.442695
    %v1709 = vpow.pop %v1708
    %v1710 = vsel %vm292, %v1709, 0.0
    %1711 = vadd.xlane.f32.xlu0 %v1710
    %v1712 = vpop.xlane.xlu0 %1711
    %v1713 = vrcp.pop %v1712
    %v1714 = vmul.f32 %v1709, %v1713
    %v1715 = vpack.c.bf16 %v1714, %v1714
    %v1717 = vsel %vm292, %v1715, 0
    %v1720 = vsel %vm308, %v1654, 0
    %1722 = vmatprep.subr.bf16.mxu0 0
    %1723 = vmatpush1.bf16.msra.mxu0 %v1720
    %1724 = vmatprep.subr.bf16.mxu0 0
    %1725 = vmatpush1.bf16.msra.mxu0 0
    %1726 = vmatprep.subr.bf16.mxu0 0
    %1727 = vmatpush1.bf16.msra.mxu0 0
    %1728 = vmatprep.subr.bf16.mxu0 0
    %1729 = vmatpush1.bf16.msra.mxu0 0
    %1730 = vmatprep.subr.bf16.mxu0 0
    %1731 = vmatpush1.bf16.msra.mxu0 0
    %1732 = vmatprep.subr.bf16.mxu0 0
    %1733 = vmatpush1.bf16.msra.mxu0 0
    %1734 = vmatprep.subr.bf16.mxu0 0
    %1735 = vmatpush1.bf16.msra.mxu0 0
    %1736 = vmatprep.subr.bf16.mxu0 0
    %1737 = vmatpush1.bf16.msra.mxu0 0
    %1738 = vmatprep.subr.bf16.mxu0 0
    %1739 = vmatpush1.bf16.msra.mxu0 0
    %1740 = vmatprep.subr.bf16.mxu0 0
    %1741 = vmatpush1.bf16.msra.mxu0 0
    %1742 = vmatprep.subr.bf16.mxu0 0
    %1743 = vmatpush1.bf16.msra.mxu0 0
    %1744 = vmatprep.subr.bf16.mxu0 0
    %1745 = vmatpush1.bf16.msra.mxu0 0
    %1746 = vmatprep.subr.bf16.mxu0 0
    %1747 = vmatpush1.bf16.msra.mxu0 0
    %1748 = vmatprep.subr.bf16.mxu0 0
    %1749 = vmatpush1.bf16.msra.mxu0 0
    %1750 = vmatprep.subr.bf16.mxu0 0
    %1751 = vmatpush1.bf16.msra.mxu0 0
    %1752 = vmatprep.subr.bf16.mxu0 0
    %1753 = vmatpush1.bf16.msra.mxu0 0
    %1754 = vmatprep.mubr.bf16.mxu0 0
    %1755 = vmatmul.mubr.bf16.gmra.mrb[0].mxu0 %v1717
    %v1756 = vpop.f32.mrb[0].mxu0
    %v1757 = vadd.f32 0.0, %v1756
    %v1758 = vpop.f32.mrb[0].mxu0
    %v1759 = vpop.f32.mrb[0].mxu0
    %v1760 = vpop.f32.mrb[0].mxu0
    %1761 = vdwg.mxu0
    %1762 = vrot.lane.b32.xlu0 %v1653, 112
    %v1763 = vpop.permute.xlu0 %1762
    %1764 = vrot.lane.b32.xlu0 %v1653, 48
    %v1765 = vpop.permute.xlu0 %1764
    %v1767 = vsel %vm245, %v1763, 0
    %v1770 = vsel %vm245, %v1765, 0
    %1772 = vmatprep.subr.bf16.mxu0 0
    %1773 = vmatpush1.bf16.xpose.msra.mxu0 %v1770
    %1774 = vmatprep.subr.bf16.mxu0 0
    %1775 = vmatpush1.bf16.xpose.msra.mxu0 0
    %1776 = vmatprep.subr.bf16.mxu0 0
    %1777 = vmatpush1.bf16.xpose.msra.mxu0 0
    %1778 = vmatprep.subr.bf16.mxu0 0
    %1779 = vmatpush1.bf16.xpose.msra.mxu0 0
    %1780 = vmatprep.subr.bf16.mxu0 0
    %1781 = vmatpush1.bf16.xpose.msra.mxu0 0
    %1782 = vmatprep.subr.bf16.mxu0 0
    %1783 = vmatpush1.bf16.xpose.msra.mxu0 0
    %1784 = vmatprep.subr.bf16.mxu0 0
    %1785 = vmatpush1.bf16.xpose.msra.mxu0 0
    %1786 = vmatprep.subr.bf16.mxu0 0
    %1787 = vmatpush1.bf16.xpose.msra.mxu0 0
    %1788 = vmatprep.subr.bf16.mxu0 0
    %1789 = vmatpush1.bf16.xpose.msra.mxu0 0
    %1790 = vmatprep.subr.bf16.mxu0 0
    %1791 = vmatpush1.bf16.xpose.msra.mxu0 0
    %1792 = vmatprep.subr.bf16.mxu0 0
    %1793 = vmatpush1.bf16.xpose.msra.mxu0 0
    %1794 = vmatprep.subr.bf16.mxu0 0
    %1795 = vmatpush1.bf16.xpose.msra.mxu0 0
    %1796 = vmatprep.subr.bf16.mxu0 0
    %1797 = vmatpush1.bf16.xpose.msra.mxu0 0
    %1798 = vmatprep.subr.bf16.mxu0 0
    %1799 = vmatpush1.bf16.xpose.msra.mxu0 0
    %1800 = vmatprep.subr.bf16.mxu0 0
    %1801 = vmatpush1.bf16.xpose.msra.mxu0 0
    %1802 = vmatprep.subr.bf16.mxu0 0
    %1803 = vmatpush1.bf16.xpose.msra.mxu0 0
    %1804 = vmatprep.mubr.bf16.mxu0 0
    %1805 = vmatmul.mubr.bf16.gmra.mrb[0].mxu0 %v1767
    %v1806 = vpop.f32.mrb[0].mxu0
    %v1807 = vadd.f32 %v123, %v1806
    %v1808 = vpop.f32.mrb[0].mxu0
    %v1809 = vpop.f32.mrb[0].mxu0
    %v1810 = vpop.f32.mrb[0].mxu0
    %1811 = vdwg.mxu0
    %v1812 = vsel %vm292, %v1807, -inf
    %1813 = vmax.xlane.f32.xlu0 %v1812
    %v1814 = vpop.xlane.xlu0 %1813
    %v1815 = vsub.f32 %v1807, %v1814
    %v1816 = vmul.f32 %v1815, 1.442695
    %v1817 = vpow.pop %v1816
    %v1818 = vsel %vm292, %v1817, 0.0
    %1819 = vadd.xlane.f32.xlu0 %v1818
    %v1820 = vpop.xlane.xlu0 %1819
    %v1821 = vrcp.pop %v1820
    %v1822 = vmul.f32 %v1817, %v1821
    %v1823 = vpack.c.bf16 %v1822, %v1822
    %1825 = vrot.lane.b32.xlu0 %v1654, 112
    %v1826 = vpop.permute.xlu0 %1825
    %v1828 = vsel %vm292, %v1823, 0
    %v1831 = vsel %vm308, %v1826, 0
    %1833 = vmatprep.subr.bf16.mxu0 0
    %1834 = vmatpush1.bf16.msra.mxu0 %v1831
    %1835 = vmatprep.subr.bf16.mxu0 0
    %1836 = vmatpush1.bf16.msra.mxu0 0
    %1837 = vmatprep.subr.bf16.mxu0 0
    %1838 = vmatpush1.bf16.msra.mxu0 0
    %1839 = vmatprep.subr.bf16.mxu0 0
    %1840 = vmatpush1.bf16.msra.mxu0 0
    %1841 = vmatprep.subr.bf16.mxu0 0
    %1842 = vmatpush1.bf16.msra.mxu0 0
    %1843 = vmatprep.subr.bf16.mxu0 0
    %1844 = vmatpush1.bf16.msra.mxu0 0
    %1845 = vmatprep.subr.bf16.mxu0 0
    %1846 = vmatpush1.bf16.msra.mxu0 0
    %1847 = vmatprep.subr.bf16.mxu0 0
    %1848 = vmatpush1.bf16.msra.mxu0 0
    %1849 = vmatprep.subr.bf16.mxu0 0
    %1850 = vmatpush1.bf16.msra.mxu0 0
    %1851 = vmatprep.subr.bf16.mxu0 0
    %1852 = vmatpush1.bf16.msra.mxu0 0
    %1853 = vmatprep.subr.bf16.mxu0 0
    %1854 = vmatpush1.bf16.msra.mxu0 0
    %1855 = vmatprep.subr.bf16.mxu0 0
    %1856 = vmatpush1.bf16.msra.mxu0 0
    %1857 = vmatprep.subr.bf16.mxu0 0
    %1858 = vmatpush1.bf16.msra.mxu0 0
    %1859 = vmatprep.subr.bf16.mxu0 0
    %1860 = vmatpush1.bf16.msra.mxu0 0
    %1861 = vmatprep.subr.bf16.mxu0 0
    %1862 = vmatpush1.bf16.msra.mxu0 0
    %1863 = vmatprep.subr.bf16.mxu0 0
    %1864 = vmatpush1.bf16.msra.mxu0 0
    %1865 = vmatprep.mubr.bf16.mxu0 0
    %1866 = vmatmul.mubr.bf16.gmra.mrb[0].mxu0 %v1828
    %v1867 = vpop.f32.mrb[0].mxu0
    %v1868 = vadd.f32 0.0, %v1867
    %v1869 = vpop.f32.mrb[0].mxu0
    %v1870 = vpop.f32.mrb[0].mxu0
    %v1871 = vpop.f32.mrb[0].mxu0
    %1872 = vdwg.mxu0
    %1873 = vrot.lane.b32.xlu0 %v1653, 96
    %v1874 = vpop.permute.xlu0 %1873
    %1875 = vrot.lane.b32.xlu0 %v1653, 32
    %v1876 = vpop.permute.xlu0 %1875
    %v1878 = vsel %vm245, %v1874, 0
    %v1881 = vsel %vm245, %v1876, 0
    %1883 = vmatprep.subr.bf16.mxu0 0
    %1884 = vmatpush1.bf16.xpose.msra.mxu0 %v1881
    %1885 = vmatprep.subr.bf16.mxu0 0
    %1886 = vmatpush1.bf16.xpose.msra.mxu0 0
    %1887 = vmatprep.subr.bf16.mxu0 0
    %1888 = vmatpush1.bf16.xpose.msra.mxu0 0
    %1889 = vmatprep.subr.bf16.mxu0 0
    %1890 = vmatpush1.bf16.xpose.msra.mxu0 0
    %1891 = vmatprep.subr.bf16.mxu0 0
    %1892 = vmatpush1.bf16.xpose.msra.mxu0 0
    %1893 = vmatprep.subr.bf16.mxu0 0
    %1894 = vmatpush1.bf16.xpose.msra.mxu0 0
    %1895 = vmatprep.subr.bf16.mxu0 0
    %1896 = vmatpush1.bf16.xpose.msra.mxu0 0
    %1897 = vmatprep.subr.bf16.mxu0 0
    %1898 = vmatpush1.bf16.xpose.msra.mxu0 0
    %1899 = vmatprep.subr.bf16.mxu0 0
    %1900 = vmatpush1.bf16.xpose.msra.mxu0 0
    %1901 = vmatprep.subr.bf16.mxu0 0
    %1902 = vmatpush1.bf16.xpose.msra.mxu0 0
    %1903 = vmatprep.subr.bf16.mxu0 0
    %1904 = vmatpush1.bf16.xpose.msra.mxu0 0
    %1905 = vmatprep.subr.bf16.mxu0 0
    %1906 = vmatpush1.bf16.xpose.msra.mxu0 0
    %1907 = vmatprep.subr.bf16.mxu0 0
    %1908 = vmatpush1.bf16.xpose.msra.mxu0 0
    %1909 = vmatprep.subr.bf16.mxu0 0
    %1910 = vmatpush1.bf16.xpose.msra.mxu0 0
    %1911 = vmatprep.subr.bf16.mxu0 0
    %1912 = vmatpush1.bf16.xpose.msra.mxu0 0
    %1913 = vmatprep.subr.bf16.mxu0 0
    %1914 = vmatpush1.bf16.xpose.msra.mxu0 0
    %1915 = vmatprep.mubr.bf16.mxu0 0
    %1916 = vmatmul.mubr.bf16.gmra.mrb[0].mxu0 %v1878
    %v1917 = vpop.f32.mrb[0].mxu0
    %v1918 = vadd.f32 %v123, %v1917
    %v1919 = vpop.f32.mrb[0].mxu0
    %v1920 = vpop.f32.mrb[0].mxu0
    %v1921 = vpop.f32.mrb[0].mxu0
    %1922 = vdwg.mxu0
    %v1923 = vsel %vm292, %v1918, -inf
    %1924 = vmax.xlane.f32.xlu0 %v1923
    %v1925 = vpop.xlane.xlu0 %1924
    %v1926 = vsub.f32 %v1918, %v1925
    %v1927 = vmul.f32 %v1926, 1.442695
    %v1928 = vpow.pop %v1927
    %v1929 = vsel %vm292, %v1928, 0.0
    %1930 = vadd.xlane.f32.xlu0 %v1929
    %v1931 = vpop.xlane.xlu0 %1930
    %v1932 = vrcp.pop %v1931
    %v1933 = vmul.f32 %v1928, %v1932
    %v1934 = vpack.c.bf16 %v1933, %v1933
    %1935 = vrot.lane.b32.xlu0 %v1654, 96
    %v1936 = vpop.permute.xlu0 %1935
    %v1938 = vsel %vm292, %v1934, 0
    %v1941 = vsel %vm308, %v1936, 0
    %1943 = vmatprep.subr.bf16.mxu0 0
    %1944 = vmatpush1.bf16.msra.mxu0 %v1941
    %1945 = vmatprep.subr.bf16.mxu0 0
    %1946 = vmatpush1.bf16.msra.mxu0 0
    %1947 = vmatprep.subr.bf16.mxu0 0
    %1948 = vmatpush1.bf16.msra.mxu0 0
    %1949 = vmatprep.subr.bf16.mxu0 0
    %1950 = vmatpush1.bf16.msra.mxu0 0
    %1951 = vmatprep.subr.bf16.mxu0 0
    %1952 = vmatpush1.bf16.msra.mxu0 0
    %1953 = vmatprep.subr.bf16.mxu0 0
    %1954 = vmatpush1.bf16.msra.mxu0 0
    %1955 = vmatprep.subr.bf16.mxu0 0
    %1956 = vmatpush1.bf16.msra.mxu0 0
    %1957 = vmatprep.subr.bf16.mxu0 0
    %1958 = vmatpush1.bf16.msra.mxu0 0
    %1959 = vmatprep.subr.bf16.mxu0 0
    %1960 = vmatpush1.bf16.msra.mxu0 0
    %1961 = vmatprep.subr.bf16.mxu0 0
    %1962 = vmatpush1.bf16.msra.mxu0 0
    %1963 = vmatprep.subr.bf16.mxu0 0
    %1964 = vmatpush1.bf16.msra.mxu0 0
    %1965 = vmatprep.subr.bf16.mxu0 0
    %1966 = vmatpush1.bf16.msra.mxu0 0
    %1967 = vmatprep.subr.bf16.mxu0 0
    %1968 = vmatpush1.bf16.msra.mxu0 0
    %1969 = vmatprep.subr.bf16.mxu0 0
    %1970 = vmatpush1.bf16.msra.mxu0 0
    %1971 = vmatprep.subr.bf16.mxu0 0
    %1972 = vmatpush1.bf16.msra.mxu0 0
    %1973 = vmatprep.subr.bf16.mxu0 0
    %1974 = vmatpush1.bf16.msra.mxu0 0
    %1975 = vmatprep.mubr.bf16.mxu0 0
    %1976 = vmatmul.mubr.bf16.gmra.mrb[0].mxu0 %v1938
    %v1977 = vpop.f32.mrb[0].mxu0
    %v1978 = vadd.f32 0.0, %v1977
    %v1979 = vpop.f32.mrb[0].mxu0
    %v1980 = vpop.f32.mrb[0].mxu0
    %v1981 = vpop.f32.mrb[0].mxu0
    %1982 = vdwg.mxu0
    %1983 = vrot.lane.b32.xlu0 %v1653, 80
    %v1984 = vpop.permute.xlu0 %1983
    %1985 = vrot.lane.b32.xlu0 %v1653, 16
    %v1986 = vpop.permute.xlu0 %1985
    %v1988 = vsel %vm245, %v1984, 0
    %v1991 = vsel %vm245, %v1986, 0
    %1993 = vmatprep.subr.bf16.mxu0 0
    %1994 = vmatpush1.bf16.xpose.msra.mxu0 %v1991
    %1995 = vmatprep.subr.bf16.mxu0 0
    %1996 = vmatpush1.bf16.xpose.msra.mxu0 0
    %1997 = vmatprep.subr.bf16.mxu0 0
    %1998 = vmatpush1.bf16.xpose.msra.mxu0 0
    %1999 = vmatprep.subr.bf16.mxu0 0
    %2000 = vmatpush1.bf16.xpose.msra.mxu0 0
    %2001 = vmatprep.subr.bf16.mxu0 0
    %2002 = vmatpush1.bf16.xpose.msra.mxu0 0
    %2003 = vmatprep.subr.bf16.mxu0 0
    %2004 = vmatpush1.bf16.xpose.msra.mxu0 0
    %2005 = vmatprep.subr.bf16.mxu0 0
    %2006 = vmatpush1.bf16.xpose.msra.mxu0 0
    %2007 = vmatprep.subr.bf16.mxu0 0
    %2008 = vmatpush1.bf16.xpose.msra.mxu0 0
    %2009 = vmatprep.subr.bf16.mxu0 0
    %2010 = vmatpush1.bf16.xpose.msra.mxu0 0
    %2011 = vmatprep.subr.bf16.mxu0 0
    %2012 = vmatpush1.bf16.xpose.msra.mxu0 0
    %2013 = vmatprep.subr.bf16.mxu0 0
    %2014 = vmatpush1.bf16.xpose.msra.mxu0 0
    %2015 = vmatprep.subr.bf16.mxu0 0
    %2016 = vmatpush1.bf16.xpose.msra.mxu0 0
    %2017 = vmatprep.subr.bf16.mxu0 0
    %2018 = vmatpush1.bf16.xpose.msra.mxu0 0
    %2019 = vmatprep.subr.bf16.mxu0 0
    %2020 = vmatpush1.bf16.xpose.msra.mxu0 0
    %2021 = vmatprep.subr.bf16.mxu0 0
    %2022 = vmatpush1.bf16.xpose.msra.mxu0 0
    %2023 = vmatprep.subr.bf16.mxu0 0
    %2024 = vmatpush1.bf16.xpose.msra.mxu0 0
    %2025 = vmatprep.mubr.bf16.mxu0 0
    %2026 = vmatmul.mubr.bf16.gmra.mrb[0].mxu0 %v1988
    %v2027 = vpop.f32.mrb[0].mxu0
    %v2028 = vadd.f32 %v123, %v2027
    %v2029 = vpop.f32.mrb[0].mxu0
    %v2030 = vpop.f32.mrb[0].mxu0
    %v2031 = vpop.f32.mrb[0].mxu0
    %2032 = vdwg.mxu0
    %v2033 = vsel %vm292, %v2028, -inf
    %2034 = vmax.xlane.f32.xlu0 %v2033
    %v2035 = vpop.xlane.xlu0 %2034
    %v2036 = vsub.f32 %v2028, %v2035
    %v2037 = vmul.f32 %v2036, 1.442695
    %v2038 = vpow.pop %v2037
    %v2039 = vsel %vm292, %v2038, 0.0
    %2040 = vadd.xlane.f32.xlu0 %v2039
    %v2041 = vpop.xlane.xlu0 %2040
    %v2042 = vrcp.pop %v2041
    %v2043 = vmul.f32 %v2038, %v2042
    %v2044 = vpack.c.bf16 %v2043, %v2043
    %2045 = vrot.lane.b32.xlu0 %v1654, 80
    %v2046 = vpop.permute.xlu0 %2045
    %v2048 = vsel %vm292, %v2044, 0
    %v2051 = vsel %vm308, %v2046, 0
    %2053 = vmatprep.subr.bf16.mxu0 0
    %2054 = vmatpush1.bf16.msra.mxu0 %v2051
    %2055 = vmatprep.subr.bf16.mxu0 0
    %2056 = vmatpush1.bf16.msra.mxu0 0
    %2057 = vmatprep.subr.bf16.mxu0 0
    %2058 = vmatpush1.bf16.msra.mxu0 0
    %2059 = vmatprep.subr.bf16.mxu0 0
    %2060 = vmatpush1.bf16.msra.mxu0 0
    %2061 = vmatprep.subr.bf16.mxu0 0
    %2062 = vmatpush1.bf16.msra.mxu0 0
    %2063 = vmatprep.subr.bf16.mxu0 0
    %2064 = vmatpush1.bf16.msra.mxu0 0
    %2065 = vmatprep.subr.bf16.mxu0 0
    %2066 = vmatpush1.bf16.msra.mxu0 0
    %2067 = vmatprep.subr.bf16.mxu0 0
    %2068 = vmatpush1.bf16.msra.mxu0 0
    %2069 = vmatprep.subr.bf16.mxu0 0
    %2070 = vmatpush1.bf16.msra.mxu0 0
    %2071 = vmatprep.subr.bf16.mxu0 0
    %2072 = vmatpush1.bf16.msra.mxu0 0
    %2073 = vmatprep.subr.bf16.mxu0 0
    %2074 = vmatpush1.bf16.msra.mxu0 0
    %2075 = vmatprep.subr.bf16.mxu0 0
    %2076 = vmatpush1.bf16.msra.mxu0 0
    %2077 = vmatprep.subr.bf16.mxu0 0
    %2078 = vmatpush1.bf16.msra.mxu0 0
    %2079 = vmatprep.subr.bf16.mxu0 0
    %2080 = vmatpush1.bf16.msra.mxu0 0
    %2081 = vmatprep.subr.bf16.mxu0 0
    %2082 = vmatpush1.bf16.msra.mxu0 0
    %2083 = vmatprep.subr.bf16.mxu0 0
    %2084 = vmatpush1.bf16.msra.mxu0 0
    %2085 = vmatprep.mubr.bf16.mxu0 0
    %2086 = vmatmul.mubr.bf16.gmra.mrb[0].mxu0 %v2048
    %v2087 = vpop.f32.mrb[0].mxu0
    %v2088 = vadd.f32 0.0, %v2087
    %v2089 = vpop.f32.mrb[0].mxu0
    %v2090 = vpop.f32.mrb[0].mxu0
    %v2091 = vpop.f32.mrb[0].mxu0
    %2092 = vdwg.mxu0
    %2094 = vrot.lane.b32.xlu0 %v1868, 16
    %v2095 = vpop.permute.xlu0 %2094
    %2098 = vrot.lane.b32.xlu0 %v1978, 32
    %v2099 = vpop.permute.xlu0 %2098
    %2102 = vrot.lane.b32.xlu0 %v2088, 48
    %v2103 = vpop.permute.xlu0 %2102
    %v2105 = vsel %vm245, %v1757, %v2095
    %v2106 = vsel %vm696, %v2105, %v2099
    %v2107 = vsel %vm698, %v2106, %v2103
    %v2108 = vrot.slane %v1653, 4
    %2109 = vrot.lane.b32.xlu0 %v2108, 64
    %v2110 = vpop.permute.xlu0 %2109
    %v2112 = vsel %vm245, %v2108, 0
    %v2115 = vsel %vm245, %v2110, 0
    %2117 = vmatprep.subr.bf16.mxu0 0
    %2118 = vmatpush1.bf16.xpose.msra.mxu0 %v2115
    %2119 = vmatprep.subr.bf16.mxu0 0
    %2120 = vmatpush1.bf16.xpose.msra.mxu0 0
    %2121 = vmatprep.subr.bf16.mxu0 0
    %2122 = vmatpush1.bf16.xpose.msra.mxu0 0
    %2123 = vmatprep.subr.bf16.mxu0 0
    %2124 = vmatpush1.bf16.xpose.msra.mxu0 0
    %2125 = vmatprep.subr.bf16.mxu0 0
    %2126 = vmatpush1.bf16.xpose.msra.mxu0 0
    %2127 = vmatprep.subr.bf16.mxu0 0
    %2128 = vmatpush1.bf16.xpose.msra.mxu0 0
    %2129 = vmatprep.subr.bf16.mxu0 0
    %2130 = vmatpush1.bf16.xpose.msra.mxu0 0
    %2131 = vmatprep.subr.bf16.mxu0 0
    %2132 = vmatpush1.bf16.xpose.msra.mxu0 0
    %2133 = vmatprep.subr.bf16.mxu0 0
    %2134 = vmatpush1.bf16.xpose.msra.mxu0 0
    %2135 = vmatprep.subr.bf16.mxu0 0
    %2136 = vmatpush1.bf16.xpose.msra.mxu0 0
    %2137 = vmatprep.subr.bf16.mxu0 0
    %2138 = vmatpush1.bf16.xpose.msra.mxu0 0
    %2139 = vmatprep.subr.bf16.mxu0 0
    %2140 = vmatpush1.bf16.xpose.msra.mxu0 0
    %2141 = vmatprep.subr.bf16.mxu0 0
    %2142 = vmatpush1.bf16.xpose.msra.mxu0 0
    %2143 = vmatprep.subr.bf16.mxu0 0
    %2144 = vmatpush1.bf16.xpose.msra.mxu0 0
    %2145 = vmatprep.subr.bf16.mxu0 0
    %2146 = vmatpush1.bf16.xpose.msra.mxu0 0
    %2147 = vmatprep.subr.bf16.mxu0 0
    %2148 = vmatpush1.bf16.xpose.msra.mxu0 0
    %2149 = vmatprep.mubr.bf16.mxu0 0
    %2150 = vmatmul.mubr.bf16.gmra.mrb[0].mxu0 %v2112
    %v2151 = vpop.f32.mrb[0].mxu0
    %v2152 = vadd.f32 %v131, %v2151
    %v2153 = vpop.f32.mrb[0].mxu0
    %v2154 = vpop.f32.mrb[0].mxu0
    %v2155 = vpop.f32.mrb[0].mxu0
    %2156 = vdwg.mxu0
    %v2157 = vsel %vm292, %v2152, -inf
    %2158 = vmax.xlane.f32.xlu0 %v2157
    %v2159 = vpop.xlane.xlu0 %2158
    %v2160 = vsub.f32 %v2152, %v2159
    %v2161 = vmul.f32 %v2160, 1.442695
    %v2162 = vpow.pop %v2161
    %v2163 = vsel %vm292, %v2162, 0.0
    %2164 = vadd.xlane.f32.xlu0 %v2163
    %v2165 = vpop.xlane.xlu0 %2164
    %v2166 = vrcp.pop %v2165
    %v2167 = vmul.f32 %v2162, %v2166
    %v2168 = vpack.c.bf16 %v2167, %v2167
    %v2169 = vrot.slane %v1654, 4
    %v2171 = vsel %vm292, %v2168, 0
    %v2174 = vsel %vm308, %v2169, 0
    %2176 = vmatprep.subr.bf16.mxu0 0
    %2177 = vmatpush1.bf16.msra.mxu0 %v2174
    %2178 = vmatprep.subr.bf16.mxu0 0
    %2179 = vmatpush1.bf16.msra.mxu0 0
    %2180 = vmatprep.subr.bf16.mxu0 0
    %2181 = vmatpush1.bf16.msra.mxu0 0
    %2182 = vmatprep.subr.bf16.mxu0 0
    %2183 = vmatpush1.bf16.msra.mxu0 0
    %2184 = vmatprep.subr.bf16.mxu0 0
    %2185 = vmatpush1.bf16.msra.mxu0 0
    %2186 = vmatprep.subr.bf16.mxu0 0
    %2187 = vmatpush1.bf16.msra.mxu0 0
    %2188 = vmatprep.subr.bf16.mxu0 0
    %2189 = vmatpush1.bf16.msra.mxu0 0
    %2190 = vmatprep.subr.bf16.mxu0 0
    %2191 = vmatpush1.bf16.msra.mxu0 0
    %2192 = vmatprep.subr.bf16.mxu0 0
    %2193 = vmatpush1.bf16.msra.mxu0 0
    %2194 = vmatprep.subr.bf16.mxu0 0
    %2195 = vmatpush1.bf16.msra.mxu0 0
    %2196 = vmatprep.subr.bf16.mxu0 0
    %2197 = vmatpush1.bf16.msra.mxu0 0
    %2198 = vmatprep.subr.bf16.mxu0 0
    %2199 = vmatpush1.bf16.msra.mxu0 0
    %2200 = vmatprep.subr.bf16.mxu0 0
    %2201 = vmatpush1.bf16.msra.mxu0 0
    %2202 = vmatprep.subr.bf16.mxu0 0
    %2203 = vmatpush1.bf16.msra.mxu0 0
    %2204 = vmatprep.subr.bf16.mxu0 0
    %2205 = vmatpush1.bf16.msra.mxu0 0
    %2206 = vmatprep.subr.bf16.mxu0 0
    %2207 = vmatpush1.bf16.msra.mxu0 0
    %2208 = vmatprep.mubr.bf16.mxu0 0
    %2209 = vmatmul.mubr.bf16.gmra.mrb[0].mxu0 %v2171
    %v2210 = vpop.f32.mrb[0].mxu0
    %v2211 = vadd.f32 0.0, %v2210
    %v2212 = vpop.f32.mrb[0].mxu0
    %v2213 = vpop.f32.mrb[0].mxu0
    %v2214 = vpop.f32.mrb[0].mxu0
    %2215 = vdwg.mxu0
    %2216 = vrot.lane.b32.xlu0 %v2108, 112
    %v2217 = vpop.permute.xlu0 %2216
    %2218 = vrot.lane.b32.xlu0 %v2108, 48
    %v2219 = vpop.permute.xlu0 %2218
    %v2221 = vsel %vm245, %v2217, 0
    %v2224 = vsel %vm245, %v2219, 0
    %2226 = vmatprep.subr.bf16.mxu0 0
    %2227 = vmatpush1.bf16.xpose.msra.mxu0 %v2224
    %2228 = vmatprep.subr.bf16.mxu0 0
    %2229 = vmatpush1.bf16.xpose.msra.mxu0 0
    %2230 = vmatprep.subr.bf16.mxu0 0
    %2231 = vmatpush1.bf16.xpose.msra.mxu0 0
    %2232 = vmatprep.subr.bf16.mxu0 0
    %2233 = vmatpush1.bf16.xpose.msra.mxu0 0
    %2234 = vmatprep.subr.bf16.mxu0 0
    %2235 = vmatpush1.bf16.xpose.msra.mxu0 0
    %2236 = vmatprep.subr.bf16.mxu0 0
    %2237 = vmatpush1.bf16.xpose.msra.mxu0 0
    %2238 = vmatprep.subr.bf16.mxu0 0
    %2239 = vmatpush1.bf16.xpose.msra.mxu0 0
    %2240 = vmatprep.subr.bf16.mxu0 0
    %2241 = vmatpush1.bf16.xpose.msra.mxu0 0
    %2242 = vmatprep.subr.bf16.mxu0 0
    %2243 = vmatpush1.bf16.xpose.msra.mxu0 0
    %2244 = vmatprep.subr.bf16.mxu0 0
    %2245 = vmatpush1.bf16.xpose.msra.mxu0 0
    %2246 = vmatprep.subr.bf16.mxu0 0
    %2247 = vmatpush1.bf16.xpose.msra.mxu0 0
    %2248 = vmatprep.subr.bf16.mxu0 0
    %2249 = vmatpush1.bf16.xpose.msra.mxu0 0
    %2250 = vmatprep.subr.bf16.mxu0 0
    %2251 = vmatpush1.bf16.xpose.msra.mxu0 0
    %2252 = vmatprep.subr.bf16.mxu0 0
    %2253 = vmatpush1.bf16.xpose.msra.mxu0 0
    %2254 = vmatprep.subr.bf16.mxu0 0
    %2255 = vmatpush1.bf16.xpose.msra.mxu0 0
    %2256 = vmatprep.subr.bf16.mxu0 0
    %2257 = vmatpush1.bf16.xpose.msra.mxu0 0
    %2258 = vmatprep.mubr.bf16.mxu0 0
    %2259 = vmatmul.mubr.bf16.gmra.mrb[0].mxu0 %v2221
    %v2260 = vpop.f32.mrb[0].mxu0
    %v2261 = vadd.f32 %v131, %v2260
    %v2262 = vpop.f32.mrb[0].mxu0
    %v2263 = vpop.f32.mrb[0].mxu0
    %v2264 = vpop.f32.mrb[0].mxu0
    %2265 = vdwg.mxu0
    %v2266 = vsel %vm292, %v2261, -inf
    %2267 = vmax.xlane.f32.xlu0 %v2266
    %v2268 = vpop.xlane.xlu0 %2267
    %v2269 = vsub.f32 %v2261, %v2268
    %v2270 = vmul.f32 %v2269, 1.442695
    %v2271 = vpow.pop %v2270
    %v2272 = vsel %vm292, %v2271, 0.0
    %2273 = vadd.xlane.f32.xlu0 %v2272
    %v2274 = vpop.xlane.xlu0 %2273
    %v2275 = vrcp.pop %v2274
    %v2276 = vmul.f32 %v2271, %v2275
    %v2277 = vpack.c.bf16 %v2276, %v2276
    %2278 = vrot.lane.b32.xlu0 %v2169, 112
    %v2279 = vpop.permute.xlu0 %2278
    %v2281 = vsel %vm292, %v2277, 0
    %v2284 = vsel %vm308, %v2279, 0
    %2286 = vmatprep.subr.bf16.mxu0 0
    %2287 = vmatpush1.bf16.msra.mxu0 %v2284
    %2288 = vmatprep.subr.bf16.mxu0 0
    %2289 = vmatpush1.bf16.msra.mxu0 0
    %2290 = vmatprep.subr.bf16.mxu0 0
    %2291 = vmatpush1.bf16.msra.mxu0 0
    %2292 = vmatprep.subr.bf16.mxu0 0
    %2293 = vmatpush1.bf16.msra.mxu0 0
    %2294 = vmatprep.subr.bf16.mxu0 0
    %2295 = vmatpush1.bf16.msra.mxu0 0
    %2296 = vmatprep.subr.bf16.mxu0 0
    %2297 = vmatpush1.bf16.msra.mxu0 0
    %2298 = vmatprep.subr.bf16.mxu0 0
    %2299 = vmatpush1.bf16.msra.mxu0 0
    %2300 = vmatprep.subr.bf16.mxu0 0
    %2301 = vmatpush1.bf16.msra.mxu0 0
    %2302 = vmatprep.subr.bf16.mxu0 0
    %2303 = vmatpush1.bf16.msra.mxu0 0
    %2304 = vmatprep.subr.bf16.mxu0 0
    %2305 = vmatpush1.bf16.msra.mxu0 0
    %2306 = vmatprep.subr.bf16.mxu0 0
    %2307 = vmatpush1.bf16.msra.mxu0 0
    %2308 = vmatprep.subr.bf16.mxu0 0
    %2309 = vmatpush1.bf16.msra.mxu0 0
    %2310 = vmatprep.subr.bf16.mxu0 0
    %2311 = vmatpush1.bf16.msra.mxu0 0
    %2312 = vmatprep.subr.bf16.mxu0 0
    %2313 = vmatpush1.bf16.msra.mxu0 0
    %2314 = vmatprep.subr.bf16.mxu0 0
    %2315 = vmatpush1.bf16.msra.mxu0 0
    %2316 = vmatprep.subr.bf16.mxu0 0
    %2317 = vmatpush1.bf16.msra.mxu0 0
    %2318 = vmatprep.mubr.bf16.mxu0 0
    %2319 = vmatmul.mubr.bf16.gmra.mrb[0].mxu0 %v2281
    %v2320 = vpop.f32.mrb[0].mxu0
    %v2321 = vadd.f32 0.0, %v2320
    %v2322 = vpop.f32.mrb[0].mxu0
    %v2323 = vpop.f32.mrb[0].mxu0
    %v2324 = vpop.f32.mrb[0].mxu0
    %2325 = vdwg.mxu0
    %2326 = vrot.lane.b32.xlu0 %v2108, 96
    %v2327 = vpop.permute.xlu0 %2326
    %2328 = vrot.lane.b32.xlu0 %v2108, 32
    %v2329 = vpop.permute.xlu0 %2328
    %v2331 = vsel %vm245, %v2327, 0
    %v2334 = vsel %vm245, %v2329, 0
    %2336 = vmatprep.subr.bf16.mxu0 0
    %2337 = vmatpush1.bf16.xpose.msra.mxu0 %v2334
    %2338 = vmatprep.subr.bf16.mxu0 0
    %2339 = vmatpush1.bf16.xpose.msra.mxu0 0
    %2340 = vmatprep.subr.bf16.mxu0 0
    %2341 = vmatpush1.bf16.xpose.msra.mxu0 0
    %2342 = vmatprep.subr.bf16.mxu0 0
    %2343 = vmatpush1.bf16.xpose.msra.mxu0 0
    %2344 = vmatprep.subr.bf16.mxu0 0
    %2345 = vmatpush1.bf16.xpose.msra.mxu0 0
    %2346 = vmatprep.subr.bf16.mxu0 0
    %2347 = vmatpush1.bf16.xpose.msra.mxu0 0
    %2348 = vmatprep.subr.bf16.mxu0 0
    %2349 = vmatpush1.bf16.xpose.msra.mxu0 0
    %2350 = vmatprep.subr.bf16.mxu0 0
    %2351 = vmatpush1.bf16.xpose.msra.mxu0 0
    %2352 = vmatprep.subr.bf16.mxu0 0
    %2353 = vmatpush1.bf16.xpose.msra.mxu0 0
    %2354 = vmatprep.subr.bf16.mxu0 0
    %2355 = vmatpush1.bf16.xpose.msra.mxu0 0
    %2356 = vmatprep.subr.bf16.mxu0 0
    %2357 = vmatpush1.bf16.xpose.msra.mxu0 0
    %2358 = vmatprep.subr.bf16.mxu0 0
    %2359 = vmatpush1.bf16.xpose.msra.mxu0 0
    %2360 = vmatprep.subr.bf16.mxu0 0
    %2361 = vmatpush1.bf16.xpose.msra.mxu0 0
    %2362 = vmatprep.subr.bf16.mxu0 0
    %2363 = vmatpush1.bf16.xpose.msra.mxu0 0
    %2364 = vmatprep.subr.bf16.mxu0 0
    %2365 = vmatpush1.bf16.xpose.msra.mxu0 0
    %2366 = vmatprep.subr.bf16.mxu0 0
    %2367 = vmatpush1.bf16.xpose.msra.mxu0 0
    %2368 = vmatprep.mubr.bf16.mxu0 0
    %2369 = vmatmul.mubr.bf16.gmra.mrb[0].mxu0 %v2331
    %v2370 = vpop.f32.mrb[0].mxu0
    %v2371 = vadd.f32 %v131, %v2370
    %v2372 = vpop.f32.mrb[0].mxu0
    %v2373 = vpop.f32.mrb[0].mxu0
    %v2374 = vpop.f32.mrb[0].mxu0
    %2375 = vdwg.mxu0
    %v2376 = vsel %vm292, %v2371, -inf
    %2377 = vmax.xlane.f32.xlu0 %v2376
    %v2378 = vpop.xlane.xlu0 %2377
    %v2379 = vsub.f32 %v2371, %v2378
    %v2380 = vmul.f32 %v2379, 1.442695
    %v2381 = vpow.pop %v2380
    %v2382 = vsel %vm292, %v2381, 0.0
    %2383 = vadd.xlane.f32.xlu0 %v2382
    %v2384 = vpop.xlane.xlu0 %2383
    %v2385 = vrcp.pop %v2384
    %v2386 = vmul.f32 %v2381, %v2385
    %v2387 = vpack.c.bf16 %v2386, %v2386
    %2388 = vrot.lane.b32.xlu0 %v2169, 96
    %v2389 = vpop.permute.xlu0 %2388
    %v2391 = vsel %vm292, %v2387, 0
    %v2394 = vsel %vm308, %v2389, 0
    %2396 = vmatprep.subr.bf16.mxu0 0
    %2397 = vmatpush1.bf16.msra.mxu0 %v2394
    %2398 = vmatprep.subr.bf16.mxu0 0
    %2399 = vmatpush1.bf16.msra.mxu0 0
    %2400 = vmatprep.subr.bf16.mxu0 0
    %2401 = vmatpush1.bf16.msra.mxu0 0
    %2402 = vmatprep.subr.bf16.mxu0 0
    %2403 = vmatpush1.bf16.msra.mxu0 0
    %2404 = vmatprep.subr.bf16.mxu0 0
    %2405 = vmatpush1.bf16.msra.mxu0 0
    %2406 = vmatprep.subr.bf16.mxu0 0
    %2407 = vmatpush1.bf16.msra.mxu0 0
    %2408 = vmatprep.subr.bf16.mxu0 0
    %2409 = vmatpush1.bf16.msra.mxu0 0
    %2410 = vmatprep.subr.bf16.mxu0 0
    %2411 = vmatpush1.bf16.msra.mxu0 0
    %2412 = vmatprep.subr.bf16.mxu0 0
    %2413 = vmatpush1.bf16.msra.mxu0 0
    %2414 = vmatprep.subr.bf16.mxu0 0
    %2415 = vmatpush1.bf16.msra.mxu0 0
    %2416 = vmatprep.subr.bf16.mxu0 0
    %2417 = vmatpush1.bf16.msra.mxu0 0
    %2418 = vmatprep.subr.bf16.mxu0 0
    %2419 = vmatpush1.bf16.msra.mxu0 0
    %2420 = vmatprep.subr.bf16.mxu0 0
    %2421 = vmatpush1.bf16.msra.mxu0 0
    %2422 = vmatprep.subr.bf16.mxu0 0
    %2423 = vmatpush1.bf16.msra.mxu0 0
    %2424 = vmatprep.subr.bf16.mxu0 0
    %2425 = vmatpush1.bf16.msra.mxu0 0
    %2426 = vmatprep.subr.bf16.mxu0 0
    %2427 = vmatpush1.bf16.msra.mxu0 0
    %2428 = vmatprep.mubr.bf16.mxu0 0
    %2429 = vmatmul.mubr.bf16.gmra.mrb[0].mxu0 %v2391
    %v2430 = vpop.f32.mrb[0].mxu0
    %v2431 = vadd.f32 0.0, %v2430
    %v2432 = vpop.f32.mrb[0].mxu0
    %v2433 = vpop.f32.mrb[0].mxu0
    %v2434 = vpop.f32.mrb[0].mxu0
    %2435 = vdwg.mxu0
    %2436 = vrot.lane.b32.xlu0 %v2108, 80
    %v2437 = vpop.permute.xlu0 %2436
    %2438 = vrot.lane.b32.xlu0 %v2108, 16
    %v2439 = vpop.permute.xlu0 %2438
    %v2441 = vsel %vm245, %v2437, 0
    %v2444 = vsel %vm245, %v2439, 0
    %2446 = vmatprep.subr.bf16.mxu0 0
    %2447 = vmatpush1.bf16.xpose.msra.mxu0 %v2444
    %2448 = vmatprep.subr.bf16.mxu0 0
    %2449 = vmatpush1.bf16.xpose.msra.mxu0 0
    %2450 = vmatprep.subr.bf16.mxu0 0
    %2451 = vmatpush1.bf16.xpose.msra.mxu0 0
    %2452 = vmatprep.subr.bf16.mxu0 0
    %2453 = vmatpush1.bf16.xpose.msra.mxu0 0
    %2454 = vmatprep.subr.bf16.mxu0 0
    %2455 = vmatpush1.bf16.xpose.msra.mxu0 0
    %2456 = vmatprep.subr.bf16.mxu0 0
    %2457 = vmatpush1.bf16.xpose.msra.mxu0 0
    %2458 = vmatprep.subr.bf16.mxu0 0
    %2459 = vmatpush1.bf16.xpose.msra.mxu0 0
    %2460 = vmatprep.subr.bf16.mxu0 0
    %2461 = vmatpush1.bf16.xpose.msra.mxu0 0
    %2462 = vmatprep.subr.bf16.mxu0 0
    %2463 = vmatpush1.bf16.xpose.msra.mxu0 0
    %2464 = vmatprep.subr.bf16.mxu0 0
    %2465 = vmatpush1.bf16.xpose.msra.mxu0 0
    %2466 = vmatprep.subr.bf16.mxu0 0
    %2467 = vmatpush1.bf16.xpose.msra.mxu0 0
    %2468 = vmatprep.subr.bf16.mxu0 0
    %2469 = vmatpush1.bf16.xpose.msra.mxu0 0
    %2470 = vmatprep.subr.bf16.mxu0 0
    %2471 = vmatpush1.bf16.xpose.msra.mxu0 0
    %2472 = vmatprep.subr.bf16.mxu0 0
    %2473 = vmatpush1.bf16.xpose.msra.mxu0 0
    %2474 = vmatprep.subr.bf16.mxu0 0
    %2475 = vmatpush1.bf16.xpose.msra.mxu0 0
    %2476 = vmatprep.subr.bf16.mxu0 0
    %2477 = vmatpush1.bf16.xpose.msra.mxu0 0
    %2478 = vmatprep.mubr.bf16.mxu0 0
    %2479 = vmatmul.mubr.bf16.gmra.mrb[0].mxu0 %v2441
    %v2480 = vpop.f32.mrb[0].mxu0
    %v2481 = vadd.f32 %v131, %v2480
    %v2482 = vpop.f32.mrb[0].mxu0
    %v2483 = vpop.f32.mrb[0].mxu0
    %v2484 = vpop.f32.mrb[0].mxu0
    %2485 = vdwg.mxu0
    %v2486 = vsel %vm292, %v2481, -inf
    %2487 = vmax.xlane.f32.xlu0 %v2486
    %v2488 = vpop.xlane.xlu0 %2487
    %v2489 = vsub.f32 %v2481, %v2488
    %v2490 = vmul.f32 %v2489, 1.442695
    %v2491 = vpow.pop %v2490
    %v2492 = vsel %vm292, %v2491, 0.0
    %2493 = vadd.xlane.f32.xlu0 %v2492
    %v2494 = vpop.xlane.xlu0 %2493
    %v2495 = vrcp.pop %v2494
    %v2496 = vmul.f32 %v2491, %v2495
    %v2497 = vpack.c.bf16 %v2496, %v2496
    %2498 = vrot.lane.b32.xlu0 %v2169, 80
    %v2499 = vpop.permute.xlu0 %2498
    %v2501 = vsel %vm292, %v2497, 0
    %v2504 = vsel %vm308, %v2499, 0
    %2506 = vmatprep.subr.bf16.mxu0 0
    %2507 = vmatpush1.bf16.msra.mxu0 %v2504
    %2508 = vmatprep.subr.bf16.mxu0 0
    %2509 = vmatpush1.bf16.msra.mxu0 0
    %2510 = vmatprep.subr.bf16.mxu0 0
    %2511 = vmatpush1.bf16.msra.mxu0 0
    %2512 = vmatprep.subr.bf16.mxu0 0
    %2513 = vmatpush1.bf16.msra.mxu0 0
    %2514 = vmatprep.subr.bf16.mxu0 0
    %2515 = vmatpush1.bf16.msra.mxu0 0
    %2516 = vmatprep.subr.bf16.mxu0 0
    %2517 = vmatpush1.bf16.msra.mxu0 0
    %2518 = vmatprep.subr.bf16.mxu0 0
    %2519 = vmatpush1.bf16.msra.mxu0 0
    %2520 = vmatprep.subr.bf16.mxu0 0
    %2521 = vmatpush1.bf16.msra.mxu0 0
    %2522 = vmatprep.subr.bf16.mxu0 0
    %2523 = vmatpush1.bf16.msra.mxu0 0
    %2524 = vmatprep.subr.bf16.mxu0 0
    %2525 = vmatpush1.bf16.msra.mxu0 0
    %2526 = vmatprep.subr.bf16.mxu0 0
    %2527 = vmatpush1.bf16.msra.mxu0 0
    %2528 = vmatprep.subr.bf16.mxu0 0
    %2529 = vmatpush1.bf16.msra.mxu0 0
    %2530 = vmatprep.subr.bf16.mxu0 0
    %2531 = vmatpush1.bf16.msra.mxu0 0
    %2532 = vmatprep.subr.bf16.mxu0 0
    %2533 = vmatpush1.bf16.msra.mxu0 0
    %2534 = vmatprep.subr.bf16.mxu0 0
    %2535 = vmatpush1.bf16.msra.mxu0 0
    %2536 = vmatprep.subr.bf16.mxu0 0
    %2537 = vmatpush1.bf16.msra.mxu0 0
    %2538 = vmatprep.mubr.bf16.mxu0 0
    %2539 = vmatmul.mubr.bf16.gmra.mrb[0].mxu0 %v2501
    %v2540 = vpop.f32.mrb[0].mxu0
    %v2541 = vadd.f32 0.0, %v2540
    %v2542 = vpop.f32.mrb[0].mxu0
    %v2543 = vpop.f32.mrb[0].mxu0
    %v2544 = vpop.f32.mrb[0].mxu0
    %2545 = vdwg.mxu0
    %2547 = vrot.lane.b32.xlu0 %v2321, 16
    %v2548 = vpop.permute.xlu0 %2547
    %2551 = vrot.lane.b32.xlu0 %v2431, 32
    %v2552 = vpop.permute.xlu0 %2551
    %2555 = vrot.lane.b32.xlu0 %v2541, 48
    %v2556 = vpop.permute.xlu0 %2555
    %v2558 = vsel %vm245, %v2211, %v2548
    %v2559 = vsel %vm696, %v2558, %v2552
    %v2560 = vsel %vm698, %v2559, %v2556
    %v2561 = vpack.c.bf16 %v2560, %v2107
    %s2562 = scalar_lea.vmem %s6, 32
    %v2563 = vld [vmem:[%s2562] sm:$0xf]
    %v2564 = vld [vmem:[%s2562 + $0x4] sm:$0xf]
    %v2565 = vld [vmem:[%s2562 + $0x8] sm:$0xf]
    %v2566 = vld [vmem:[%s2562 + $0xc] sm:$0xf]
    %v2567 = vld [vmem:[%s2562 + $0x10] sm:$0xf]
    %v2568 = vld [vmem:[%s2562 + $0x14] sm:$0xf]
    %v2569 = vld [vmem:[%s2562 + $0x18] sm:$0xf]
    %v2570 = vld [vmem:[%s2562 + $0x1c] sm:$0xf]
    %s2571 = scalar_lea.vmem %s7, 1
    %v2572 = vld [vmem:[%s2571] sm:$0x1]
    %v2574 = vlaneseq
    %v2575 = vshrl.u32 %v2574, 7
    %v2576 = vsub.s32 0, %v2575
    %v2577 = vrot.slane %v2572, %v2576
    %v2587 = vunpack.c.l.b16 %v2563
    %v2588 = vunpack.c.l.b16 %v2564
    %v2589 = vunpack.c.l.b16 %v2565
    %v2590 = vunpack.c.l.b16 %v2566
    %v2591 = vunpack.c.l.b16 %v2567
    %v2592 = vunpack.c.l.b16 %v2568
    %v2593 = vunpack.c.l.b16 %v2569
    %v2594 = vunpack.c.l.b16 %v2570
    %v2595 = vpack.c.b16 %v2588, %v2587
    %v2596 = vpack.c.b16 %v2590, %v2589
    %v2597 = vpack.c.b16 %v2592, %v2591
    %v2598 = vpack.c.b16 %v2594, %v2593
    %v2604 = vsel %vm74, %v2561, 0
    %2606 = vmatprep.subr.bf16.mxu0 0
    %2607 = vmatpush1.bf16.msra.mxu0 %v2595
    %2608 = vmatprep.subr.bf16.mxu0 0
    %2609 = vmatpush1.bf16.msra.mxu0 %v2596
    %2610 = vmatprep.subr.bf16.mxu0 0
    %2611 = vmatpush1.bf16.msra.mxu0 %v2597
    %2612 = vmatprep.subr.bf16.mxu0 0
    %2613 = vmatpush1.bf16.msra.mxu0 %v2598
    %2614 = vmatprep.subr.bf16.mxu0 0
    %2615 = vmatpush1.bf16.msra.mxu0 0
    %2616 = vmatprep.subr.bf16.mxu0 0
    %2617 = vmatpush1.bf16.msra.mxu0 0
    %2618 = vmatprep.subr.bf16.mxu0 0
    %2619 = vmatpush1.bf16.msra.mxu0 0
    %2620 = vmatprep.subr.bf16.mxu0 0
    %2621 = vmatpush1.bf16.msra.mxu0 0
    %2622 = vmatprep.subr.bf16.mxu0 0
    %2623 = vmatpush1.bf16.msra.mxu0 0
    %2624 = vmatprep.subr.bf16.mxu0 0
    %2625 = vmatpush1.bf16.msra.mxu0 0
    %2626 = vmatprep.subr.bf16.mxu0 0
    %2627 = vmatpush1.bf16.msra.mxu0 0
    %2628 = vmatprep.subr.bf16.mxu0 0
    %2629 = vmatpush1.bf16.msra.mxu0 0
    %2630 = vmatprep.subr.bf16.mxu0 0
    %2631 = vmatpush1.bf16.msra.mxu0 0
    %2632 = vmatprep.subr.bf16.mxu0 0
    %2633 = vmatpush1.bf16.msra.mxu0 0
    %2634 = vmatprep.subr.bf16.mxu0 0
    %2635 = vmatpush1.bf16.msra.mxu0 0
    %2636 = vmatprep.subr.bf16.mxu0 0
    %2637 = vmatpush1.bf16.msra.mxu0 0
    %2638 = vmatprep.mubr.bf16.mxu0 0
    %2639 = vmatmul.mubr.bf16.gmra.mrb[0].mxu0 %v2604
    %v2640 = vpop.f32.mrb[0].mxu0
    %v2641 = vadd.f32 %v2577, %v2640
    %v2642 = vpop.f32.mrb[0].mxu0
    %v2643 = vpop.f32.mrb[0].mxu0
    %v2644 = vadd.f32 %v2577, %v2643
    %v2645 = vpop.f32.mrb[0].mxu0
    %2646 = vdwg.mxu0
    %v2647 = vadd.f32 %v2641, %v1542
    %v2648 = vadd.f32 %v2644, %v1543
    %s2649 = scalar_lea.vmem %s8, 1
    %v2650 = vld [vmem:[%s2649] sm:$0x1]
    %s2651 = scalar_lea.vmem %s9, 1
    %v2652 = vld [vmem:[%s2651] sm:$0x1]
    %v2653 = vsel %vm74, %v2647, 0.0
    %2654 = vadd.xlane.f32.xlu0 %v2653
    %v2655 = vpop.xlane.xlu0 %2654
    %v2656 = vsel %vm74, %v2648, 0.0
    %2657 = vadd.xlane.f32.xlu0 %v2656
    %v2658 = vpop.xlane.xlu0 %2657
    %v2659 = vmul.f32 %v2655, %v81
    %v2660 = vmul.f32 %v2658, %v81
    %v2661 = vsub.f32 %v2647, %v2659
    %v2662 = vsub.f32 %v2648, %v2660
    %v2663 = vmul.f32 %v2661, %v2661
    %v2664 = vmul.f32 %v2662, %v2662
    %v2665 = vsel %vm74, %v2663, 0.0
    %2666 = vadd.xlane.f32.xlu0 %v2665
    %v2667 = vpop.xlane.xlu0 %2666
    %v2668 = vsel %vm74, %v2664, 0.0
    %2669 = vadd.xlane.f32.xlu0 %v2668
    %v2670 = vpop.xlane.xlu0 %2669
    %v2671 = vmul.f32 %v2667, %v81
    %v2672 = vmul.f32 %v2670, %v81
    %v2673 = vadd.f32 %v2671, 1e-05
    %v2674 = vadd.f32 %v2672, 1e-05
    %v2675 = vrsqrt.pop %v2673
    %v2676 = vrsqrt.pop %v2674
    %v2677 = vmul.f32 %v2661, %v2675
    %v2678 = vmul.f32 %v2662, %v2676
    %v2680 = vlaneseq
    %v2681 = vshrl.u32 %v2680, 7
    %v2682 = vsub.s32 0, %v2681
    %v2683 = vrot.slane %v2650, %v2682
    %v2685 = vmul.f32 %v2677, %v2683
    %v2686 = vmul.f32 %v2678, %v2683
    %v2688 = vlaneseq
    %v2689 = vshrl.u32 %v2688, 7
    %v2690 = vsub.s32 0, %v2689
    %v2691 = vrot.slane %v2652, %v2690
    %v2693 = vadd.f32 %v2685, %v2691
    %v2694 = vadd.f32 %v2686, %v2691
    %v2695 = vpack.c.bf16 %v2694, %v2693
    %s2696 = scalar_lea.vmem %s10, 32
    %v2697 = vld [vmem:[%s2696] sm:$0xf]
    %v2698 = vld [vmem:[%s2696 + $0x4] sm:$0xf]
    %v2699 = vld [vmem:[%s2696 + $0x8] sm:$0xf]
    %v2700 = vld [vmem:[%s2696 + $0xc] sm:$0xf]
    %v2701 = vld [vmem:[%s2696 + $0x10] sm:$0xf]
    %v2702 = vld [vmem:[%s2696 + $0x14] sm:$0xf]
    %v2703 = vld [vmem:[%s2696 + $0x18] sm:$0xf]
    %v2704 = vld [vmem:[%s2696 + $0x1c] sm:$0xf]
    %s2705 = scalar_lea.vmem %s11, 1
    %v2706 = vld [vmem:[%s2705] sm:$0x1]
    %v2708 = vlaneseq
    %v2709 = vshrl.u32 %v2708, 7
    %v2710 = vsub.s32 0, %v2709
    %v2711 = vrot.slane %v2706, %v2710
    %v2721 = vunpack.c.l.b16 %v2697
    %v2722 = vunpack.c.l.b16 %v2698
    %v2723 = vunpack.c.l.b16 %v2699
    %v2724 = vunpack.c.l.b16 %v2700
    %v2725 = vunpack.c.l.b16 %v2701
    %v2726 = vunpack.c.l.b16 %v2702
    %v2727 = vunpack.c.l.b16 %v2703
    %v2728 = vunpack.c.l.b16 %v2704
    %v2729 = vpack.c.b16 %v2722, %v2721
    %v2730 = vpack.c.b16 %v2724, %v2723
    %v2731 = vpack.c.b16 %v2726, %v2725
    %v2732 = vpack.c.b16 %v2728, %v2727
    %v2738 = vsel %vm74, %v2695, 0
    %2740 = vmatprep.subr.bf16.mxu0 0
    %2741 = vmatpush1.bf16.msra.mxu0 %v2729
    %2742 = vmatprep.subr.bf16.mxu0 0
    %2743 = vmatpush1.bf16.msra.mxu0 %v2730
    %2744 = vmatprep.subr.bf16.mxu0 0
    %2745 = vmatpush1.bf16.msra.mxu0 %v2731
    %2746 = vmatprep.subr.bf16.mxu0 0
    %2747 = vmatpush1.bf16.msra.mxu0 %v2732
    %2748 = vmatprep.subr.bf16.mxu0 0
    %2749 = vmatpush1.bf16.msra.mxu0 0
    %2750 = vmatprep.subr.bf16.mxu0 0
    %2751 = vmatpush1.bf16.msra.mxu0 0
    %2752 = vmatprep.subr.bf16.mxu0 0
    %2753 = vmatpush1.bf16.msra.mxu0 0
    %2754 = vmatprep.subr.bf16.mxu0 0
    %2755 = vmatpush1.bf16.msra.mxu0 0
    %2756 = vmatprep.subr.bf16.mxu0 0
    %2757 = vmatpush1.bf16.msra.mxu0 0
    %2758 = vmatprep.subr.bf16.mxu0 0
    %2759 = vmatpush1.bf16.msra.mxu0 0
    %2760 = vmatprep.subr.bf16.mxu0 0
    %2761 = vmatpush1.bf16.msra.mxu0 0
    %2762 = vmatprep.subr.bf16.mxu0 0
    %2763 = vmatpush1.bf16.msra.mxu0 0
    %2764 = vmatprep.subr.bf16.mxu0 0
    %2765 = vmatpush1.bf16.msra.mxu0 0
    %2766 = vmatprep.subr.bf16.mxu0 0
    %2767 = vmatpush1.bf16.msra.mxu0 0
    %2768 = vmatprep.subr.bf16.mxu0 0
    %2769 = vmatpush1.bf16.msra.mxu0 0
    %2770 = vmatprep.subr.bf16.mxu0 0
    %2771 = vmatpush1.bf16.msra.mxu0 0
    %2772 = vmatprep.mubr.bf16.mxu0 0
    %2773 = vmatmul.mubr.bf16.gmra.mrb[0].mxu0 %v2738
    %v2774 = vpop.f32.mrb[0].mxu0
    %v2775 = vadd.f32 %v2711, %v2774
    %v2776 = vpop.f32.mrb[0].mxu0
    %v2777 = vpop.f32.mrb[0].mxu0
    %v2778 = vadd.f32 %v2711, %v2777
    %v2779 = vpop.f32.mrb[0].mxu0
    %2780 = vdwg.mxu0
    %v2781 = vmul.f32 %v2775, 0.5
    %v2782 = vmul.f32 %v2778, 0.5
    %v2783 = vmul.f32 %v2775, 0.044715
    %v2784 = vmul.f32 %v2778, 0.044715
    %v2785 = vmul.f32 %v2783, %v2775
    %v2786 = vmul.f32 %v2784, %v2778
    %v2787 = vmul.f32 %v2785, %v2775
    %v2788 = vmul.f32 %v2786, %v2778
    %v2789 = vadd.f32 %v2775, %v2787
    %v2790 = vadd.f32 %v2778, %v2788
    %v2791 = vmul.f32 %v2789, 0.7978846
    %v2792 = vmul.f32 %v2790, 0.7978846
    %v2793 = vtanh.pop %v2791
    %v2794 = vtanh.pop %v2792
    %v2795 = vadd.f32 %v2793, 1.0
    %v2796 = vadd.f32 %v2794, 1.0
    %v2797 = vmul.f32 %v2781, %v2795
    %v2798 = vmul.f32 %v2782, %v2796
    %v2799 = vpack.c.bf16 %v2798, %v2797
    %s2800 = scalar_lea.vmem %s12, 64
    %v2801 = vld [vmem:[%s2800] sm:$0xf]
    %v2802 = vld [vmem:[%s2800 + $0x4] sm:$0xf]
    %v2803 = vld [vmem:[%s2800 + $0x8] sm:$0xf]
    %v2804 = vld [vmem:[%s2800 + $0xc] sm:$0xf]
    %v2805 = vld [vmem:[%s2800 + $0x10] sm:$0xf]
    %v2806 = vld [vmem:[%s2800 + $0x14] sm:$0xf]
    %v2807 = vld [vmem:[%s2800 + $0x18] sm:$0xf]
    %v2808 = vld [vmem:[%s2800 + $0x1c] sm:$0xf]
    %v2809 = vld [vmem:[%s2800 + $0x20] sm:$0xf]
    %v2810 = vld [vmem:[%s2800 + $0x24] sm:$0xf]
    %v2811 = vld [vmem:[%s2800 + $0x28] sm:$0xf]
    %v2812 = vld [vmem:[%s2800 + $0x2c] sm:$0xf]
    %v2813 = vld [vmem:[%s2800 + $0x30] sm:$0xf]
    %v2814 = vld [vmem:[%s2800 + $0x34] sm:$0xf]
    %v2815 = vld [vmem:[%s2800 + $0x38] sm:$0xf]
    %v2816 = vld [vmem:[%s2800 + $0x3c] sm:$0xf]
    %s2817 = scalar_lea.vmem %s13, 1
    %v2818 = vld [vmem:[%s2817] sm:$0x1]
    %v2820 = vlaneseq
    %v2821 = vshrl.u32 %v2820, 7
    %v2822 = vsub.s32 0, %v2821
    %v2823 = vrot.slane %v2818, %v2822
    %v2841 = vunpack.c.l.b16 %v2801
    %v2842 = vunpack.c.l.b16 %v2802
    %v2843 = vunpack.c.l.b16 %v2803
    %v2844 = vunpack.c.l.b16 %v2804
    %v2845 = vunpack.c.l.b16 %v2805
    %v2846 = vunpack.c.l.b16 %v2806
    %v2847 = vunpack.c.l.b16 %v2807
    %v2848 = vunpack.c.l.b16 %v2808
    %v2849 = vunpack.c.l.b16 %v2809
    %v2850 = vunpack.c.l.b16 %v2810
    %v2851 = vunpack.c.l.b16 %v2811
    %v2852 = vunpack.c.l.b16 %v2812
    %v2853 = vunpack.c.l.b16 %v2813
    %v2854 = vunpack.c.l.b16 %v2814
    %v2855 = vunpack.c.l.b16 %v2815
    %v2856 = vunpack.c.l.b16 %v2816
    %v2857 = vpack.c.b16 %v2842, %v2841
    %v2858 = vpack.c.b16 %v2844, %v2843
    %v2859 = vpack.c.b16 %v2846, %v2845
    %v2860 = vpack.c.b16 %v2848, %v2847
    %v2861 = vpack.c.b16 %v2850, %v2849
    %v2862 = vpack.c.b16 %v2852, %v2851
    %v2863 = vpack.c.b16 %v2854, %v2853
    %v2864 = vpack.c.b16 %v2856, %v2855
    %2873 = vmatprep.subr.bf16.mxu0 0
    %2874 = vmatpush1.bf16.msra.mxu0 %v2857
    %2875 = vmatprep.subr.bf16.mxu0 0
    %2876 = vmatpush1.bf16.msra.mxu0 %v2858
    %2877 = vmatprep.subr.bf16.mxu0 0
    %2878 = vmatpush1.bf16.msra.mxu0 %v2859
    %2879 = vmatprep.subr.bf16.mxu0 0
    %2880 = vmatpush1.bf16.msra.mxu0 %v2860
    %2881 = vmatprep.subr.bf16.mxu0 0
    %2882 = vmatpush1.bf16.msra.mxu0 %v2861
    %2883 = vmatprep.subr.bf16.mxu0 0
    %2884 = vmatpush1.bf16.msra.mxu0 %v2862
    %2885 = vmatprep.subr.bf16.mxu0 0
    %2886 = vmatpush1.bf16.msra.mxu0 %v2863
    %2887 = vmatprep.subr.bf16.mxu0 0
    %2888 = vmatpush1.bf16.msra.mxu0 %v2864
    %2889 = vmatprep.subr.bf16.mxu0 0
    %2890 = vmatpush1.bf16.msra.mxu0 0
    %2891 = vmatprep.subr.bf16.mxu0 0
    %2892 = vmatpush1.bf16.msra.mxu0 0
    %2893 = vmatprep.subr.bf16.mxu0 0
    %2894 = vmatpush1.bf16.msra.mxu0 0
    %2895 = vmatprep.subr.bf16.mxu0 0
    %2896 = vmatpush1.bf16.msra.mxu0 0
    %2897 = vmatprep.subr.bf16.mxu0 0
    %2898 = vmatpush1.bf16.msra.mxu0 0
    %2899 = vmatprep.subr.bf16.mxu0 0
    %2900 = vmatpush1.bf16.msra.mxu0 0
    %2901 = vmatprep.subr.bf16.mxu0 0
    %2902 = vmatpush1.bf16.msra.mxu0 0
    %2903 = vmatprep.subr.bf16.mxu0 0
    %2904 = vmatpush1.bf16.msra.mxu0 0
    %2905 = vmatprep.mubr.bf16.mxu0 0
    %2906 = vmatmul.mubr.bf16.gmra.mrb[0].mxu0 %v2799
    %v2907 = vpop.f32.mrb[0].mxu0
    %v2908 = vadd.f32 %v2823, %v2907
    %v2909 = vpop.f32.mrb[0].mxu0
    %v2910 = vpop.f32.mrb[0].mxu0
    %v2911 = vadd.f32 %v2823, %v2910
    %v2912 = vpop.f32.mrb[0].mxu0
    %2913 = vdwg.mxu0
    %v2914 = vadd.f32 %v2908, %v2693
    %v2915 = vadd.f32 %v2911, %v2694
    %s2916 = scalar_lea.vmem %s14, 1
    %v2917 = vld [vmem:[%s2916] sm:$0x1]
    %s2918 = scalar_lea.vmem %s15, 1
    %v2919 = vld [vmem:[%s2918] sm:$0x1]
    %v2920 = vsel %vm74, %v2914, 0.0
    %2921 = vadd.xlane.f32.xlu0 %v2920
    %v2922 = vpop.xlane.xlu0 %2921
    %v2923 = vsel %vm74, %v2915, 0.0
    %2924 = vadd.xlane.f32.xlu0 %v2923
    %v2925 = vpop.xlane.xlu0 %2924
    %v2926 = vmul.f32 %v2922, %v81
    %v2927 = vmul.f32 %v2925, %v81
    %v2928 = vsub.f32 %v2914, %v2926
    %v2929 = vsub.f32 %v2915, %v2927
    %v2930 = vmul.f32 %v2928, %v2928
    %v2931 = vmul.f32 %v2929, %v2929
    %v2932 = vsel %vm74, %v2930, 0.0
    %2933 = vadd.xlane.f32.xlu0 %v2932
    %v2934 = vpop.xlane.xlu0 %2933
    %v2935 = vsel %vm74, %v2931, 0.0
    %2936 = vadd.xlane.f32.xlu0 %v2935
    %v2937 = vpop.xlane.xlu0 %2936
    %v2938 = vmul.f32 %v2934, %v81
    %v2939 = vmul.f32 %v2937, %v81
    %v2940 = vadd.f32 %v2938, 1e-05
    %v2941 = vadd.f32 %v2939, 1e-05
    %v2942 = vrsqrt.pop %v2940
    %v2943 = vrsqrt.pop %v2941
    %v2944 = vmul.f32 %v2928, %v2942
    %v2945 = vmul.f32 %v2929, %v2943
    %v2947 = vlaneseq
    %v2948 = vshrl.u32 %v2947, 7
    %v2949 = vsub.s32 0, %v2948
    %v2950 = vrot.slane %v2917, %v2949
    %v2952 = vmul.f32 %v2944, %v2950
    %v2953 = vmul.f32 %v2945, %v2950
    %v2955 = vlaneseq
    %v2956 = vshrl.u32 %v2955, 7
    %v2957 = vsub.s32 0, %v2956
    %v2958 = vrot.slane %v2919, %v2957
    %v2960 = vadd.f32 %v2952, %v2958
    %v2961 = vadd.f32 %v2953, %v2958
    %v2963 = vrot.slane %v2961, 7
    %vm2965 = vcmask 1040384
    %v2966 = vsel %vm2965, %v2960, %v2963
    %v2967 = vpack.c.bf16 %v2966, %v2966
    %v2968 = vld [vmem:[%s16] sm:$0xf]
    %v2969 = vld [vmem:[%s16 + $0x4] sm:$0xf]
    %v2970 = vld [vmem:[%s16 + $0x8] sm:$0xf]
    %v2971 = vld [vmem:[%s16 + $0xc] sm:$0xf]
    %v2972 = vld [vmem:[%s16 + $0x10] sm:$0xf]
    %v2973 = vld [vmem:[%s16 + $0x14] sm:$0xf]
    %v2974 = vld [vmem:[%s16 + $0x18] sm:$0xf]
    %v2975 = vld [vmem:[%s16 + $0x1c] sm:$0xf]
    %v2976 = vld [vmem:[%s17] sm:$0x1]
    %v2978 = vlaneseq
    %v2979 = vshrl.u32 %v2978, 7
    %v2980 = vsub.s32 0, %v2979
    %v2981 = vrot.slane %v2976, %v2980
    %v2991 = vunpack.c.l.b16 %v2968
    %v2992 = vunpack.c.l.b16 %v2969
    %v2993 = vunpack.c.l.b16 %v2970
    %v2994 = vunpack.c.l.b16 %v2971
    %v2995 = vunpack.c.l.b16 %v2972
    %v2996 = vunpack.c.l.b16 %v2973
    %v2997 = vunpack.c.l.b16 %v2974
    %v2998 = vunpack.c.l.b16 %v2975
    %v2999 = vpack.c.b16 %v2992, %v2991
    %v3000 = vpack.c.b16 %v2994, %v2993
    %v3001 = vpack.c.b16 %v2996, %v2995
    %v3002 = vpack.c.b16 %v2998, %v2997
    %v3008 = vsel %vm74, %v2967, 0
    %3010 = vmatprep.subr.bf16.mxu0 0
    %3011 = vmatpush1.bf16.msra.mxu0 %v2999
    %3012 = vmatprep.subr.bf16.mxu0 0
    %3013 = vmatpush1.bf16.msra.mxu0 %v3000
    %3014 = vmatprep.subr.bf16.mxu0 0
    %3015 = vmatpush1.bf16.msra.mxu0 %v3001
    %3016 = vmatprep.subr.bf16.mxu0 0
    %3017 = vmatpush1.bf16.msra.mxu0 %v3002
    %3018 = vmatprep.subr.bf16.mxu0 0
    %3019 = vmatpush1.bf16.msra.mxu0 0
    %3020 = vmatprep.subr.bf16.mxu0 0
    %3021 = vmatpush1.bf16.msra.mxu0 0
    %3022 = vmatprep.subr.bf16.mxu0 0
    %3023 = vmatpush1.bf16.msra.mxu0 0
    %3024 = vmatprep.subr.bf16.mxu0 0
    %3025 = vmatpush1.bf16.msra.mxu0 0
    %3026 = vmatprep.subr.bf16.mxu0 0
    %3027 = vmatpush1.bf16.msra.mxu0 0
    %3028 = vmatprep.subr.bf16.mxu0 0
    %3029 = vmatpush1.bf16.msra.mxu0 0
    %3030 = vmatprep.subr.bf16.mxu0 0
    %3031 = vmatpush1.bf16.msra.mxu0 0
    %3032 = vmatprep.subr.bf16.mxu0 0
    %3033 = vmatpush1.bf16.msra.mxu0 0
    %3034 = vmatprep.subr.bf16.mxu0 0
    %3035 = vmatpush1.bf16.msra.mxu0 0
    %3036 = vmatprep.subr.bf16.mxu0 0
    %3037 = vmatpush1.bf16.msra.mxu0 0
    %3038 = vmatprep.subr.bf16.mxu0 0
    %3039 = vmatpush1.bf16.msra.mxu0 0
    %3040 = vmatprep.subr.bf16.mxu0 0
    %3041 = vmatpush1.bf16.msra.mxu0 0
    %3042 = vmatprep.mubr.bf16.mxu0 0
    %3043 = vmatmul.mubr.bf16.gmra.mrb[0].mxu0 %v3008
    %v3044 = vpop.f32.mrb[0].mxu0
    %v3045 = vadd.f32 %v2981, %v3044
    %v3046 = vpop.f32.mrb[0].mxu0
    %v3047 = vpop.f32.mrb[0].mxu0
    %v3048 = vpop.f32.mrb[0].mxu0
    %3049 = vdwg.mxu0
    %v3050 = vtanh.pop %v3045
    %vm3051 = vcmask 517120
    %3052 = vst.msk [vmem:[#allocation4] sm:$0x3] %vm3051, %v3050
    %v3053 = vpack.c.bf16 %v3050, %v3050
    %v3054 = vld [vmem:[%s18] sm:$0xf]
    %v3055 = vld [vmem:[%s18 + $0x4] sm:$0xf]
    %v3056 = vld [vmem:[%s18 + $0x8] sm:$0xf]
    %v3057 = vld [vmem:[%s18 + $0xc] sm:$0xf]
    %v3058 = vld [vmem:[%s18 + $0x10] sm:$0xf]
    %v3059 = vld [vmem:[%s18 + $0x14] sm:$0xf]
    %v3060 = vld [vmem:[%s18 + $0x18] sm:$0xf]
    %v3061 = vld [vmem:[%s18 + $0x1c] sm:$0xf]
    %v3062 = vld [vmem:[%s19] sm:$0x1]
    %v3064 = vlaneseq
    %v3065 = vshrl.u32 %v3064, 7
    %v3066 = vsub.s32 0, %v3065
    %v3067 = vrot.slane %v3062, %v3066
    %v3077 = vunpack.c.l.b16 %v3054
    %v3078 = vunpack.c.l.b16 %v3055
    %v3079 = vunpack.c.l.b16 %v3056
    %v3080 = vunpack.c.l.b16 %v3057
    %v3081 = vunpack.c.l.b16 %v3058
    %v3082 = vunpack.c.l.b16 %v3059
    %v3083 = vunpack.c.l.b16 %v3060
    %v3084 = vunpack.c.l.b16 %v3061
    %v3085 = vpack.c.b16 %v3078, %v3077
    %v3086 = vpack.c.b16 %v3080, %v3079
    %v3087 = vpack.c.b16 %v3082, %v3081
    %v3088 = vpack.c.b16 %v3084, %v3083
    %v3094 = vsel %vm74, %v3053, 0
    %3096 = vmatprep.subr.bf16.mxu0 0
    %3097 = vmatpush1.bf16.msra.mxu0 %v3085
    %3098 = vmatprep.subr.bf16.mxu0 0
    %3099 = vmatpush1.bf16.msra.mxu0 %v3086
    %3100 = vmatprep.subr.bf16.mxu0 0
    %3101 = vmatpush1.bf16.msra.mxu0 %v3087
    %3102 = vmatprep.subr.bf16.mxu0 0
    %3103 = vmatpush1.bf16.msra.mxu0 %v3088
    %3104 = vmatprep.subr.bf16.mxu0 0
    %3105 = vmatpush1.bf16.msra.mxu0 0
    %3106 = vmatprep.subr.bf16.mxu0 0
    %3107 = vmatpush1.bf16.msra.mxu0 0
    %3108 = vmatprep.subr.bf16.mxu0 0
    %3109 = vmatpush1.bf16.msra.mxu0 0
    %3110 = vmatprep.subr.bf16.mxu0 0
    %3111 = vmatpush1.bf16.msra.mxu0 0
    %3112 = vmatprep.subr.bf16.mxu0 0
    %3113 = vmatpush1.bf16.msra.mxu0 0
    %3114 = vmatprep.subr.bf16.mxu0 0
    %3115 = vmatpush1.bf16.msra.mxu0 0
    %3116 = vmatprep.subr.bf16.mxu0 0
    %3117 = vmatpush1.bf16.msra.mxu0 0
    %3118 = vmatprep.subr.bf16.mxu0 0
    %3119 = vmatpush1.bf16.msra.mxu0 0
    %3120 = vmatprep.subr.bf16.mxu0 0
    %3121 = vmatpush1.bf16.msra.mxu0 0
    %3122 = vmatprep.subr.bf16.mxu0 0
    %3123 = vmatpush1.bf16.msra.mxu0 0
    %3124 = vmatprep.subr.bf16.mxu0 0
    %3125 = vmatpush1.bf16.msra.mxu0 0
    %3126 = vmatprep.subr.bf16.mxu0 0
    %3127 = vmatpush1.bf16.msra.mxu0 0
    %3128 = vmatprep.mubr.bf16.mxu0 0
    %3129 = vmatmul.mubr.bf16.gmra.mrb[0].mxu0 %v3094
    %v3130 = vpop.f32.mrb[0].mxu0
    %v3131 = vadd.f32 %v3067, %v3130
    %v3132 = vpop.f32.mrb[0].mxu0
    %v3133 = vpop.f32.mrb[0].mxu0
    %v3134 = vpop.f32.mrb[0].mxu0
    %3135 = vdwg.mxu0
    %vm3136 = vcmask 17408
    %3137 = vst.msk [vmem:[#allocation2] sm:$0x3] %vm3136, %v3131
    // Predicated region
    $region82: #{roberta_forward.1} parent=1 // pred_check
      _
    $region83: #{roberta_forward.1} parent=1 // pred_check_branch
      %3139 = sbr.rel (0) target = $region85
    $region84: #{roberta_forward.1} parent=1 // pred_region
      %s3141 = ssub.s32 32, 32
      %3142 = vsyncadd [#allocation3], %s3141
      %s3144 = sshll.u32 [#allocation2], 4
      %s3145 = int_to_ptr.vmem [resolvable:$true] %s3144
      %3147 = dma.vmem_to_hbm [thread:$0]  %s3145, 32, %s20, [#allocation3]
    $region85: #{roberta_forward.1} parent=1 // pred_fallthru
      _
    // Predicated region
    $region86: #{roberta_forward.1} parent=1 // pred_check
      _
    $region87: #{roberta_forward.1} parent=1 // pred_check_branch
      %3149 = sbr.rel (0) target = $region89
    $region88: #{roberta_forward.1} parent=1 // pred_region
      %s3151 = ssub.s32 32, 32
      %3152 = vsyncadd [#allocation5], %s3151
      %s3154 = sshll.u32 [#allocation4], 4
      %s3155 = int_to_ptr.vmem [resolvable:$true] %s3154
      %3157 = dma.vmem_to_hbm [thread:$0]  %s3155, 32, %s21, [#allocation5]
    $region89: #{roberta_forward.1} parent=1 // pred_fallthru
      _
    // Predicated region
    $region90: #{roberta_forward.1} parent=1 // pred_check
      _
    $region91: #{roberta_forward.1} parent=1 // pred_check_branch
      %3159 = sbr.rel (0) target = $region93
    $region92: #{roberta_forward.1} parent=1 // pred_region
      %3160 = dma.done [#allocation3], 32
    $region93: #{roberta_forward.1} parent=1 // pred_fallthru
      _
    // Predicated region
    $region94: #{roberta_forward.1} parent=1 // pred_check
      _
    $region95: #{roberta_forward.1} parent=1 // pred_check_branch
      %3162 = sbr.rel (0) target = $region97
    $region96: #{roberta_forward.1} parent=1 // pred_region
      %3163 = dma.done [#allocation5], 32
    $region97: #{roberta_forward.1} parent=1 // pred_fallthru
      _
    %3164 = vsyncpa [#allocation3], 1
    %3165 = vsyncpa [#allocation5], 1

</llo_original>
